<compile_context>
chip_gen: v6e
topology: v6e:2x2x1
jax: 0.10.0
libtpu: 0.0.40
codegen_flags: <defaults>
</compile_context>

<pallas_src>
import functools

import jax
import jax.numpy as jnp
from jax import lax
from jax.experimental import pallas as pl
from jax.experimental.pallas import tpu as pltpu

NEG = -1e30  # "minus infinity" that stays finite through every fp op


def _crf_normalizer_kernel(em_ref, se_ref, et_ref, out_ref, alpha_s, *, num_tags):
    """Forward-algorithm (logsumexp) recursion over one (LT, BB, TP) slab."""
    slab = pl.program_id(1)
    nslab = pl.num_programs(1)
    LT, BB, TP = em_ref.shape

    start = se_ref[0:1, :]          # (1, TP) start_transitions (pad lanes 0)
    end = se_ref[1:2, :]            # (1, TP) end_transitions   (pad lanes 0)
    etrans = et_ref[...]            # (TP, TP) exp(transitions); pad entries exactly 0

    @pl.when(slab == 0)
    def _():
        # alpha_0 = start + emissions[0].  The packed mask lane for global t==0
        # is forced to 0 in the wrapper, so the loop's first iteration below is
        # a no-op for this slab -> no per-step is_first selects needed.
        alpha_s[...] = start + em_ref[0]

    def step(t, alpha):
        em = em_ref[t]                                   # (BB, TP)
        mk = em[:, num_tags:num_tags + 1]                # mask packed in dead lane T
        m = jnp.max(alpha, axis=-1, keepdims=True)       # (BB, 1)
        p = jnp.exp(alpha - m)                           # (BB, TP)
        # Exp-space logsumexp recursion on the MXU; etrans is loop-invariant
        # (only matmul left in the loop).  HIGHEST retained: Mosaic dot_general
        # lowering rejects Precision.HIGH and DEFAULT breaks the tolerance.
        acc = jnp.dot(p, etrans, preferred_element_type=jnp.float32,
                      precision=jax.lax.Precision.HIGHEST)
        alpha_lse = jnp.log(jnp.maximum(acc, 1e-37)) + m + em
        return jnp.where(mk > 0.5, alpha_lse, alpha)

    alpha = lax.fori_loop(0, LT, step, alpha_s[...], unroll=8)
    alpha_s[...] = alpha            # persist carry for the next slab

    @pl.when(slab == nslab - 1)
    def _():
        lane = jax.lax.broadcasted_iota(jnp.int32, alpha.shape, 1)
        final = jnp.where(lane < num_tags, alpha + end, NEG)   # kill pad lanes once
        m2 = jnp.max(final, axis=-1, keepdims=True)
        denom = jnp.log(jnp.sum(jnp.exp(final - m2), axis=-1, keepdims=True)) + m2
        out_ref[...] = jnp.broadcast_to(denom, out_ref.shape)  # lane-dense slab


def _gold_score(emissions, tags, labels, mask, start, end, trans):
    """Vectorized gold-path score, matching _compute_score (score_1 branch).

    No sequential dependence -> hoisted out of the Pallas kernel entirely.
    """
    L, B, _ = emissions.shape
    maskf = mask.astype(jnp.float32)
    ar = jnp.arange(B)
    em_t = jnp.take_along_axis(emissions, tags[..., None], axis=2)[..., 0]  # (L, B)
    lb_t = jnp.take_along_axis(labels, tags[..., None], axis=2)[..., 0]     # (L, B)
    score = start[tags[0]] + em_t[0]
    if L > 1:
        lb_prev = jnp.take_along_axis(labels[1:], tags[:-1][..., None], axis=2)[..., 0]
        trans_t = trans[tags[:-1], tags[1:]]                                # (L-1, B)
        s1 = lb_t[1:] * lb_prev * maskf[1:] * (trans_t + em_t[1:])
        score = score + jnp.sum(s1, axis=0)
    score = score - jnp.sum(lb_t * jnp.log(lb_t), axis=0)                   # entropy term
    seq_ends = jnp.sum(maskf, axis=0).astype(jnp.int32) - 1
    last_tags = tags[seq_ends, ar]
    score = score + end[last_tags]
    return -score                                                            # numerator


def crf_forward(emissions, tags, labels_tiled, mask,
                start_transitions, end_transitions, transitions,
                reduction='mean', max_slab=256):
    """Pallas implementation of CRF.forward (batch_first=False semantics)."""
    L, B, T = emissions.shape
    emissions = emissions.astype(jnp.float32)
    labels_tiled = labels_tiled.astype(jnp.float32)
    maskf = mask.astype(jnp.float32)

    # ---- gold-path score (numerator): no recurrence -> plain JAX in wrapper ----
    numerator = _gold_score(emissions, tags, labels_tiled, mask,
                            start_transitions.astype(jnp.float32),
                            end_transitions.astype(jnp.float32),
                            transitions.astype(jnp.float32))

    # ---- normalizer (forward algorithm): sequential -> Pallas kernel ----
    BB = 8                                      # sublanes per batch block
    TP = ((T + 1 + 127) // 128) * 128           # >= T+1 so one dead lane carries mask
    BP = ((B + BB - 1) // BB) * BB
    NB = BP // BB
    LT = min(L, max_slab)                       # timesteps per grid step
    L_pad = ((L + LT - 1) // LT) * LT

    # Emissions slab with the per-step mask packed into dead lane `T`.
    # Lane T at t==0 stays 0 so the kernel's peeled init replaces the first
    # loop iteration; padded timesteps/rows also have mask 0 -> no-ops.
    em_p = jnp.zeros((L_pad, BP, TP), jnp.float32)
    em_p = em_p.at[:L, :B, :T].set(emissions)
    em_p = em_p.at[1:L, :B, T].set(maskf[1:])

    se = jnp.zeros((2, TP), jnp.float32)
    se = se.at[0, :T].set(start_transitions.astype(jnp.float32))
    se = se.at[1, :T].set(end_transitions.astype(jnp.float32))
    etrans = jnp.zeros((TP, TP), jnp.float32).at[:T, :T].set(
        jnp.exp(transitions.astype(jnp.float32)))

    out = pl.pallas_call(
        functools.partial(_crf_normalizer_kernel, num_tags=T),
        out_shape=jax.ShapeDtypeStruct((BP, TP), jnp.float32),
        grid=(NB, L_pad // LT),
        in_specs=[
            pl.BlockSpec((LT, BB, TP), lambda b, s: (s, b, 0)),  # emissions(+mask) slab
            pl.BlockSpec((2, TP), lambda b, s: (0, 0)),          # [start; end]
            pl.BlockSpec((TP, TP), lambda b, s: (0, 0)),         # exp(transitions)
        ],
        out_specs=pl.BlockSpec((BB, TP), lambda b, s: (b, 0)),
        scratch_shapes=[pltpu.VMEM((BB, TP), jnp.float32)],      # alpha carry
        compiler_params=pltpu.CompilerParams(
            dimension_semantics=("parallel", "arbitrary")),
    )(em_p, se, etrans)

    denominator = out[:B, 0]
    llh = numerator + denominator
    if reduction == 'none':
        return llh
    if reduction == 'sum':
        return jnp.sum(llh)
    if reduction == 'mean':
        return jnp.mean(llh)
    return jnp.sum(llh) / jnp.sum(maskf)                         # token_mean


def crf_forward_ref(emissions, tags, labels, mask, start, end, trans):
    """Pure-JAX reference mirroring the PyTorch module (per-batch llh)."""
    L, B, T = emissions.shape
    maskf = mask.astype(jnp.float32)
    ar = jnp.arange(B)
    score = start[tags[0]] + emissions[0, ar, tags[0]]
    for i in range(1, L):
        s1 = trans[tags[i - 1], tags[i]] * maskf[i]
        s1 = s1 + emissions[i, ar, tags[i]] * maskf[i]
        s1 = labels[i, ar, tags[i]] * labels[i, ar, tags[i - 1]] * s1
        score = score + s1
    for i in range(L):
        score = score - labels[i, ar, tags[i]] * jnp.log(labels[i, ar, tags[i]])
    seq_ends = jnp.sum(mask, axis=0).astype(jnp.int32) - 1
    last_tags = tags[seq_ends, ar]
    score = score + end[last_tags]
    numerator = -score

    alpha = start[None, :] + emissions[0]
    for i in range(1, L):
        nxt = alpha[:, :, None] + trans[None, :, :] + emissions[i][:, None, :]
        nxt = jax.scipy.special.logsumexp(nxt, axis=1)
        alpha = jnp.where(maskf[i][:, None] > 0.5, nxt, alpha)
    denominator = jax.scipy.special.logsumexp(alpha + end[None, :], axis=1)
    return numerator + denominator


if __name__ == "__main__":
    key = jax.random.PRNGKey(0)
    L, B, T = 8, 2, 5     # seq_len, batch, num_tags   (batch_first=False layout)

    k1, k2, k3, k4, k5, k6 = jax.random.split(key, 6)
    # Deterministic parameter init: uniform(-0.1, 0.1), matching reset_parameters().
    start_transitions = jax.random.uniform(k1, (T,), jnp.float32, -0.1, 0.1)
    end_transitions = jax.random.uniform(k2, (T,), jnp.float32, -0.1, 0.1)
    transitions = jax.random.uniform(k3, (T, T), jnp.float32, -0.1, 0.1)
    # TODO(synk): transitions_prime only feeds score_2, which the original forward
    # discards (score = score_1), so it does not affect the output and is omitted.

    emissions = jax.random.normal(k4, (L, B, T), jnp.float32)
    tags = jax.random.randint(k5, (L, B), 0, T, jnp.int32)
    labels_tiled = jax.nn.softmax(jax.random.normal(k6, (L, B, T), jnp.float32), axis=-1)
    # mask: first timestep all on (required by _validate); batch 1 padded at the end.
    mask = jnp.ones((L, B), jnp.int32).at[L - 2:, 1].set(0)

    out_none = crf_forward(emissions, tags, labels_tiled, mask,
                           start_transitions, end_transitions, transitions,
                           reduction='none')
    out_mean = crf_forward(emissions, tags, labels_tiled, mask,
                           start_transitions, end_transitions, transitions,
                           reduction='mean')
    jax.block_until_ready(out_none)
    jax.block_until_ready(out_mean)

    ref_none = crf_forward_ref(emissions, tags, labels_tiled, mask,
                               start_transitions, end_transitions, transitions)
    assert jnp.allclose(out_none, ref_none, atol=1e-4, rtol=1e-4), (out_none, ref_none)
    assert jnp.allclose(out_mean, jnp.mean(ref_none), atol=1e-4, rtol=1e-4)
    print("KERNEL_OK")
</pallas_src>

<mosaic_0001>
module attributes {stable_mosaic.version = 11 : i64} {
  func.func @_crf_normalizer_kernel(%arg0: i32, %arg1: i32, %arg2: memref<8x8x128xf32, #tpu.memory_space<vmem>>, %arg3: memref<2x128xf32, #tpu.memory_space<vmem>>, %arg4: memref<128x128xf32, #tpu.memory_space<vmem>>, %arg5: memref<8x128xf32, #tpu.memory_space<vmem>>, %arg6: memref<8x128xf32, #tpu.memory_space<vmem>>) attributes {dimension_semantics = [#tpu.dimension_semantics<parallel>, #tpu.dimension_semantics<arbitrary>], iteration_bounds = array<i64: 1, 1>, scalar_prefetch = 0 : i64, scratch_operands = 1 : i64, tpu.core_type = #tpu.core_type<tc>, window_params = [{transform_indices = @transform_0, window_bounds = array<i64: 8, 8, 128>}, {pipeline_mode = #tpu.pipeline_mode<synchronous>, transform_indices = @transform_1, window_bounds = array<i64: 2, 128>}, {pipeline_mode = #tpu.pipeline_mode<synchronous>, transform_indices = @transform_2, window_bounds = array<i64: 128, 128>}, {transform_indices = @transform_3, window_bounds = array<i64: 8, 128>}]} {
    %c0 = arith.constant 0 : index
    %c0_0 = arith.constant 0 : index
    %0 = vector.load %arg3[%c0, %c0_0] : memref<2x128xf32, #tpu.memory_space<vmem>>, vector<1x128xf32>
    %c1 = arith.constant 1 : index
    %c0_1 = arith.constant 0 : index
    %1 = vector.load %arg3[%c1, %c0_1] : memref<2x128xf32, #tpu.memory_space<vmem>>, vector<1x128xf32>
    %c0_2 = arith.constant 0 : index
    %c0_3 = arith.constant 0 : index
    %2 = vector.load %arg4[%c0_2, %c0_3] : memref<128x128xf32, #tpu.memory_space<vmem>>, vector<128x128xf32>
    %c0_i32 = arith.constant 0 : i32
    %3 = arith.cmpi eq, %arg1, %c0_i32 : i32
    %4 = arith.extui %3 : i1 to i32
    %c0_i32_4 = arith.constant 0 : i32
    %5 = arith.cmpi ne, %4, %c0_i32_4 : i32
    scf.if %5 {
      %c0_59 = arith.constant 0 : index
      %c0_60 = arith.constant 0 : index
      %c0_61 = arith.constant 0 : index
      %179 = vector.load %arg2[%c0_59, %c0_60, %c0_61] : memref<8x8x128xf32, #tpu.memory_space<vmem>>, vector<1x8x128xf32>
      %180 = vector.shape_cast %179 : vector<1x8x128xf32> to vector<8x128xf32>
      %181 = vector.broadcast %0 : vector<1x128xf32> to vector<8x128xf32>
      %182 = arith.addf %181, %180 : vector<8x128xf32>
      %c0_62 = arith.constant 0 : index
      %c0_63 = arith.constant 0 : index
      %183 = vector.load %arg6[%c0_62, %c0_63] : memref<8x128xf32, #tpu.memory_space<vmem>>, vector<8x128xf32>
      tpu.vector_store %arg6[%c0_62, %c0_63], %182 {strides = array<i32>} : memref<8x128xf32, #tpu.memory_space<vmem>>, vector<8x128xf32>,
    } else {
    }
    %c0_5 = arith.constant 0 : index
    %c0_6 = arith.constant 0 : index
    %6 = vector.load %arg6[%c0_5, %c0_6] : memref<8x128xf32, #tpu.memory_space<vmem>>, vector<8x128xf32>
    %c0_i32_7 = arith.constant 0 : i32
    %7 = arith.index_cast %c0_i32_7 : i32 to index
    %c0_8 = arith.constant 0 : index
    %c0_9 = arith.constant 0 : index
    %8 = vector.load %arg2[%7, %c0_8, %c0_9] : memref<8x8x128xf32, #tpu.memory_space<vmem>>, vector<1x8x128xf32>
    %9 = vector.shape_cast %8 : vector<1x8x128xf32> to vector<8x128xf32>
    %10 = vector.extract_strided_slice %9 {offsets = [0, 5], sizes = [8, 1], strides = [1, 1]} : vector<8x128xf32> to vector<8x1xf32>
    %cst = arith.constant dense<0xFF800000> : vector<8xf32>
    %11 = vector.multi_reduction <maximumf>, %6, %cst [1] : vector<8x128xf32> to vector<8xf32>
    %12 = vector.shape_cast %11 : vector<8xf32> to vector<8x1xf32>
    %13 = vector.broadcast %12 : vector<8x1xf32> to vector<8x128xf32>
    %14 = arith.subf %6, %13 : vector<8x128xf32>
    %15 = math.exp %14 : vector<8x128xf32>
    %cst_10 = arith.constant dense<0.000000e+00> : vector<8x128xf32>
    %16 = tpu.matmul %15, %2, %cst_10 {dimension_numbers = #tpu.dot_dimension_numbers<[1], [0], [0], [1], [0, 0, 1, 1], [], []>, precision = #tpu.contract_precision<fp32>} : vector<8x128xf32>, vector<128x128xf32>, vector<8x128xf32> -> vector<8x128xf32>
    %cst_11 = arith.constant 9.99999991E-38 : f32
    %17 = vector.broadcast %cst_11 : f32 to vector<8x128xf32>
    %18 = arith.maximumf %16, %17 : vector<8x128xf32>
    %19 = math.log %18 : vector<8x128xf32>
    %20 = vector.broadcast %12 : vector<8x1xf32> to vector<8x128xf32>
    %21 = arith.addf %19, %20 : vector<8x128xf32>
    %22 = arith.addf %21, %9 : vector<8x128xf32>
    %cst_12 = arith.constant 5.000000e-01 : f32
    %23 = vector.broadcast %cst_12 : f32 to vector<8x1xf32>
    %24 = arith.cmpf ogt, %10, %23 : vector<8x1xf32>
    %25 = vector.shape_cast %24 : vector<8x1xi1> to vector<8x1xi1>
    %26 = vector.broadcast %25 : vector<8x1xi1> to vector<8x128xi1>
    %27 = arith.select %26, %22, %6 : vector<8x128xi1>, vector<8x128xf32>
    %c1_i32 = arith.constant 1 : i32
    %28 = arith.index_cast %c1_i32 : i32 to index
    %c0_13 = arith.constant 0 : index
    %c0_14 = arith.constant 0 : index
    %29 = vector.load %arg2[%28, %c0_13, %c0_14] : memref<8x8x128xf32, #tpu.memory_space<vmem>>, vector<1x8x128xf32>
    %30 = vector.shape_cast %29 : vector<1x8x128xf32> to vector<8x128xf32>
    %31 = vector.extract_strided_slice %30 {offsets = [0, 5], sizes = [8, 1], strides = [1, 1]} : vector<8x128xf32> to vector<8x1xf32>
    %cst_15 = arith.constant dense<0xFF800000> : vector<8xf32>
    %32 = vector.multi_reduction <maximumf>, %27, %cst_15 [1] : vector<8x128xf32> to vector<8xf32>
    %33 = vector.shape_cast %32 : vector<8xf32> to vector<8x1xf32>
    %34 = vector.broadcast %33 : vector<8x1xf32> to vector<8x128xf32>
    %35 = arith.subf %27, %34 : vector<8x128xf32>
    %36 = math.exp %35 : vector<8x128xf32>
    %cst_16 = arith.constant dense<0.000000e+00> : vector<8x128xf32>
    %37 = tpu.matmul %36, %2, %cst_16 {dimension_numbers = #tpu.dot_dimension_numbers<[1], [0], [0], [1], [0, 0, 1, 1], [], []>, precision = #tpu.contract_precision<fp32>} : vector<8x128xf32>, vector<128x128xf32>, vector<8x128xf32> -> vector<8x128xf32>
    %cst_17 = arith.constant 9.99999991E-38 : f32
    %38 = vector.broadcast %cst_17 : f32 to vector<8x128xf32>
    %39 = arith.maximumf %37, %38 : vector<8x128xf32>
    %40 = math.log %39 : vector<8x128xf32>
    %41 = vector.broadcast %33 : vector<8x1xf32> to vector<8x128xf32>
    %42 = arith.addf %40, %41 : vector<8x128xf32>
    %43 = arith.addf %42, %30 : vector<8x128xf32>
    %cst_18 = arith.constant 5.000000e-01 : f32
    %44 = vector.broadcast %cst_18 : f32 to vector<8x1xf32>
    %45 = arith.cmpf ogt, %31, %44 : vector<8x1xf32>
    %46 = vector.shape_cast %45 : vector<8x1xi1> to vector<8x1xi1>
    %47 = vector.broadcast %46 : vector<8x1xi1> to vector<8x128xi1>
    %48 = arith.select %47, %43, %27 : vector<8x128xi1>, vector<8x128xf32>
    %c2_i32 = arith.constant 2 : i32
    %49 = arith.index_cast %c2_i32 : i32 to index
    %c0_19 = arith.constant 0 : index
    %c0_20 = arith.constant 0 : index
    %50 = vector.load %arg2[%49, %c0_19, %c0_20] : memref<8x8x128xf32, #tpu.memory_space<vmem>>, vector<1x8x128xf32>
    %51 = vector.shape_cast %50 : vector<1x8x128xf32> to vector<8x128xf32>
    %52 = vector.extract_strided_slice %51 {offsets = [0, 5], sizes = [8, 1], strides = [1, 1]} : vector<8x128xf32> to vector<8x1xf32>
    %cst_21 = arith.constant dense<0xFF800000> : vector<8xf32>
    %53 = vector.multi_reduction <maximumf>, %48, %cst_21 [1] : vector<8x128xf32> to vector<8xf32>
    %54 = vector.shape_cast %53 : vector<8xf32> to vector<8x1xf32>
    %55 = vector.broadcast %54 : vector<8x1xf32> to vector<8x128xf32>
    %56 = arith.subf %48, %55 : vector<8x128xf32>
    %57 = math.exp %56 : vector<8x128xf32>
    %cst_22 = arith.constant dense<0.000000e+00> : vector<8x128xf32>
    %58 = tpu.matmul %57, %2, %cst_22 {dimension_numbers = #tpu.dot_dimension_numbers<[1], [0], [0], [1], [0, 0, 1, 1], [], []>, precision = #tpu.contract_precision<fp32>} : vector<8x128xf32>, vector<128x128xf32>, vector<8x128xf32> -> vector<8x128xf32>
    %cst_23 = arith.constant 9.99999991E-38 : f32
    %59 = vector.broadcast %cst_23 : f32 to vector<8x128xf32>
    %60 = arith.maximumf %58, %59 : vector<8x128xf32>
    %61 = math.log %60 : vector<8x128xf32>
    %62 = vector.broadcast %54 : vector<8x1xf32> to vector<8x128xf32>
    %63 = arith.addf %61, %62 : vector<8x128xf32>
    %64 = arith.addf %63, %51 : vector<8x128xf32>
    %cst_24 = arith.constant 5.000000e-01 : f32
    %65 = vector.broadcast %cst_24 : f32 to vector<8x1xf32>
    %66 = arith.cmpf ogt, %52, %65 : vector<8x1xf32>
    %67 = vector.shape_cast %66 : vector<8x1xi1> to vector<8x1xi1>
    %68 = vector.broadcast %67 : vector<8x1xi1> to vector<8x128xi1>
    %69 = arith.select %68, %64, %48 : vector<8x128xi1>, vector<8x128xf32>
    %c3_i32 = arith.constant 3 : i32
    %70 = arith.index_cast %c3_i32 : i32 to index
    %c0_25 = arith.constant 0 : index
    %c0_26 = arith.constant 0 : index
    %71 = vector.load %arg2[%70, %c0_25, %c0_26] : memref<8x8x128xf32, #tpu.memory_space<vmem>>, vector<1x8x128xf32>
    %72 = vector.shape_cast %71 : vector<1x8x128xf32> to vector<8x128xf32>
    %73 = vector.extract_strided_slice %72 {offsets = [0, 5], sizes = [8, 1], strides = [1, 1]} : vector<8x128xf32> to vector<8x1xf32>
    %cst_27 = arith.constant dense<0xFF800000> : vector<8xf32>
    %74 = vector.multi_reduction <maximumf>, %69, %cst_27 [1] : vector<8x128xf32> to vector<8xf32>
    %75 = vector.shape_cast %74 : vector<8xf32> to vector<8x1xf32>
    %76 = vector.broadcast %75 : vector<8x1xf32> to vector<8x128xf32>
    %77 = arith.subf %69, %76 : vector<8x128xf32>
    %78 = math.exp %77 : vector<8x128xf32>
    %cst_28 = arith.constant dense<0.000000e+00> : vector<8x128xf32>
    %79 = tpu.matmul %78, %2, %cst_28 {dimension_numbers = #tpu.dot_dimension_numbers<[1], [0], [0], [1], [0, 0, 1, 1], [], []>, precision = #tpu.contract_precision<fp32>} : vector<8x128xf32>, vector<128x128xf32>, vector<8x128xf32> -> vector<8x128xf32>
    %cst_29 = arith.constant 9.99999991E-38 : f32
    %80 = vector.broadcast %cst_29 : f32 to vector<8x128xf32>
    %81 = arith.maximumf %79, %80 : vector<8x128xf32>
    %82 = math.log %81 : vector<8x128xf32>
    %83 = vector.broadcast %75 : vector<8x1xf32> to vector<8x128xf32>
    %84 = arith.addf %82, %83 : vector<8x128xf32>
    %85 = arith.addf %84, %72 : vector<8x128xf32>
    %cst_30 = arith.constant 5.000000e-01 : f32
    %86 = vector.broadcast %cst_30 : f32 to vector<8x1xf32>
    %87 = arith.cmpf ogt, %73, %86 : vector<8x1xf32>
    %88 = vector.shape_cast %87 : vector<8x1xi1> to vector<8x1xi1>
    %89 = vector.broadcast %88 : vector<8x1xi1> to vector<8x128xi1>
    %90 = arith.select %89, %85, %69 : vector<8x128xi1>, vector<8x128xf32>
    %c4_i32 = arith.constant 4 : i32
    %91 = arith.index_cast %c4_i32 : i32 to index
    %c0_31 = arith.constant 0 : index
    %c0_32 = arith.constant 0 : index
    %92 = vector.load %arg2[%91, %c0_31, %c0_32] : memref<8x8x128xf32, #tpu.memory_space<vmem>>, vector<1x8x128xf32>
    %93 = vector.shape_cast %92 : vector<1x8x128xf32> to vector<8x128xf32>
    %94 = vector.extract_strided_slice %93 {offsets = [0, 5], sizes = [8, 1], strides = [1, 1]} : vector<8x128xf32> to vector<8x1xf32>
    %cst_33 = arith.constant dense<0xFF800000> : vector<8xf32>
    %95 = vector.multi_reduction <maximumf>, %90, %cst_33 [1] : vector<8x128xf32> to vector<8xf32>
    %96 = vector.shape_cast %95 : vector<8xf32> to vector<8x1xf32>
    %97 = vector.broadcast %96 : vector<8x1xf32> to vector<8x128xf32>
    %98 = arith.subf %90, %97 : vector<8x128xf32>
    %99 = math.exp %98 : vector<8x128xf32>
    %cst_34 = arith.constant dense<0.000000e+00> : vector<8x128xf32>
    %100 = tpu.matmul %99, %2, %cst_34 {dimension_numbers = #tpu.dot_dimension_numbers<[1], [0], [0], [1], [0, 0, 1, 1], [], []>, precision = #tpu.contract_precision<fp32>} : vector<8x128xf32>, vector<128x128xf32>, vector<8x128xf32> -> vector<8x128xf32>
    %cst_35 = arith.constant 9.99999991E-38 : f32
    %101 = vector.broadcast %cst_35 : f32 to vector<8x128xf32>
    %102 = arith.maximumf %100, %101 : vector<8x128xf32>
    %103 = math.log %102 : vector<8x128xf32>
    %104 = vector.broadcast %96 : vector<8x1xf32> to vector<8x128xf32>
    %105 = arith.addf %103, %104 : vector<8x128xf32>
    %106 = arith.addf %105, %93 : vector<8x128xf32>
    %cst_36 = arith.constant 5.000000e-01 : f32
    %107 = vector.broadcast %cst_36 : f32 to vector<8x1xf32>
    %108 = arith.cmpf ogt, %94, %107 : vector<8x1xf32>
    %109 = vector.shape_cast %108 : vector<8x1xi1> to vector<8x1xi1>
    %110 = vector.broadcast %109 : vector<8x1xi1> to vector<8x128xi1>
    %111 = arith.select %110, %106, %90 : vector<8x128xi1>, vector<8x128xf32>
    %c5_i32 = arith.constant 5 : i32
    %112 = arith.index_cast %c5_i32 : i32 to index
    %c0_37 = arith.constant 0 : index
    %c0_38 = arith.constant 0 : index
    %113 = vector.load %arg2[%112, %c0_37, %c0_38] : memref<8x8x128xf32, #tpu.memory_space<vmem>>, vector<1x8x128xf32>
    %114 = vector.shape_cast %113 : vector<1x8x128xf32> to vector<8x128xf32>
    %115 = vector.extract_strided_slice %114 {offsets = [0, 5], sizes = [8, 1], strides = [1, 1]} : vector<8x128xf32> to vector<8x1xf32>
    %cst_39 = arith.constant dense<0xFF800000> : vector<8xf32>
    %116 = vector.multi_reduction <maximumf>, %111, %cst_39 [1] : vector<8x128xf32> to vector<8xf32>
    %117 = vector.shape_cast %116 : vector<8xf32> to vector<8x1xf32>
    %118 = vector.broadcast %117 : vector<8x1xf32> to vector<8x128xf32>
    %119 = arith.subf %111, %118 : vector<8x128xf32>
    %120 = math.exp %119 : vector<8x128xf32>
    %cst_40 = arith.constant dense<0.000000e+00> : vector<8x128xf32>
    %121 = tpu.matmul %120, %2, %cst_40 {dimension_numbers = #tpu.dot_dimension_numbers<[1], [0], [0], [1], [0, 0, 1, 1], [], []>, precision = #tpu.contract_precision<fp32>} : vector<8x128xf32>, vector<128x128xf32>, vector<8x128xf32> -> vector<8x128xf32>
    %cst_41 = arith.constant 9.99999991E-38 : f32
    %122 = vector.broadcast %cst_41 : f32 to vector<8x128xf32>
    %123 = arith.maximumf %121, %122 : vector<8x128xf32>
    %124 = math.log %123 : vector<8x128xf32>
    %125 = vector.broadcast %117 : vector<8x1xf32> to vector<8x128xf32>
    %126 = arith.addf %124, %125 : vector<8x128xf32>
    %127 = arith.addf %126, %114 : vector<8x128xf32>
    %cst_42 = arith.constant 5.000000e-01 : f32
    %128 = vector.broadcast %cst_42 : f32 to vector<8x1xf32>
    %129 = arith.cmpf ogt, %115, %128 : vector<8x1xf32>
    %130 = vector.shape_cast %129 : vector<8x1xi1> to vector<8x1xi1>
    %131 = vector.broadcast %130 : vector<8x1xi1> to vector<8x128xi1>
    %132 = arith.select %131, %127, %111 : vector<8x128xi1>, vector<8x128xf32>
    %c6_i32 = arith.constant 6 : i32
    %133 = arith.index_cast %c6_i32 : i32 to index
    %c0_43 = arith.constant 0 : index
    %c0_44 = arith.constant 0 : index
    %134 = vector.load %arg2[%133, %c0_43, %c0_44] : memref<8x8x128xf32, #tpu.memory_space<vmem>>, vector<1x8x128xf32>
    %135 = vector.shape_cast %134 : vector<1x8x128xf32> to vector<8x128xf32>
    %136 = vector.extract_strided_slice %135 {offsets = [0, 5], sizes = [8, 1], strides = [1, 1]} : vector<8x128xf32> to vector<8x1xf32>
    %cst_45 = arith.constant dense<0xFF800000> : vector<8xf32>
    %137 = vector.multi_reduction <maximumf>, %132, %cst_45 [1] : vector<8x128xf32> to vector<8xf32>
    %138 = vector.shape_cast %137 : vector<8xf32> to vector<8x1xf32>
    %139 = vector.broadcast %138 : vector<8x1xf32> to vector<8x128xf32>
    %140 = arith.subf %132, %139 : vector<8x128xf32>
    %141 = math.exp %140 : vector<8x128xf32>
    %cst_46 = arith.constant dense<0.000000e+00> : vector<8x128xf32>
    %142 = tpu.matmul %141, %2, %cst_46 {dimension_numbers = #tpu.dot_dimension_numbers<[1], [0], [0], [1], [0, 0, 1, 1], [], []>, precision = #tpu.contract_precision<fp32>} : vector<8x128xf32>, vector<128x128xf32>, vector<8x128xf32> -> vector<8x128xf32>
    %cst_47 = arith.constant 9.99999991E-38 : f32
    %143 = vector.broadcast %cst_47 : f32 to vector<8x128xf32>
    %144 = arith.maximumf %142, %143 : vector<8x128xf32>
    %145 = math.log %144 : vector<8x128xf32>
    %146 = vector.broadcast %138 : vector<8x1xf32> to vector<8x128xf32>
    %147 = arith.addf %145, %146 : vector<8x128xf32>
    %148 = arith.addf %147, %135 : vector<8x128xf32>
    %cst_48 = arith.constant 5.000000e-01 : f32
    %149 = vector.broadcast %cst_48 : f32 to vector<8x1xf32>
    %150 = arith.cmpf ogt, %136, %149 : vector<8x1xf32>
    %151 = vector.shape_cast %150 : vector<8x1xi1> to vector<8x1xi1>
    %152 = vector.broadcast %151 : vector<8x1xi1> to vector<8x128xi1>
    %153 = arith.select %152, %148, %132 : vector<8x128xi1>, vector<8x128xf32>
    %c7_i32 = arith.constant 7 : i32
    %154 = arith.index_cast %c7_i32 : i32 to index
    %c0_49 = arith.constant 0 : index
    %c0_50 = arith.constant 0 : index
    %155 = vector.load %arg2[%154, %c0_49, %c0_50] : memref<8x8x128xf32, #tpu.memory_space<vmem>>, vector<1x8x128xf32>
    %156 = vector.shape_cast %155 : vector<1x8x128xf32> to vector<8x128xf32>
    %157 = vector.extract_strided_slice %156 {offsets = [0, 5], sizes = [8, 1], strides = [1, 1]} : vector<8x128xf32> to vector<8x1xf32>
    %cst_51 = arith.constant dense<0xFF800000> : vector<8xf32>
    %158 = vector.multi_reduction <maximumf>, %153, %cst_51 [1] : vector<8x128xf32> to vector<8xf32>
    %159 = vector.shape_cast %158 : vector<8xf32> to vector<8x1xf32>
    %160 = vector.broadcast %159 : vector<8x1xf32> to vector<8x128xf32>
    %161 = arith.subf %153, %160 : vector<8x128xf32>
    %162 = math.exp %161 : vector<8x128xf32>
    %cst_52 = arith.constant dense<0.000000e+00> : vector<8x128xf32>
    %163 = tpu.matmul %162, %2, %cst_52 {dimension_numbers = #tpu.dot_dimension_numbers<[1], [0], [0], [1], [0, 0, 1, 1], [], []>, precision = #tpu.contract_precision<fp32>} : vector<8x128xf32>, vector<128x128xf32>, vector<8x128xf32> -> vector<8x128xf32>
    %cst_53 = arith.constant 9.99999991E-38 : f32
    %164 = vector.broadcast %cst_53 : f32 to vector<8x128xf32>
    %165 = arith.maximumf %163, %164 : vector<8x128xf32>
    %166 = math.log %165 : vector<8x128xf32>
    %167 = vector.broadcast %159 : vector<8x1xf32> to vector<8x128xf32>
    %168 = arith.addf %166, %167 : vector<8x128xf32>
    %169 = arith.addf %168, %156 : vector<8x128xf32>
    %cst_54 = arith.constant 5.000000e-01 : f32
    %170 = vector.broadcast %cst_54 : f32 to vector<8x1xf32>
    %171 = arith.cmpf ogt, %157, %170 : vector<8x1xf32>
    %172 = vector.shape_cast %171 : vector<8x1xi1> to vector<8x1xi1>
    %173 = vector.broadcast %172 : vector<8x1xi1> to vector<8x128xi1>
    %174 = arith.select %173, %169, %153 : vector<8x128xi1>, vector<8x128xf32>
    %c8_i32 = arith.constant 8 : i32
    %c0_55 = arith.constant 0 : index
    %c0_56 = arith.constant 0 : index
    %175 = vector.load %arg6[%c0_55, %c0_56] : memref<8x128xf32, #tpu.memory_space<vmem>>, vector<8x128xf32>
    tpu.vector_store %arg6[%c0_55, %c0_56], %174 {strides = array<i32>} : memref<8x128xf32, #tpu.memory_space<vmem>>, vector<8x128xf32>,
    %c0_i32_57 = arith.constant 0 : i32
    %176 = arith.cmpi eq, %arg1, %c0_i32_57 : i32
    %177 = arith.extui %176 : i1 to i32
    %c0_i32_58 = arith.constant 0 : i32
    %178 = arith.cmpi ne, %177, %c0_i32_58 : i32
    scf.if %178 {
      %179 = tpu.iota {dimensions = array<i32: 1>} : vector<8x128xi32>
      %c5_i32_59 = arith.constant 5 : i32
      %180 = vector.broadcast %c5_i32_59 : i32 to vector<8x128xi32>
      %181 = arith.cmpi slt, %179, %180 : vector<8x128xi32>
      %182 = vector.broadcast %1 : vector<1x128xf32> to vector<8x128xf32>
      %183 = arith.addf %174, %182 : vector<8x128xf32>
      %cst_60 = arith.constant -1.000000e+30 : f32
      %184 = vector.broadcast %cst_60 : f32 to vector<8x128xf32>
      %185 = arith.select %181, %183, %184 : vector<8x128xi1>, vector<8x128xf32>
      %cst_61 = arith.constant dense<0xFF800000> : vector<8xf32>
      %186 = vector.multi_reduction <maximumf>, %185, %cst_61 [1] : vector<8x128xf32> to vector<8xf32>
      %187 = vector.shape_cast %186 : vector<8xf32> to vector<8x1xf32>
      %188 = vector.broadcast %187 : vector<8x1xf32> to vector<8x128xf32>
      %189 = arith.subf %185, %188 : vector<8x128xf32>
      %190 = math.exp %189 : vector<8x128xf32>
      %cst_62 = arith.constant dense<0.000000e+00> : vector<8xf32>
      %191 = vector.multi_reduction <add>, %190, %cst_62 [1] : vector<8x128xf32> to vector<8xf32>
      %192 = vector.shape_cast %191 : vector<8xf32> to vector<8x1xf32>
      %193 = math.log %192 : vector<8x1xf32>
      %194 = arith.addf %193, %187 : vector<8x1xf32>
      %195 = vector.shape_cast %194 : vector<8x1xf32> to vector<8x1xf32>
      %196 = vector.broadcast %195 : vector<8x1xf32> to vector<8x128xf32>
      %c0_63 = arith.constant 0 : index
      %c0_64 = arith.constant 0 : index
      %197 = vector.load %arg5[%c0_63, %c0_64] : memref<8x128xf32, #tpu.memory_space<vmem>>, vector<8x128xf32>
      tpu.vector_store %arg5[%c0_63, %c0_64], %196 {strides = array<i32>} : memref<8x128xf32, #tpu.memory_space<vmem>>, vector<8x128xf32>,
    } else {
    }
    return
  }
  func.func @transform_0(%arg0: i32, %arg1: i32) -> (i32, i32, i32) {
    %c0_i32 = arith.constant 0 : i32
    %c0_i32_0 = arith.constant 0 : i32
    return %arg1, %arg0, %c0_i32 : i32, i32, i32
  }
  func.func @transform_1(%arg0: i32, %arg1: i32) -> (i32, i32) {
    %c0_i32 = arith.constant 0 : i32
    %c0_i32_0 = arith.constant 0 : i32
    %c0_i32_1 = arith.constant 0 : i32
    return %c0_i32, %c0_i32_0 : i32, i32
  }
  func.func @transform_2(%arg0: i32, %arg1: i32) -> (i32, i32) {
    %c0_i32 = arith.constant 0 : i32
    %c0_i32_0 = arith.constant 0 : i32
    %c0_i32_1 = arith.constant 0 : i32
    return %c0_i32, %c0_i32_0 : i32, i32
  }
  func.func @transform_3(%arg0: i32, %arg1: i32) -> (i32, i32) {
    %c0_i32 = arith.constant 0 : i32
    %c0_i32_0 = arith.constant 0 : i32
    return %arg0, %c0_i32 : i32, i32
  }
}

</mosaic_0001>

<llo_original>
// kernel: tpu_custom_call.1
$region0: #{tpu_custom_call.1}
  #allocation0 [shape = 'u32[]', space=smem, size = 0x4, offset = 0x4, fixed_abs, tag = 'smem constant byte address 0x4 - core index']
  #allocation1 [shape = 'u32[144,128]{1,0:T(1,128)}', space=vmem, size = 0x12000, scoped, tag = 'internal scratch']
  #allocation2 [shape = 'f32[8,128]{1,0:T(8,128)}', space=vmem, size = 0x1000, scoped, tag = 'scratch operand']
  %s0 = inlined_call_operand.hbm [shape: f32[8,8,128], index: 0, kind: input, shape index: {}]
  %s1 = inlined_call_operand.hbm [shape: f32[2,128], index: 1, kind: input, shape index: {}]
  %s2 = inlined_call_operand.hbm [shape: f32[128,128], index: 2, kind: input, shape index: {}]
  %s3 = inlined_call_operand.hbm [shape: f32[8,128], index: 3, kind: output, shape index: {}]
  %s4 = sld [smem:[#allocation0]]
  $region42: #{tpu_custom_call.1} parent=0
    _
  %s6 = ssub.s32 1, %s4
  %s7 = scalar_select 0, %s6, %s4
  $region1: #{tpu_custom_call.1} parent=0
    #allocation3 [shape = 'u8[32768]{0}', space=vmem, size = 0x8000, scoped, tag = 'input window, operand 0, single buffered']
    #allocation4 [shape = 's32[1]{0}', space=sflag, size = 0x4, scoped, tag = 'scoped memory for tpu_custom_call.1']
    #allocation5 [shape = 's32[1]{0}', space=sflag, size = 0x4, scoped, tag = 'scoped memory for tpu_custom_call.1']
    #allocation6 [shape = 'u8[1024]{0}', space=vmem, size = 0x400, scoped, tag = 'input window, operand 1, single buffered']
    #allocation7 [shape = 's32[1]{0}', space=sflag, size = 0x4, scoped, tag = 'scoped memory for tpu_custom_call.1']
    #allocation8 [shape = 'u8[65536]{0}', space=vmem, size = 0x10000, scoped, tag = 'input window, operand 2, single buffered']
    #allocation9 [shape = 'u8[4096]{0}', space=vmem, size = 0x1000, scoped, tag = 'output window, operand 0, single buffered']
    %8 = vsyncpa [#allocation4], 0
    %9 = vsyncpa [#allocation7], 0
    %10 = vsyncpa [#allocation5], 0
    // Predicated region
    $region2: #{tpu_custom_call.1} parent=1 // pred_check
      _
    $region3: #{tpu_custom_call.1} parent=1 // pred_check_branch
      %12 = sbr.rel (0) target = $region5
    $region4: #{tpu_custom_call.1} parent=1 // pred_region
      %s14 = ssub.s32 1024, 1024
      %15 = vsyncadd [#allocation4], %s14
      %s16 = sshll.u32 [#allocation3], 4
      %s17 = int_to_ptr.vmem [resolvable:$true] %s16
      %22 = dma.hbm_to_vmem [thread:$0]  %s0, 1024, %s17, [#allocation4], 128, 128, 8
    $region5: #{tpu_custom_call.1} parent=1 // pred_fallthru
      _
    // Predicated region
    $region6: #{tpu_custom_call.1} parent=1 // pred_check
      _
    $region7: #{tpu_custom_call.1} parent=1 // pred_check_branch
      %24 = sbr.rel (0) target = $region9
    $region8: #{tpu_custom_call.1} parent=1 // pred_region
      %s26 = ssub.s32 32, 32
      %27 = vsyncadd [#allocation7], %s26
      %s29 = sshll.u32 [#allocation6], 4
      %s30 = int_to_ptr.vmem [resolvable:$true] %s29
      %32 = dma.hbm_to_vmem [thread:$0]  %s1, 32, %s30, [#allocation7]
    $region9: #{tpu_custom_call.1} parent=1 // pred_fallthru
      _
    // Predicated region
    $region10: #{tpu_custom_call.1} parent=1 // pred_check
      _
    $region11: #{tpu_custom_call.1} parent=1 // pred_check_branch
      %34 = sbr.rel (0) target = $region13
    $region12: #{tpu_custom_call.1} parent=1 // pred_region
      %s36 = ssub.s32 2048, 2048
      %37 = vsyncadd [#allocation7], %s36
      %s38 = sshll.u32 [#allocation8], 4
      %s39 = int_to_ptr.vmem [resolvable:$true] %s38
      %44 = dma.hbm_to_vmem [thread:$0]  %s2, 2048, %s39, [#allocation7], 128, 128, 8
    $region13: #{tpu_custom_call.1} parent=1 // pred_fallthru
      _
    // Predicated region
    $region14: #{tpu_custom_call.1} parent=1 // pred_check
      _
    $region15: #{tpu_custom_call.1} parent=1 // pred_check_branch
      %46 = sbr.rel (0) target = $region17
    $region16: #{tpu_custom_call.1} parent=1 // pred_region
      %47 = dma.done [#allocation4], 1024
    $region17: #{tpu_custom_call.1} parent=1 // pred_fallthru
      _
    // Predicated region
    $region18: #{tpu_custom_call.1} parent=1 // pred_check
      _
    $region19: #{tpu_custom_call.1} parent=1 // pred_check_branch
      %49 = sbr.rel (0) target = $region21
    $region20: #{tpu_custom_call.1} parent=1 // pred_region
      %50 = dma.done [#allocation7], 32
    $region21: #{tpu_custom_call.1} parent=1 // pred_fallthru
      _
    // Predicated region
    $region22: #{tpu_custom_call.1} parent=1 // pred_check
      _
    $region23: #{tpu_custom_call.1} parent=1 // pred_check_branch
      %52 = sbr.rel (0) target = $region25
    $region24: #{tpu_custom_call.1} parent=1 // pred_region
      %53 = dma.done [#allocation7], 2048
    $region25: #{tpu_custom_call.1} parent=1 // pred_fallthru
      _
    %v54 = vld [vmem:[#allocation6] sm:$0x1]
    %v55 = vld [vmem:[#allocation6 + $0x1] sm:$0x1]
    %v56 = vld [vmem:[#allocation8] sm:$0xff]
    %v57 = vld [vmem:[#allocation8 + $0x8] sm:$0xff]
    %v58 = vld [vmem:[#allocation8 + $0x10] sm:$0xff]
    %v59 = vld [vmem:[#allocation8 + $0x18] sm:$0xff]
    %v60 = vld [vmem:[#allocation8 + $0x20] sm:$0xff]
    %v61 = vld [vmem:[#allocation8 + $0x28] sm:$0xff]
    %v62 = vld [vmem:[#allocation8 + $0x30] sm:$0xff]
    %v63 = vld [vmem:[#allocation8 + $0x38] sm:$0xff]
    %v64 = vld [vmem:[#allocation8 + $0x40] sm:$0xff]
    %v65 = vld [vmem:[#allocation8 + $0x48] sm:$0xff]
    %v66 = vld [vmem:[#allocation8 + $0x50] sm:$0xff]
    %v67 = vld [vmem:[#allocation8 + $0x58] sm:$0xff]
    %v68 = vld [vmem:[#allocation8 + $0x60] sm:$0xff]
    %v69 = vld [vmem:[#allocation8 + $0x68] sm:$0xff]
    %v70 = vld [vmem:[#allocation8 + $0x70] sm:$0xff]
    %v71 = vld [vmem:[#allocation8 + $0x78] sm:$0xff]
    %p72 = scmp.eq.s32.totalorder 0, 0
    // Predicated region
    $region26: #{tpu_custom_call.1} parent=1 // pred_check
      %p73 = pneg %p72
    $region27: #{tpu_custom_call.1} parent=1 // pred_check_branch
      %75 = sbr.rel (%p73) target = $region29
    $region28: #{tpu_custom_call.1} parent=1 // pred_region
      %v76 = vld [vmem:[#allocation3] sm:$0xff]
      %v77 = vlaneseq
      %v78 = vshrl.u32 %v77, 7
      %v79 = vsub.s32 0, %v78
      %v80 = vrot.slane %v54, %v79
      %v81 = vadd.f32 %v80, %v76
      %82 = vst [vmem:[#allocation2] sm:$0xff] %v81
    $region29: #{tpu_custom_call.1} parent=1 // pred_fallthru
      _
    %v83 = vld [vmem:[#allocation2] sm:$0xff]
    %v84 = vld [vmem:[#allocation3] sm:$0xff]
    %85 = vmax.xlane.f32.xlu0 %v83
    %v86 = vpop.xlane.xlu0 %85
    %v87 = vsub.f32 %v83, %v86
    %v88 = vmul.f32 %v87, 1.442695
    %v89 = vpow.pop %v88
    %90 = vmatprep.subr.mxu0 0.0
    %v91 = vand.u32 %v71, 4294901760
    %92 = vmatpush1.msra.mxu0 %v91
    %93 = vmatprep.subr.mxu0 0.0
    %v94 = vand.u32 %v70, 4294901760
    %95 = vmatpush1.msra.mxu0 %v94
    %96 = vmatprep.subr.mxu0 0.0
    %v97 = vand.u32 %v69, 4294901760
    %98 = vmatpush1.msra.mxu0 %v97
    %99 = vmatprep.subr.mxu0 0.0
    %v100 = vand.u32 %v68, 4294901760
    %101 = vmatpush1.msra.mxu0 %v100
    %102 = vmatprep.subr.mxu0 0.0
    %v103 = vand.u32 %v67, 4294901760
    %104 = vmatpush1.msra.mxu0 %v103
    %105 = vmatprep.subr.mxu0 0.0
    %v106 = vand.u32 %v66, 4294901760
    %107 = vmatpush1.msra.mxu0 %v106
    %108 = vmatprep.subr.mxu0 0.0
    %v109 = vand.u32 %v65, 4294901760
    %110 = vmatpush1.msra.mxu0 %v109
    %111 = vmatprep.subr.mxu0 0.0
    %v112 = vand.u32 %v64, 4294901760
    %113 = vmatpush1.msra.mxu0 %v112
    %114 = vmatprep.subr.mxu0 0.0
    %v115 = vand.u32 %v63, 4294901760
    %116 = vmatpush1.msra.mxu0 %v115
    %117 = vmatprep.subr.mxu0 0.0
    %v118 = vand.u32 %v62, 4294901760
    %119 = vmatpush1.msra.mxu0 %v118
    %120 = vmatprep.subr.mxu0 0.0
    %v121 = vand.u32 %v61, 4294901760
    %122 = vmatpush1.msra.mxu0 %v121
    %123 = vmatprep.subr.mxu0 0.0
    %v124 = vand.u32 %v60, 4294901760
    %125 = vmatpush1.msra.mxu0 %v124
    %126 = vmatprep.subr.mxu0 0.0
    %v127 = vand.u32 %v59, 4294901760
    %128 = vmatpush1.msra.mxu0 %v127
    %129 = vmatprep.subr.mxu0 0.0
    %v130 = vand.u32 %v58, 4294901760
    %131 = vmatpush1.msra.mxu0 %v130
    %132 = vmatprep.subr.mxu0 0.0
    %v133 = vand.u32 %v57, 4294901760
    %134 = vmatpush1.msra.mxu0 %v133
    %135 = vmatprep.subr.mxu0 0.0
    %v136 = vand.u32 %v56, 4294901760
    %137 = vmatpush1.msra.mxu0 %v136
    %138 = vmatprep.subr.mxu0 0.0
    %139 = vmatpush2.msra.mxu0 0.0
    %140 = vmatprep.subr.mxu0 0.0
    %141 = vmatpush2.msra.mxu0 0.0
    %142 = vmatprep.subr.mxu0 0.0
    %143 = vmatpush2.msra.mxu0 0.0
    %144 = vmatprep.subr.mxu0 0.0
    %145 = vmatpush2.msra.mxu0 0.0
    %146 = vmatprep.subr.mxu0 0.0
    %147 = vmatpush2.msra.mxu0 0.0
    %148 = vmatprep.subr.mxu0 0.0
    %149 = vmatpush2.msra.mxu0 0.0
    %150 = vmatprep.subr.mxu0 0.0
    %151 = vmatpush2.msra.mxu0 0.0
    %152 = vmatprep.subr.mxu0 0.0
    %153 = vmatpush2.msra.mxu0 0.0
    %154 = vmatprep.subr.mxu0 0.0
    %155 = vmatpush2.msra.mxu0 0.0
    %156 = vmatprep.subr.mxu0 0.0
    %157 = vmatpush2.msra.mxu0 0.0
    %158 = vmatprep.subr.mxu0 0.0
    %159 = vmatpush2.msra.mxu0 0.0
    %160 = vmatprep.subr.mxu0 0.0
    %161 = vmatpush2.msra.mxu0 0.0
    %162 = vmatprep.subr.mxu0 0.0
    %163 = vmatpush2.msra.mxu0 0.0
    %164 = vmatprep.subr.mxu0 0.0
    %165 = vmatpush2.msra.mxu0 0.0
    %166 = vmatprep.subr.mxu0 0.0
    %167 = vmatpush2.msra.mxu0 0.0
    %168 = vmatprep.subr.mxu0 0.0
    %169 = vmatpush2.msra.mxu0 0.0
    %170 = vmatprep.mubr.f32.mxu0 0.0
    %v171 = vand.u32 %v89, 4294901760
    %v172 = vsub.f32 %v89, %v171
    %v173 = vand.u32 %v172, 4294901760
    %v174 = vsub.f32 %v172, %v173
    %v175 = vand.u32 %v174, 4294901760
    %176 = vmatmul.mubr.f32.gmra.mxu0 %v175
    %v177 = vpop.f32.mrf.mxu0
    %v178 = vadd.f32 0.0, %v177
    %v179 = vpop.f32.mrf.mxu0
    %180 = vdwg.mxu0
    %181 = vmatprep.subr.mxu0 0.0
    %v182 = vand.u32 %v71, 4294901760
    %v183 = vsub.f32 %v71, %v182
    %v184 = vand.u32 %v183, 4294901760
    %v185 = vsub.f32 %v183, %v184
    %v186 = vand.u32 %v185, 4294901760
    %187 = vmatpush1.msra.mxu0 %v186
    %188 = vmatprep.subr.mxu0 0.0
    %v189 = vand.u32 %v70, 4294901760
    %v190 = vsub.f32 %v70, %v189
    %v191 = vand.u32 %v190, 4294901760
    %v192 = vsub.f32 %v190, %v191
    %v193 = vand.u32 %v192, 4294901760
    %194 = vmatpush1.msra.mxu0 %v193
    %195 = vmatprep.subr.mxu0 0.0
    %v196 = vand.u32 %v69, 4294901760
    %v197 = vsub.f32 %v69, %v196
    %v198 = vand.u32 %v197, 4294901760
    %v199 = vsub.f32 %v197, %v198
    %v200 = vand.u32 %v199, 4294901760
    %201 = vmatpush1.msra.mxu0 %v200
    %202 = vmatprep.subr.mxu0 0.0
    %v203 = vand.u32 %v68, 4294901760
    %v204 = vsub.f32 %v68, %v203
    %v205 = vand.u32 %v204, 4294901760
    %v206 = vsub.f32 %v204, %v205
    %v207 = vand.u32 %v206, 4294901760
    %208 = vmatpush1.msra.mxu0 %v207
    %209 = vmatprep.subr.mxu0 0.0
    %v210 = vand.u32 %v67, 4294901760
    %v211 = vsub.f32 %v67, %v210
    %v212 = vand.u32 %v211, 4294901760
    %v213 = vsub.f32 %v211, %v212
    %v214 = vand.u32 %v213, 4294901760
    %215 = vmatpush1.msra.mxu0 %v214
    %216 = vmatprep.subr.mxu0 0.0
    %v217 = vand.u32 %v66, 4294901760
    %v218 = vsub.f32 %v66, %v217
    %v219 = vand.u32 %v218, 4294901760
    %v220 = vsub.f32 %v218, %v219
    %v221 = vand.u32 %v220, 4294901760
    %222 = vmatpush1.msra.mxu0 %v221
    %223 = vmatprep.subr.mxu0 0.0
    %v224 = vand.u32 %v65, 4294901760
    %v225 = vsub.f32 %v65, %v224
    %v226 = vand.u32 %v225, 4294901760
    %v227 = vsub.f32 %v225, %v226
    %v228 = vand.u32 %v227, 4294901760
    %229 = vmatpush1.msra.mxu0 %v228
    %230 = vmatprep.subr.mxu0 0.0
    %v231 = vand.u32 %v64, 4294901760
    %v232 = vsub.f32 %v64, %v231
    %v233 = vand.u32 %v232, 4294901760
    %v234 = vsub.f32 %v232, %v233
    %v235 = vand.u32 %v234, 4294901760
    %236 = vmatpush1.msra.mxu0 %v235
    %237 = vmatprep.subr.mxu0 0.0
    %v238 = vand.u32 %v63, 4294901760
    %v239 = vsub.f32 %v63, %v238
    %v240 = vand.u32 %v239, 4294901760
    %v241 = vsub.f32 %v239, %v240
    %v242 = vand.u32 %v241, 4294901760
    %243 = vmatpush1.msra.mxu0 %v242
    %244 = vmatprep.subr.mxu0 0.0
    %v245 = vand.u32 %v62, 4294901760
    %v246 = vsub.f32 %v62, %v245
    %v247 = vand.u32 %v246, 4294901760
    %v248 = vsub.f32 %v246, %v247
    %v249 = vand.u32 %v248, 4294901760
    %250 = vmatpush1.msra.mxu0 %v249
    %251 = vmatprep.subr.mxu0 0.0
    %v252 = vand.u32 %v61, 4294901760
    %v253 = vsub.f32 %v61, %v252
    %v254 = vand.u32 %v253, 4294901760
    %v255 = vsub.f32 %v253, %v254
    %v256 = vand.u32 %v255, 4294901760
    %257 = vmatpush1.msra.mxu0 %v256
    %258 = vmatprep.subr.mxu0 0.0
    %v259 = vand.u32 %v60, 4294901760
    %v260 = vsub.f32 %v60, %v259
    %v261 = vand.u32 %v260, 4294901760
    %v262 = vsub.f32 %v260, %v261
    %v263 = vand.u32 %v262, 4294901760
    %264 = vmatpush1.msra.mxu0 %v263
    %265 = vmatprep.subr.mxu0 0.0
    %v266 = vand.u32 %v59, 4294901760
    %v267 = vsub.f32 %v59, %v266
    %v268 = vand.u32 %v267, 4294901760
    %v269 = vsub.f32 %v267, %v268
    %v270 = vand.u32 %v269, 4294901760
    %271 = vmatpush1.msra.mxu0 %v270
    %272 = vmatprep.subr.mxu0 0.0
    %v273 = vand.u32 %v58, 4294901760
    %v274 = vsub.f32 %v58, %v273
    %v275 = vand.u32 %v274, 4294901760
    %v276 = vsub.f32 %v274, %v275
    %v277 = vand.u32 %v276, 4294901760
    %278 = vmatpush1.msra.mxu0 %v277
    %279 = vmatprep.subr.mxu0 0.0
    %v280 = vand.u32 %v57, 4294901760
    %v281 = vsub.f32 %v57, %v280
    %v282 = vand.u32 %v281, 4294901760
    %v283 = vsub.f32 %v281, %v282
    %v284 = vand.u32 %v283, 4294901760
    %285 = vmatpush1.msra.mxu0 %v284
    %286 = vmatprep.subr.mxu0 0.0
    %v287 = vand.u32 %v56, 4294901760
    %v288 = vsub.f32 %v56, %v287
    %v289 = vand.u32 %v288, 4294901760
    %v290 = vsub.f32 %v288, %v289
    %v291 = vand.u32 %v290, 4294901760
    %292 = vmatpush1.msra.mxu0 %v291
    %293 = vmatprep.subr.mxu0 0.0
    %294 = vmatpush2.msra.mxu0 0.0
    %295 = vmatprep.subr.mxu0 0.0
    %296 = vmatpush2.msra.mxu0 0.0
    %297 = vmatprep.subr.mxu0 0.0
    %298 = vmatpush2.msra.mxu0 0.0
    %299 = vmatprep.subr.mxu0 0.0
    %300 = vmatpush2.msra.mxu0 0.0
    %301 = vmatprep.subr.mxu0 0.0
    %302 = vmatpush2.msra.mxu0 0.0
    %303 = vmatprep.subr.mxu0 0.0
    %304 = vmatpush2.msra.mxu0 0.0
    %305 = vmatprep.subr.mxu0 0.0
    %306 = vmatpush2.msra.mxu0 0.0
    %307 = vmatprep.subr.mxu0 0.0
    %308 = vmatpush2.msra.mxu0 0.0
    %309 = vmatprep.subr.mxu0 0.0
    %310 = vmatpush2.msra.mxu0 0.0
    %311 = vmatprep.subr.mxu0 0.0
    %312 = vmatpush2.msra.mxu0 0.0
    %313 = vmatprep.subr.mxu0 0.0
    %314 = vmatpush2.msra.mxu0 0.0
    %315 = vmatprep.subr.mxu0 0.0
    %316 = vmatpush2.msra.mxu0 0.0
    %317 = vmatprep.subr.mxu0 0.0
    %318 = vmatpush2.msra.mxu0 0.0
    %319 = vmatprep.subr.mxu0 0.0
    %320 = vmatpush2.msra.mxu0 0.0
    %321 = vmatprep.subr.mxu0 0.0
    %322 = vmatpush2.msra.mxu0 0.0
    %323 = vmatprep.subr.mxu0 0.0
    %324 = vmatpush2.msra.mxu0 0.0
    %325 = vmatprep.mubr.f32.mxu0 0.0
    %v326 = vand.u32 %v89, 4294901760
    %327 = vmatmul.mubr.f32.gmra.mxu0 %v326
    %v328 = vpop.f32.mrf.mxu0
    %v329 = vadd.f32 %v178, %v328
    %v330 = vpop.f32.mrf.mxu0
    %331 = vdwg.mxu0
    %332 = vmatprep.subr.mxu0 0.0
    %v333 = vand.u32 %v71, 4294901760
    %v334 = vsub.f32 %v71, %v333
    %335 = vmatpush1.msra.mxu0 %v334
    %336 = vmatprep.subr.mxu0 0.0
    %v337 = vand.u32 %v70, 4294901760
    %v338 = vsub.f32 %v70, %v337
    %339 = vmatpush1.msra.mxu0 %v338
    %340 = vmatprep.subr.mxu0 0.0
    %v341 = vand.u32 %v69, 4294901760
    %v342 = vsub.f32 %v69, %v341
    %343 = vmatpush1.msra.mxu0 %v342
    %344 = vmatprep.subr.mxu0 0.0
    %v345 = vand.u32 %v68, 4294901760
    %v346 = vsub.f32 %v68, %v345
    %347 = vmatpush1.msra.mxu0 %v346
    %348 = vmatprep.subr.mxu0 0.0
    %v349 = vand.u32 %v67, 4294901760
    %v350 = vsub.f32 %v67, %v349
    %351 = vmatpush1.msra.mxu0 %v350
    %352 = vmatprep.subr.mxu0 0.0
    %v353 = vand.u32 %v66, 4294901760
    %v354 = vsub.f32 %v66, %v353
    %355 = vmatpush1.msra.mxu0 %v354
    %356 = vmatprep.subr.mxu0 0.0
    %v357 = vand.u32 %v65, 4294901760
    %v358 = vsub.f32 %v65, %v357
    %359 = vmatpush1.msra.mxu0 %v358
    %360 = vmatprep.subr.mxu0 0.0
    %v361 = vand.u32 %v64, 4294901760
    %v362 = vsub.f32 %v64, %v361
    %363 = vmatpush1.msra.mxu0 %v362
    %364 = vmatprep.subr.mxu0 0.0
    %v365 = vand.u32 %v63, 4294901760
    %v366 = vsub.f32 %v63, %v365
    %367 = vmatpush1.msra.mxu0 %v366
    %368 = vmatprep.subr.mxu0 0.0
    %v369 = vand.u32 %v62, 4294901760
    %v370 = vsub.f32 %v62, %v369
    %371 = vmatpush1.msra.mxu0 %v370
    %372 = vmatprep.subr.mxu0 0.0
    %v373 = vand.u32 %v61, 4294901760
    %v374 = vsub.f32 %v61, %v373
    %375 = vmatpush1.msra.mxu0 %v374
    %376 = vmatprep.subr.mxu0 0.0
    %v377 = vand.u32 %v60, 4294901760
    %v378 = vsub.f32 %v60, %v377
    %379 = vmatpush1.msra.mxu0 %v378
    %380 = vmatprep.subr.mxu0 0.0
    %v381 = vand.u32 %v59, 4294901760
    %v382 = vsub.f32 %v59, %v381
    %383 = vmatpush1.msra.mxu0 %v382
    %384 = vmatprep.subr.mxu0 0.0
    %v385 = vand.u32 %v58, 4294901760
    %v386 = vsub.f32 %v58, %v385
    %387 = vmatpush1.msra.mxu0 %v386
    %388 = vmatprep.subr.mxu0 0.0
    %v389 = vand.u32 %v57, 4294901760
    %v390 = vsub.f32 %v57, %v389
    %391 = vmatpush1.msra.mxu0 %v390
    %392 = vmatprep.subr.mxu0 0.0
    %v393 = vand.u32 %v56, 4294901760
    %v394 = vsub.f32 %v56, %v393
    %395 = vmatpush1.msra.mxu0 %v394
    %396 = vmatprep.subr.mxu0 0.0
    %397 = vmatpush2.msra.mxu0 0.0
    %398 = vmatprep.subr.mxu0 0.0
    %399 = vmatpush2.msra.mxu0 0.0
    %400 = vmatprep.subr.mxu0 0.0
    %401 = vmatpush2.msra.mxu0 0.0
    %402 = vmatprep.subr.mxu0 0.0
    %403 = vmatpush2.msra.mxu0 0.0
    %404 = vmatprep.subr.mxu0 0.0
    %405 = vmatpush2.msra.mxu0 0.0
    %406 = vmatprep.subr.mxu0 0.0
    %407 = vmatpush2.msra.mxu0 0.0
    %408 = vmatprep.subr.mxu0 0.0
    %409 = vmatpush2.msra.mxu0 0.0
    %410 = vmatprep.subr.mxu0 0.0
    %411 = vmatpush2.msra.mxu0 0.0
    %412 = vmatprep.subr.mxu0 0.0
    %413 = vmatpush2.msra.mxu0 0.0
    %414 = vmatprep.subr.mxu0 0.0
    %415 = vmatpush2.msra.mxu0 0.0
    %416 = vmatprep.subr.mxu0 0.0
    %417 = vmatpush2.msra.mxu0 0.0
    %418 = vmatprep.subr.mxu0 0.0
    %419 = vmatpush2.msra.mxu0 0.0
    %420 = vmatprep.subr.mxu0 0.0
    %421 = vmatpush2.msra.mxu0 0.0
    %422 = vmatprep.subr.mxu0 0.0
    %423 = vmatpush2.msra.mxu0 0.0
    %424 = vmatprep.subr.mxu0 0.0
    %425 = vmatpush2.msra.mxu0 0.0
    %426 = vmatprep.subr.mxu0 0.0
    %427 = vmatpush2.msra.mxu0 0.0
    %428 = vmatprep.mubr.f32.mxu0 0.0
    %v429 = vand.u32 %v89, 4294901760
    %v430 = vsub.f32 %v89, %v429
    %431 = vmatmul.mubr.f32.gmra.mxu0 %v430
    %v432 = vpop.f32.mrf.mxu0
    %v433 = vadd.f32 %v329, %v432
    %v434 = vpop.f32.mrf.mxu0
    %435 = vdwg.mxu0
    %436 = vmatprep.subr.mxu0 0.0
    %v437 = vand.u32 %v71, 4294901760
    %438 = vmatpush1.msra.mxu0 %v437
    %439 = vmatprep.subr.mxu0 0.0
    %v440 = vand.u32 %v70, 4294901760
    %441 = vmatpush1.msra.mxu0 %v440
    %442 = vmatprep.subr.mxu0 0.0
    %v443 = vand.u32 %v69, 4294901760
    %444 = vmatpush1.msra.mxu0 %v443
    %445 = vmatprep.subr.mxu0 0.0
    %v446 = vand.u32 %v68, 4294901760
    %447 = vmatpush1.msra.mxu0 %v446
    %448 = vmatprep.subr.mxu0 0.0
    %v449 = vand.u32 %v67, 4294901760
    %450 = vmatpush1.msra.mxu0 %v449
    %451 = vmatprep.subr.mxu0 0.0
    %v452 = vand.u32 %v66, 4294901760
    %453 = vmatpush1.msra.mxu0 %v452
    %454 = vmatprep.subr.mxu0 0.0
    %v455 = vand.u32 %v65, 4294901760
    %456 = vmatpush1.msra.mxu0 %v455
    %457 = vmatprep.subr.mxu0 0.0
    %v458 = vand.u32 %v64, 4294901760
    %459 = vmatpush1.msra.mxu0 %v458
    %460 = vmatprep.subr.mxu0 0.0
    %v461 = vand.u32 %v63, 4294901760
    %462 = vmatpush1.msra.mxu0 %v461
    %463 = vmatprep.subr.mxu0 0.0
    %v464 = vand.u32 %v62, 4294901760
    %465 = vmatpush1.msra.mxu0 %v464
    %466 = vmatprep.subr.mxu0 0.0
    %v467 = vand.u32 %v61, 4294901760
    %468 = vmatpush1.msra.mxu0 %v467
    %469 = vmatprep.subr.mxu0 0.0
    %v470 = vand.u32 %v60, 4294901760
    %471 = vmatpush1.msra.mxu0 %v470
    %472 = vmatprep.subr.mxu0 0.0
    %v473 = vand.u32 %v59, 4294901760
    %474 = vmatpush1.msra.mxu0 %v473
    %475 = vmatprep.subr.mxu0 0.0
    %v476 = vand.u32 %v58, 4294901760
    %477 = vmatpush1.msra.mxu0 %v476
    %478 = vmatprep.subr.mxu0 0.0
    %v479 = vand.u32 %v57, 4294901760
    %480 = vmatpush1.msra.mxu0 %v479
    %481 = vmatprep.subr.mxu0 0.0
    %v482 = vand.u32 %v56, 4294901760
    %483 = vmatpush1.msra.mxu0 %v482
    %484 = vmatprep.subr.mxu0 0.0
    %485 = vmatpush2.msra.mxu0 0.0
    %486 = vmatprep.subr.mxu0 0.0
    %487 = vmatpush2.msra.mxu0 0.0
    %488 = vmatprep.subr.mxu0 0.0
    %489 = vmatpush2.msra.mxu0 0.0
    %490 = vmatprep.subr.mxu0 0.0
    %491 = vmatpush2.msra.mxu0 0.0
    %492 = vmatprep.subr.mxu0 0.0
    %493 = vmatpush2.msra.mxu0 0.0
    %494 = vmatprep.subr.mxu0 0.0
    %495 = vmatpush2.msra.mxu0 0.0
    %496 = vmatprep.subr.mxu0 0.0
    %497 = vmatpush2.msra.mxu0 0.0
    %498 = vmatprep.subr.mxu0 0.0
    %499 = vmatpush2.msra.mxu0 0.0
    %500 = vmatprep.subr.mxu0 0.0
    %501 = vmatpush2.msra.mxu0 0.0
    %502 = vmatprep.subr.mxu0 0.0
    %503 = vmatpush2.msra.mxu0 0.0
    %504 = vmatprep.subr.mxu0 0.0
    %505 = vmatpush2.msra.mxu0 0.0
    %506 = vmatprep.subr.mxu0 0.0
    %507 = vmatpush2.msra.mxu0 0.0
    %508 = vmatprep.subr.mxu0 0.0
    %509 = vmatpush2.msra.mxu0 0.0
    %510 = vmatprep.subr.mxu0 0.0
    %511 = vmatpush2.msra.mxu0 0.0
    %512 = vmatprep.subr.mxu0 0.0
    %513 = vmatpush2.msra.mxu0 0.0
    %514 = vmatprep.subr.mxu0 0.0
    %515 = vmatpush2.msra.mxu0 0.0
    %516 = vmatprep.mubr.f32.mxu0 0.0
    %v517 = vand.u32 %v89, 4294901760
    %v518 = vsub.f32 %v89, %v517
    %v519 = vand.u32 %v518, 4294901760
    %520 = vmatmul.mubr.f32.gmra.mxu0 %v519
    %v521 = vpop.f32.mrf.mxu0
    %v522 = vadd.f32 %v433, %v521
    %v523 = vpop.f32.mrf.mxu0
    %524 = vdwg.mxu0
    %525 = vmatprep.subr.mxu0 0.0
    %v526 = vand.u32 %v71, 4294901760
    %v527 = vsub.f32 %v71, %v526
    %v528 = vand.u32 %v527, 4294901760
    %529 = vmatpush1.msra.mxu0 %v528
    %530 = vmatprep.subr.mxu0 0.0
    %v531 = vand.u32 %v70, 4294901760
    %v532 = vsub.f32 %v70, %v531
    %v533 = vand.u32 %v532, 4294901760
    %534 = vmatpush1.msra.mxu0 %v533
    %535 = vmatprep.subr.mxu0 0.0
    %v536 = vand.u32 %v69, 4294901760
    %v537 = vsub.f32 %v69, %v536
    %v538 = vand.u32 %v537, 4294901760
    %539 = vmatpush1.msra.mxu0 %v538
    %540 = vmatprep.subr.mxu0 0.0
    %v541 = vand.u32 %v68, 4294901760
    %v542 = vsub.f32 %v68, %v541
    %v543 = vand.u32 %v542, 4294901760
    %544 = vmatpush1.msra.mxu0 %v543
    %545 = vmatprep.subr.mxu0 0.0
    %v546 = vand.u32 %v67, 4294901760
    %v547 = vsub.f32 %v67, %v546
    %v548 = vand.u32 %v547, 4294901760
    %549 = vmatpush1.msra.mxu0 %v548
    %550 = vmatprep.subr.mxu0 0.0
    %v551 = vand.u32 %v66, 4294901760
    %v552 = vsub.f32 %v66, %v551
    %v553 = vand.u32 %v552, 4294901760
    %554 = vmatpush1.msra.mxu0 %v553
    %555 = vmatprep.subr.mxu0 0.0
    %v556 = vand.u32 %v65, 4294901760
    %v557 = vsub.f32 %v65, %v556
    %v558 = vand.u32 %v557, 4294901760
    %559 = vmatpush1.msra.mxu0 %v558
    %560 = vmatprep.subr.mxu0 0.0
    %v561 = vand.u32 %v64, 4294901760
    %v562 = vsub.f32 %v64, %v561
    %v563 = vand.u32 %v562, 4294901760
    %564 = vmatpush1.msra.mxu0 %v563
    %565 = vmatprep.subr.mxu0 0.0
    %v566 = vand.u32 %v63, 4294901760
    %v567 = vsub.f32 %v63, %v566
    %v568 = vand.u32 %v567, 4294901760
    %569 = vmatpush1.msra.mxu0 %v568
    %570 = vmatprep.subr.mxu0 0.0
    %v571 = vand.u32 %v62, 4294901760
    %v572 = vsub.f32 %v62, %v571
    %v573 = vand.u32 %v572, 4294901760
    %574 = vmatpush1.msra.mxu0 %v573
    %575 = vmatprep.subr.mxu0 0.0
    %v576 = vand.u32 %v61, 4294901760
    %v577 = vsub.f32 %v61, %v576
    %v578 = vand.u32 %v577, 4294901760
    %579 = vmatpush1.msra.mxu0 %v578
    %580 = vmatprep.subr.mxu0 0.0
    %v581 = vand.u32 %v60, 4294901760
    %v582 = vsub.f32 %v60, %v581
    %v583 = vand.u32 %v582, 4294901760
    %584 = vmatpush1.msra.mxu0 %v583
    %585 = vmatprep.subr.mxu0 0.0
    %v586 = vand.u32 %v59, 4294901760
    %v587 = vsub.f32 %v59, %v586
    %v588 = vand.u32 %v587, 4294901760
    %589 = vmatpush1.msra.mxu0 %v588
    %590 = vmatprep.subr.mxu0 0.0
    %v591 = vand.u32 %v58, 4294901760
    %v592 = vsub.f32 %v58, %v591
    %v593 = vand.u32 %v592, 4294901760
    %594 = vmatpush1.msra.mxu0 %v593
    %595 = vmatprep.subr.mxu0 0.0
    %v596 = vand.u32 %v57, 4294901760
    %v597 = vsub.f32 %v57, %v596
    %v598 = vand.u32 %v597, 4294901760
    %599 = vmatpush1.msra.mxu0 %v598
    %600 = vmatprep.subr.mxu0 0.0
    %v601 = vand.u32 %v56, 4294901760
    %v602 = vsub.f32 %v56, %v601
    %v603 = vand.u32 %v602, 4294901760
    %604 = vmatpush1.msra.mxu0 %v603
    %605 = vmatprep.subr.mxu0 0.0
    %606 = vmatpush2.msra.mxu0 0.0
    %607 = vmatprep.subr.mxu0 0.0
    %608 = vmatpush2.msra.mxu0 0.0
    %609 = vmatprep.subr.mxu0 0.0
    %610 = vmatpush2.msra.mxu0 0.0
    %611 = vmatprep.subr.mxu0 0.0
    %612 = vmatpush2.msra.mxu0 0.0
    %613 = vmatprep.subr.mxu0 0.0
    %614 = vmatpush2.msra.mxu0 0.0
    %615 = vmatprep.subr.mxu0 0.0
    %616 = vmatpush2.msra.mxu0 0.0
    %617 = vmatprep.subr.mxu0 0.0
    %618 = vmatpush2.msra.mxu0 0.0
    %619 = vmatprep.subr.mxu0 0.0
    %620 = vmatpush2.msra.mxu0 0.0
    %621 = vmatprep.subr.mxu0 0.0
    %622 = vmatpush2.msra.mxu0 0.0
    %623 = vmatprep.subr.mxu0 0.0
    %624 = vmatpush2.msra.mxu0 0.0
    %625 = vmatprep.subr.mxu0 0.0
    %626 = vmatpush2.msra.mxu0 0.0
    %627 = vmatprep.subr.mxu0 0.0
    %628 = vmatpush2.msra.mxu0 0.0
    %629 = vmatprep.subr.mxu0 0.0
    %630 = vmatpush2.msra.mxu0 0.0
    %631 = vmatprep.subr.mxu0 0.0
    %632 = vmatpush2.msra.mxu0 0.0
    %633 = vmatprep.subr.mxu0 0.0
    %634 = vmatpush2.msra.mxu0 0.0
    %635 = vmatprep.subr.mxu0 0.0
    %636 = vmatpush2.msra.mxu0 0.0
    %637 = vmatprep.mubr.f32.mxu0 0.0
    %v638 = vand.u32 %v89, 4294901760
    %639 = vmatmul.mubr.f32.gmra.mxu0 %v638
    %v640 = vpop.f32.mrf.mxu0
    %v641 = vadd.f32 %v522, %v640
    %v642 = vpop.f32.mrf.mxu0
    %643 = vdwg.mxu0
    %644 = vmatprep.subr.mxu0 0.0
    %v645 = vand.u32 %v71, 4294901760
    %646 = vmatpush1.msra.mxu0 %v645
    %647 = vmatprep.subr.mxu0 0.0
    %v648 = vand.u32 %v70, 4294901760
    %649 = vmatpush1.msra.mxu0 %v648
    %650 = vmatprep.subr.mxu0 0.0
    %v651 = vand.u32 %v69, 4294901760
    %652 = vmatpush1.msra.mxu0 %v651
    %653 = vmatprep.subr.mxu0 0.0
    %v654 = vand.u32 %v68, 4294901760
    %655 = vmatpush1.msra.mxu0 %v654
    %656 = vmatprep.subr.mxu0 0.0
    %v657 = vand.u32 %v67, 4294901760
    %658 = vmatpush1.msra.mxu0 %v657
    %659 = vmatprep.subr.mxu0 0.0
    %v660 = vand.u32 %v66, 4294901760
    %661 = vmatpush1.msra.mxu0 %v660
    %662 = vmatprep.subr.mxu0 0.0
    %v663 = vand.u32 %v65, 4294901760
    %664 = vmatpush1.msra.mxu0 %v663
    %665 = vmatprep.subr.mxu0 0.0
    %v666 = vand.u32 %v64, 4294901760
    %667 = vmatpush1.msra.mxu0 %v666
    %668 = vmatprep.subr.mxu0 0.0
    %v669 = vand.u32 %v63, 4294901760
    %670 = vmatpush1.msra.mxu0 %v669
    %671 = vmatprep.subr.mxu0 0.0
    %v672 = vand.u32 %v62, 4294901760
    %673 = vmatpush1.msra.mxu0 %v672
    %674 = vmatprep.subr.mxu0 0.0
    %v675 = vand.u32 %v61, 4294901760
    %676 = vmatpush1.msra.mxu0 %v675
    %677 = vmatprep.subr.mxu0 0.0
    %v678 = vand.u32 %v60, 4294901760
    %679 = vmatpush1.msra.mxu0 %v678
    %680 = vmatprep.subr.mxu0 0.0
    %v681 = vand.u32 %v59, 4294901760
    %682 = vmatpush1.msra.mxu0 %v681
    %683 = vmatprep.subr.mxu0 0.0
    %v684 = vand.u32 %v58, 4294901760
    %685 = vmatpush1.msra.mxu0 %v684
    %686 = vmatprep.subr.mxu0 0.0
    %v687 = vand.u32 %v57, 4294901760
    %688 = vmatpush1.msra.mxu0 %v687
    %689 = vmatprep.subr.mxu0 0.0
    %v690 = vand.u32 %v56, 4294901760
    %691 = vmatpush1.msra.mxu0 %v690
    %692 = vmatprep.subr.mxu0 0.0
    %693 = vmatpush2.msra.mxu0 0.0
    %694 = vmatprep.subr.mxu0 0.0
    %695 = vmatpush2.msra.mxu0 0.0
    %696 = vmatprep.subr.mxu0 0.0
    %697 = vmatpush2.msra.mxu0 0.0
    %698 = vmatprep.subr.mxu0 0.0
    %699 = vmatpush2.msra.mxu0 0.0
    %700 = vmatprep.subr.mxu0 0.0
    %701 = vmatpush2.msra.mxu0 0.0
    %702 = vmatprep.subr.mxu0 0.0
    %703 = vmatpush2.msra.mxu0 0.0
    %704 = vmatprep.subr.mxu0 0.0
    %705 = vmatpush2.msra.mxu0 0.0
    %706 = vmatprep.subr.mxu0 0.0
    %707 = vmatpush2.msra.mxu0 0.0
    %708 = vmatprep.subr.mxu0 0.0
    %709 = vmatpush2.msra.mxu0 0.0
    %710 = vmatprep.subr.mxu0 0.0
    %711 = vmatpush2.msra.mxu0 0.0
    %712 = vmatprep.subr.mxu0 0.0
    %713 = vmatpush2.msra.mxu0 0.0
    %714 = vmatprep.subr.mxu0 0.0
    %715 = vmatpush2.msra.mxu0 0.0
    %716 = vmatprep.subr.mxu0 0.0
    %717 = vmatpush2.msra.mxu0 0.0
    %718 = vmatprep.subr.mxu0 0.0
    %719 = vmatpush2.msra.mxu0 0.0
    %720 = vmatprep.subr.mxu0 0.0
    %721 = vmatpush2.msra.mxu0 0.0
    %722 = vmatprep.subr.mxu0 0.0
    %723 = vmatpush2.msra.mxu0 0.0
    %724 = vmatprep.mubr.f32.mxu0 0.0
    %v725 = vand.u32 %v89, 4294901760
    %726 = vmatmul.mubr.f32.gmra.mxu0 %v725
    %v727 = vpop.f32.mrf.mxu0
    %v728 = vadd.f32 %v641, %v727
    %v729 = vpop.f32.mrf.mxu0
    %730 = vdwg.mxu0
    %v731 = vmax.f32 %v728, 1e-37
    %v732 = vlog2.pop %v731
    %v733 = vmul.f32 %v732, 0.6931472
    %v734 = vadd.f32 %v733, %v86
    %v735 = vadd.f32 %v734, %v84
    %vm736 = vcmp.gt.f32.partialorder %v84, 0.5
    %v737 = vsel %vm736, 1, 0
    %738 = vset.pattern.permute.xlu0 5
    %739 = vperm.xlu0 %738, %v737
    %v740 = vpop.permute.xlu0 %739
    %vm741 = vcmp.eq.s32.totalorder %v740, 1
    %v742 = vsel %vm741, %v735, %v83
    %s743 = scalar_lea.vmem [#allocation3], 8
    %v744 = vld [vmem:[%s743] sm:$0xff]
    %745 = vmax.xlane.f32.xlu0 %v742
    %v746 = vpop.xlane.xlu0 %745
    %v747 = vsub.f32 %v742, %v746
    %v748 = vmul.f32 %v747, 1.442695
    %v749 = vpow.pop %v748
    %750 = vmatprep.subr.mxu0 0.0
    %v751 = vand.u32 %v71, 4294901760
    %752 = vmatpush1.msra.mxu0 %v751
    %753 = vmatprep.subr.mxu0 0.0
    %v754 = vand.u32 %v70, 4294901760
    %755 = vmatpush1.msra.mxu0 %v754
    %756 = vmatprep.subr.mxu0 0.0
    %v757 = vand.u32 %v69, 4294901760
    %758 = vmatpush1.msra.mxu0 %v757
    %759 = vmatprep.subr.mxu0 0.0
    %v760 = vand.u32 %v68, 4294901760
    %761 = vmatpush1.msra.mxu0 %v760
    %762 = vmatprep.subr.mxu0 0.0
    %v763 = vand.u32 %v67, 4294901760
    %764 = vmatpush1.msra.mxu0 %v763
    %765 = vmatprep.subr.mxu0 0.0
    %v766 = vand.u32 %v66, 4294901760
    %767 = vmatpush1.msra.mxu0 %v766
    %768 = vmatprep.subr.mxu0 0.0
    %v769 = vand.u32 %v65, 4294901760
    %770 = vmatpush1.msra.mxu0 %v769
    %771 = vmatprep.subr.mxu0 0.0
    %v772 = vand.u32 %v64, 4294901760
    %773 = vmatpush1.msra.mxu0 %v772
    %774 = vmatprep.subr.mxu0 0.0
    %v775 = vand.u32 %v63, 4294901760
    %776 = vmatpush1.msra.mxu0 %v775
    %777 = vmatprep.subr.mxu0 0.0
    %v778 = vand.u32 %v62, 4294901760
    %779 = vmatpush1.msra.mxu0 %v778
    %780 = vmatprep.subr.mxu0 0.0
    %v781 = vand.u32 %v61, 4294901760
    %782 = vmatpush1.msra.mxu0 %v781
    %783 = vmatprep.subr.mxu0 0.0
    %v784 = vand.u32 %v60, 4294901760
    %785 = vmatpush1.msra.mxu0 %v784
    %786 = vmatprep.subr.mxu0 0.0
    %v787 = vand.u32 %v59, 4294901760
    %788 = vmatpush1.msra.mxu0 %v787
    %789 = vmatprep.subr.mxu0 0.0
    %v790 = vand.u32 %v58, 4294901760
    %791 = vmatpush1.msra.mxu0 %v790
    %792 = vmatprep.subr.mxu0 0.0
    %v793 = vand.u32 %v57, 4294901760
    %794 = vmatpush1.msra.mxu0 %v793
    %795 = vmatprep.subr.mxu0 0.0
    %v796 = vand.u32 %v56, 4294901760
    %797 = vmatpush1.msra.mxu0 %v796
    %798 = vmatprep.subr.mxu0 0.0
    %799 = vmatpush2.msra.mxu0 0.0
    %800 = vmatprep.subr.mxu0 0.0
    %801 = vmatpush2.msra.mxu0 0.0
    %802 = vmatprep.subr.mxu0 0.0
    %803 = vmatpush2.msra.mxu0 0.0
    %804 = vmatprep.subr.mxu0 0.0
    %805 = vmatpush2.msra.mxu0 0.0
    %806 = vmatprep.subr.mxu0 0.0
    %807 = vmatpush2.msra.mxu0 0.0
    %808 = vmatprep.subr.mxu0 0.0
    %809 = vmatpush2.msra.mxu0 0.0
    %810 = vmatprep.subr.mxu0 0.0
    %811 = vmatpush2.msra.mxu0 0.0
    %812 = vmatprep.subr.mxu0 0.0
    %813 = vmatpush2.msra.mxu0 0.0
    %814 = vmatprep.subr.mxu0 0.0
    %815 = vmatpush2.msra.mxu0 0.0
    %816 = vmatprep.subr.mxu0 0.0
    %817 = vmatpush2.msra.mxu0 0.0
    %818 = vmatprep.subr.mxu0 0.0
    %819 = vmatpush2.msra.mxu0 0.0
    %820 = vmatprep.subr.mxu0 0.0
    %821 = vmatpush2.msra.mxu0 0.0
    %822 = vmatprep.subr.mxu0 0.0
    %823 = vmatpush2.msra.mxu0 0.0
    %824 = vmatprep.subr.mxu0 0.0
    %825 = vmatpush2.msra.mxu0 0.0
    %826 = vmatprep.subr.mxu0 0.0
    %827 = vmatpush2.msra.mxu0 0.0
    %828 = vmatprep.subr.mxu0 0.0
    %829 = vmatpush2.msra.mxu0 0.0
    %830 = vmatprep.mubr.f32.mxu0 0.0
    %v831 = vand.u32 %v749, 4294901760
    %v832 = vsub.f32 %v749, %v831
    %v833 = vand.u32 %v832, 4294901760
    %v834 = vsub.f32 %v832, %v833
    %v835 = vand.u32 %v834, 4294901760
    %836 = vmatmul.mubr.f32.gmra.mxu0 %v835
    %v837 = vpop.f32.mrf.mxu0
    %v838 = vadd.f32 0.0, %v837
    %v839 = vpop.f32.mrf.mxu0
    %840 = vdwg.mxu0
    %841 = vmatprep.subr.mxu0 0.0
    %v842 = vand.u32 %v71, 4294901760
    %v843 = vsub.f32 %v71, %v842
    %v844 = vand.u32 %v843, 4294901760
    %v845 = vsub.f32 %v843, %v844
    %v846 = vand.u32 %v845, 4294901760
    %847 = vmatpush1.msra.mxu0 %v846
    %848 = vmatprep.subr.mxu0 0.0
    %v849 = vand.u32 %v70, 4294901760
    %v850 = vsub.f32 %v70, %v849
    %v851 = vand.u32 %v850, 4294901760
    %v852 = vsub.f32 %v850, %v851
    %v853 = vand.u32 %v852, 4294901760
    %854 = vmatpush1.msra.mxu0 %v853
    %855 = vmatprep.subr.mxu0 0.0
    %v856 = vand.u32 %v69, 4294901760
    %v857 = vsub.f32 %v69, %v856
    %v858 = vand.u32 %v857, 4294901760
    %v859 = vsub.f32 %v857, %v858
    %v860 = vand.u32 %v859, 4294901760
    %861 = vmatpush1.msra.mxu0 %v860
    %862 = vmatprep.subr.mxu0 0.0
    %v863 = vand.u32 %v68, 4294901760
    %v864 = vsub.f32 %v68, %v863
    %v865 = vand.u32 %v864, 4294901760
    %v866 = vsub.f32 %v864, %v865
    %v867 = vand.u32 %v866, 4294901760
    %868 = vmatpush1.msra.mxu0 %v867
    %869 = vmatprep.subr.mxu0 0.0
    %v870 = vand.u32 %v67, 4294901760
    %v871 = vsub.f32 %v67, %v870
    %v872 = vand.u32 %v871, 4294901760
    %v873 = vsub.f32 %v871, %v872
    %v874 = vand.u32 %v873, 4294901760
    %875 = vmatpush1.msra.mxu0 %v874
    %876 = vmatprep.subr.mxu0 0.0
    %v877 = vand.u32 %v66, 4294901760
    %v878 = vsub.f32 %v66, %v877
    %v879 = vand.u32 %v878, 4294901760
    %v880 = vsub.f32 %v878, %v879
    %v881 = vand.u32 %v880, 4294901760
    %882 = vmatpush1.msra.mxu0 %v881
    %883 = vmatprep.subr.mxu0 0.0
    %v884 = vand.u32 %v65, 4294901760
    %v885 = vsub.f32 %v65, %v884
    %v886 = vand.u32 %v885, 4294901760
    %v887 = vsub.f32 %v885, %v886
    %v888 = vand.u32 %v887, 4294901760
    %889 = vmatpush1.msra.mxu0 %v888
    %890 = vmatprep.subr.mxu0 0.0
    %v891 = vand.u32 %v64, 4294901760
    %v892 = vsub.f32 %v64, %v891
    %v893 = vand.u32 %v892, 4294901760
    %v894 = vsub.f32 %v892, %v893
    %v895 = vand.u32 %v894, 4294901760
    %896 = vmatpush1.msra.mxu0 %v895
    %897 = vmatprep.subr.mxu0 0.0
    %v898 = vand.u32 %v63, 4294901760
    %v899 = vsub.f32 %v63, %v898
    %v900 = vand.u32 %v899, 4294901760
    %v901 = vsub.f32 %v899, %v900
    %v902 = vand.u32 %v901, 4294901760
    %903 = vmatpush1.msra.mxu0 %v902
    %904 = vmatprep.subr.mxu0 0.0
    %v905 = vand.u32 %v62, 4294901760
    %v906 = vsub.f32 %v62, %v905
    %v907 = vand.u32 %v906, 4294901760
    %v908 = vsub.f32 %v906, %v907
    %v909 = vand.u32 %v908, 4294901760
    %910 = vmatpush1.msra.mxu0 %v909
    %911 = vmatprep.subr.mxu0 0.0
    %v912 = vand.u32 %v61, 4294901760
    %v913 = vsub.f32 %v61, %v912
    %v914 = vand.u32 %v913, 4294901760
    %v915 = vsub.f32 %v913, %v914
    %v916 = vand.u32 %v915, 4294901760
    %917 = vmatpush1.msra.mxu0 %v916
    %918 = vmatprep.subr.mxu0 0.0
    %v919 = vand.u32 %v60, 4294901760
    %v920 = vsub.f32 %v60, %v919
    %v921 = vand.u32 %v920, 4294901760
    %v922 = vsub.f32 %v920, %v921
    %v923 = vand.u32 %v922, 4294901760
    %924 = vmatpush1.msra.mxu0 %v923
    %925 = vmatprep.subr.mxu0 0.0
    %v926 = vand.u32 %v59, 4294901760
    %v927 = vsub.f32 %v59, %v926
    %v928 = vand.u32 %v927, 4294901760
    %v929 = vsub.f32 %v927, %v928
    %v930 = vand.u32 %v929, 4294901760
    %931 = vmatpush1.msra.mxu0 %v930
    %932 = vmatprep.subr.mxu0 0.0
    %v933 = vand.u32 %v58, 4294901760
    %v934 = vsub.f32 %v58, %v933
    %v935 = vand.u32 %v934, 4294901760
    %v936 = vsub.f32 %v934, %v935
    %v937 = vand.u32 %v936, 4294901760
    %938 = vmatpush1.msra.mxu0 %v937
    %939 = vmatprep.subr.mxu0 0.0
    %v940 = vand.u32 %v57, 4294901760
    %v941 = vsub.f32 %v57, %v940
    %v942 = vand.u32 %v941, 4294901760
    %v943 = vsub.f32 %v941, %v942
    %v944 = vand.u32 %v943, 4294901760
    %945 = vmatpush1.msra.mxu0 %v944
    %946 = vmatprep.subr.mxu0 0.0
    %v947 = vand.u32 %v56, 4294901760
    %v948 = vsub.f32 %v56, %v947
    %v949 = vand.u32 %v948, 4294901760
    %v950 = vsub.f32 %v948, %v949
    %v951 = vand.u32 %v950, 4294901760
    %952 = vmatpush1.msra.mxu0 %v951
    %953 = vmatprep.subr.mxu0 0.0
    %954 = vmatpush2.msra.mxu0 0.0
    %955 = vmatprep.subr.mxu0 0.0
    %956 = vmatpush2.msra.mxu0 0.0
    %957 = vmatprep.subr.mxu0 0.0
    %958 = vmatpush2.msra.mxu0 0.0
    %959 = vmatprep.subr.mxu0 0.0
    %960 = vmatpush2.msra.mxu0 0.0
    %961 = vmatprep.subr.mxu0 0.0
    %962 = vmatpush2.msra.mxu0 0.0
    %963 = vmatprep.subr.mxu0 0.0
    %964 = vmatpush2.msra.mxu0 0.0
    %965 = vmatprep.subr.mxu0 0.0
    %966 = vmatpush2.msra.mxu0 0.0
    %967 = vmatprep.subr.mxu0 0.0
    %968 = vmatpush2.msra.mxu0 0.0
    %969 = vmatprep.subr.mxu0 0.0
    %970 = vmatpush2.msra.mxu0 0.0
    %971 = vmatprep.subr.mxu0 0.0
    %972 = vmatpush2.msra.mxu0 0.0
    %973 = vmatprep.subr.mxu0 0.0
    %974 = vmatpush2.msra.mxu0 0.0
    %975 = vmatprep.subr.mxu0 0.0
    %976 = vmatpush2.msra.mxu0 0.0
    %977 = vmatprep.subr.mxu0 0.0
    %978 = vmatpush2.msra.mxu0 0.0
    %979 = vmatprep.subr.mxu0 0.0
    %980 = vmatpush2.msra.mxu0 0.0
    %981 = vmatprep.subr.mxu0 0.0
    %982 = vmatpush2.msra.mxu0 0.0
    %983 = vmatprep.subr.mxu0 0.0
    %984 = vmatpush2.msra.mxu0 0.0
    %985 = vmatprep.mubr.f32.mxu0 0.0
    %v986 = vand.u32 %v749, 4294901760
    %987 = vmatmul.mubr.f32.gmra.mxu0 %v986
    %v988 = vpop.f32.mrf.mxu0
    %v989 = vadd.f32 %v838, %v988
    %v990 = vpop.f32.mrf.mxu0
    %991 = vdwg.mxu0
    %992 = vmatprep.subr.mxu0 0.0
    %v993 = vand.u32 %v71, 4294901760
    %v994 = vsub.f32 %v71, %v993
    %995 = vmatpush1.msra.mxu0 %v994
    %996 = vmatprep.subr.mxu0 0.0
    %v997 = vand.u32 %v70, 4294901760
    %v998 = vsub.f32 %v70, %v997
    %999 = vmatpush1.msra.mxu0 %v998
    %1000 = vmatprep.subr.mxu0 0.0
    %v1001 = vand.u32 %v69, 4294901760
    %v1002 = vsub.f32 %v69, %v1001
    %1003 = vmatpush1.msra.mxu0 %v1002
    %1004 = vmatprep.subr.mxu0 0.0
    %v1005 = vand.u32 %v68, 4294901760
    %v1006 = vsub.f32 %v68, %v1005
    %1007 = vmatpush1.msra.mxu0 %v1006
    %1008 = vmatprep.subr.mxu0 0.0
    %v1009 = vand.u32 %v67, 4294901760
    %v1010 = vsub.f32 %v67, %v1009
    %1011 = vmatpush1.msra.mxu0 %v1010
    %1012 = vmatprep.subr.mxu0 0.0
    %v1013 = vand.u32 %v66, 4294901760
    %v1014 = vsub.f32 %v66, %v1013
    %1015 = vmatpush1.msra.mxu0 %v1014
    %1016 = vmatprep.subr.mxu0 0.0
    %v1017 = vand.u32 %v65, 4294901760
    %v1018 = vsub.f32 %v65, %v1017
    %1019 = vmatpush1.msra.mxu0 %v1018
    %1020 = vmatprep.subr.mxu0 0.0
    %v1021 = vand.u32 %v64, 4294901760
    %v1022 = vsub.f32 %v64, %v1021
    %1023 = vmatpush1.msra.mxu0 %v1022
    %1024 = vmatprep.subr.mxu0 0.0
    %v1025 = vand.u32 %v63, 4294901760
    %v1026 = vsub.f32 %v63, %v1025
    %1027 = vmatpush1.msra.mxu0 %v1026
    %1028 = vmatprep.subr.mxu0 0.0
    %v1029 = vand.u32 %v62, 4294901760
    %v1030 = vsub.f32 %v62, %v1029
    %1031 = vmatpush1.msra.mxu0 %v1030
    %1032 = vmatprep.subr.mxu0 0.0
    %v1033 = vand.u32 %v61, 4294901760
    %v1034 = vsub.f32 %v61, %v1033
    %1035 = vmatpush1.msra.mxu0 %v1034
    %1036 = vmatprep.subr.mxu0 0.0
    %v1037 = vand.u32 %v60, 4294901760
    %v1038 = vsub.f32 %v60, %v1037
    %1039 = vmatpush1.msra.mxu0 %v1038
    %1040 = vmatprep.subr.mxu0 0.0
    %v1041 = vand.u32 %v59, 4294901760
    %v1042 = vsub.f32 %v59, %v1041
    %1043 = vmatpush1.msra.mxu0 %v1042
    %1044 = vmatprep.subr.mxu0 0.0
    %v1045 = vand.u32 %v58, 4294901760
    %v1046 = vsub.f32 %v58, %v1045
    %1047 = vmatpush1.msra.mxu0 %v1046
    %1048 = vmatprep.subr.mxu0 0.0
    %v1049 = vand.u32 %v57, 4294901760
    %v1050 = vsub.f32 %v57, %v1049
    %1051 = vmatpush1.msra.mxu0 %v1050
    %1052 = vmatprep.subr.mxu0 0.0
    %v1053 = vand.u32 %v56, 4294901760
    %v1054 = vsub.f32 %v56, %v1053
    %1055 = vmatpush1.msra.mxu0 %v1054
    %1056 = vmatprep.subr.mxu0 0.0
    %1057 = vmatpush2.msra.mxu0 0.0
    %1058 = vmatprep.subr.mxu0 0.0
    %1059 = vmatpush2.msra.mxu0 0.0
    %1060 = vmatprep.subr.mxu0 0.0
    %1061 = vmatpush2.msra.mxu0 0.0
    %1062 = vmatprep.subr.mxu0 0.0
    %1063 = vmatpush2.msra.mxu0 0.0
    %1064 = vmatprep.subr.mxu0 0.0
    %1065 = vmatpush2.msra.mxu0 0.0
    %1066 = vmatprep.subr.mxu0 0.0
    %1067 = vmatpush2.msra.mxu0 0.0
    %1068 = vmatprep.subr.mxu0 0.0
    %1069 = vmatpush2.msra.mxu0 0.0
    %1070 = vmatprep.subr.mxu0 0.0
    %1071 = vmatpush2.msra.mxu0 0.0
    %1072 = vmatprep.subr.mxu0 0.0
    %1073 = vmatpush2.msra.mxu0 0.0
    %1074 = vmatprep.subr.mxu0 0.0
    %1075 = vmatpush2.msra.mxu0 0.0
    %1076 = vmatprep.subr.mxu0 0.0
    %1077 = vmatpush2.msra.mxu0 0.0
    %1078 = vmatprep.subr.mxu0 0.0
    %1079 = vmatpush2.msra.mxu0 0.0
    %1080 = vmatprep.subr.mxu0 0.0
    %1081 = vmatpush2.msra.mxu0 0.0
    %1082 = vmatprep.subr.mxu0 0.0
    %1083 = vmatpush2.msra.mxu0 0.0
    %1084 = vmatprep.subr.mxu0 0.0
    %1085 = vmatpush2.msra.mxu0 0.0
    %1086 = vmatprep.subr.mxu0 0.0
    %1087 = vmatpush2.msra.mxu0 0.0
    %1088 = vmatprep.mubr.f32.mxu0 0.0
    %v1089 = vand.u32 %v749, 4294901760
    %v1090 = vsub.f32 %v749, %v1089
    %1091 = vmatmul.mubr.f32.gmra.mxu0 %v1090
    %v1092 = vpop.f32.mrf.mxu0
    %v1093 = vadd.f32 %v989, %v1092
    %v1094 = vpop.f32.mrf.mxu0
    %1095 = vdwg.mxu0
    %1096 = vmatprep.subr.mxu0 0.0
    %v1097 = vand.u32 %v71, 4294901760
    %1098 = vmatpush1.msra.mxu0 %v1097
    %1099 = vmatprep.subr.mxu0 0.0
    %v1100 = vand.u32 %v70, 4294901760
    %1101 = vmatpush1.msra.mxu0 %v1100
    %1102 = vmatprep.subr.mxu0 0.0
    %v1103 = vand.u32 %v69, 4294901760
    %1104 = vmatpush1.msra.mxu0 %v1103
    %1105 = vmatprep.subr.mxu0 0.0
    %v1106 = vand.u32 %v68, 4294901760
    %1107 = vmatpush1.msra.mxu0 %v1106
    %1108 = vmatprep.subr.mxu0 0.0
    %v1109 = vand.u32 %v67, 4294901760
    %1110 = vmatpush1.msra.mxu0 %v1109
    %1111 = vmatprep.subr.mxu0 0.0
    %v1112 = vand.u32 %v66, 4294901760
    %1113 = vmatpush1.msra.mxu0 %v1112
    %1114 = vmatprep.subr.mxu0 0.0
    %v1115 = vand.u32 %v65, 4294901760
    %1116 = vmatpush1.msra.mxu0 %v1115
    %1117 = vmatprep.subr.mxu0 0.0
    %v1118 = vand.u32 %v64, 4294901760
    %1119 = vmatpush1.msra.mxu0 %v1118
    %1120 = vmatprep.subr.mxu0 0.0
    %v1121 = vand.u32 %v63, 4294901760
    %1122 = vmatpush1.msra.mxu0 %v1121
    %1123 = vmatprep.subr.mxu0 0.0
    %v1124 = vand.u32 %v62, 4294901760
    %1125 = vmatpush1.msra.mxu0 %v1124
    %1126 = vmatprep.subr.mxu0 0.0
    %v1127 = vand.u32 %v61, 4294901760
    %1128 = vmatpush1.msra.mxu0 %v1127
    %1129 = vmatprep.subr.mxu0 0.0
    %v1130 = vand.u32 %v60, 4294901760
    %1131 = vmatpush1.msra.mxu0 %v1130
    %1132 = vmatprep.subr.mxu0 0.0
    %v1133 = vand.u32 %v59, 4294901760
    %1134 = vmatpush1.msra.mxu0 %v1133
    %1135 = vmatprep.subr.mxu0 0.0
    %v1136 = vand.u32 %v58, 4294901760
    %1137 = vmatpush1.msra.mxu0 %v1136
    %1138 = vmatprep.subr.mxu0 0.0
    %v1139 = vand.u32 %v57, 4294901760
    %1140 = vmatpush1.msra.mxu0 %v1139
    %1141 = vmatprep.subr.mxu0 0.0
    %v1142 = vand.u32 %v56, 4294901760
    %1143 = vmatpush1.msra.mxu0 %v1142
    %1144 = vmatprep.subr.mxu0 0.0
    %1145 = vmatpush2.msra.mxu0 0.0
    %1146 = vmatprep.subr.mxu0 0.0
    %1147 = vmatpush2.msra.mxu0 0.0
    %1148 = vmatprep.subr.mxu0 0.0
    %1149 = vmatpush2.msra.mxu0 0.0
    %1150 = vmatprep.subr.mxu0 0.0
    %1151 = vmatpush2.msra.mxu0 0.0
    %1152 = vmatprep.subr.mxu0 0.0
    %1153 = vmatpush2.msra.mxu0 0.0
    %1154 = vmatprep.subr.mxu0 0.0
    %1155 = vmatpush2.msra.mxu0 0.0
    %1156 = vmatprep.subr.mxu0 0.0
    %1157 = vmatpush2.msra.mxu0 0.0
    %1158 = vmatprep.subr.mxu0 0.0
    %1159 = vmatpush2.msra.mxu0 0.0
    %1160 = vmatprep.subr.mxu0 0.0
    %1161 = vmatpush2.msra.mxu0 0.0
    %1162 = vmatprep.subr.mxu0 0.0
    %1163 = vmatpush2.msra.mxu0 0.0
    %1164 = vmatprep.subr.mxu0 0.0
    %1165 = vmatpush2.msra.mxu0 0.0
    %1166 = vmatprep.subr.mxu0 0.0
    %1167 = vmatpush2.msra.mxu0 0.0
    %1168 = vmatprep.subr.mxu0 0.0
    %1169 = vmatpush2.msra.mxu0 0.0
    %1170 = vmatprep.subr.mxu0 0.0
    %1171 = vmatpush2.msra.mxu0 0.0
    %1172 = vmatprep.subr.mxu0 0.0
    %1173 = vmatpush2.msra.mxu0 0.0
    %1174 = vmatprep.subr.mxu0 0.0
    %1175 = vmatpush2.msra.mxu0 0.0
    %1176 = vmatprep.mubr.f32.mxu0 0.0
    %v1177 = vand.u32 %v749, 4294901760
    %v1178 = vsub.f32 %v749, %v1177
    %v1179 = vand.u32 %v1178, 4294901760
    %1180 = vmatmul.mubr.f32.gmra.mxu0 %v1179
    %v1181 = vpop.f32.mrf.mxu0
    %v1182 = vadd.f32 %v1093, %v1181
    %v1183 = vpop.f32.mrf.mxu0
    %1184 = vdwg.mxu0
    %1185 = vmatprep.subr.mxu0 0.0
    %v1186 = vand.u32 %v71, 4294901760
    %v1187 = vsub.f32 %v71, %v1186
    %v1188 = vand.u32 %v1187, 4294901760
    %1189 = vmatpush1.msra.mxu0 %v1188
    %1190 = vmatprep.subr.mxu0 0.0
    %v1191 = vand.u32 %v70, 4294901760
    %v1192 = vsub.f32 %v70, %v1191
    %v1193 = vand.u32 %v1192, 4294901760
    %1194 = vmatpush1.msra.mxu0 %v1193
    %1195 = vmatprep.subr.mxu0 0.0
    %v1196 = vand.u32 %v69, 4294901760
    %v1197 = vsub.f32 %v69, %v1196
    %v1198 = vand.u32 %v1197, 4294901760
    %1199 = vmatpush1.msra.mxu0 %v1198
    %1200 = vmatprep.subr.mxu0 0.0
    %v1201 = vand.u32 %v68, 4294901760
    %v1202 = vsub.f32 %v68, %v1201
    %v1203 = vand.u32 %v1202, 4294901760
    %1204 = vmatpush1.msra.mxu0 %v1203
    %1205 = vmatprep.subr.mxu0 0.0
    %v1206 = vand.u32 %v67, 4294901760
    %v1207 = vsub.f32 %v67, %v1206
    %v1208 = vand.u32 %v1207, 4294901760
    %1209 = vmatpush1.msra.mxu0 %v1208
    %1210 = vmatprep.subr.mxu0 0.0
    %v1211 = vand.u32 %v66, 4294901760
    %v1212 = vsub.f32 %v66, %v1211
    %v1213 = vand.u32 %v1212, 4294901760
    %1214 = vmatpush1.msra.mxu0 %v1213
    %1215 = vmatprep.subr.mxu0 0.0
    %v1216 = vand.u32 %v65, 4294901760
    %v1217 = vsub.f32 %v65, %v1216
    %v1218 = vand.u32 %v1217, 4294901760
    %1219 = vmatpush1.msra.mxu0 %v1218
    %1220 = vmatprep.subr.mxu0 0.0
    %v1221 = vand.u32 %v64, 4294901760
    %v1222 = vsub.f32 %v64, %v1221
    %v1223 = vand.u32 %v1222, 4294901760
    %1224 = vmatpush1.msra.mxu0 %v1223
    %1225 = vmatprep.subr.mxu0 0.0
    %v1226 = vand.u32 %v63, 4294901760
    %v1227 = vsub.f32 %v63, %v1226
    %v1228 = vand.u32 %v1227, 4294901760
    %1229 = vmatpush1.msra.mxu0 %v1228
    %1230 = vmatprep.subr.mxu0 0.0
    %v1231 = vand.u32 %v62, 4294901760
    %v1232 = vsub.f32 %v62, %v1231
    %v1233 = vand.u32 %v1232, 4294901760
    %1234 = vmatpush1.msra.mxu0 %v1233
    %1235 = vmatprep.subr.mxu0 0.0
    %v1236 = vand.u32 %v61, 4294901760
    %v1237 = vsub.f32 %v61, %v1236
    %v1238 = vand.u32 %v1237, 4294901760
    %1239 = vmatpush1.msra.mxu0 %v1238
    %1240 = vmatprep.subr.mxu0 0.0
    %v1241 = vand.u32 %v60, 4294901760
    %v1242 = vsub.f32 %v60, %v1241
    %v1243 = vand.u32 %v1242, 4294901760
    %1244 = vmatpush1.msra.mxu0 %v1243
    %1245 = vmatprep.subr.mxu0 0.0
    %v1246 = vand.u32 %v59, 4294901760
    %v1247 = vsub.f32 %v59, %v1246
    %v1248 = vand.u32 %v1247, 4294901760
    %1249 = vmatpush1.msra.mxu0 %v1248
    %1250 = vmatprep.subr.mxu0 0.0
    %v1251 = vand.u32 %v58, 4294901760
    %v1252 = vsub.f32 %v58, %v1251
    %v1253 = vand.u32 %v1252, 4294901760
    %1254 = vmatpush1.msra.mxu0 %v1253
    %1255 = vmatprep.subr.mxu0 0.0
    %v1256 = vand.u32 %v57, 4294901760
    %v1257 = vsub.f32 %v57, %v1256
    %v1258 = vand.u32 %v1257, 4294901760
    %1259 = vmatpush1.msra.mxu0 %v1258
    %1260 = vmatprep.subr.mxu0 0.0
    %v1261 = vand.u32 %v56, 4294901760
    %v1262 = vsub.f32 %v56, %v1261
    %v1263 = vand.u32 %v1262, 4294901760
    %1264 = vmatpush1.msra.mxu0 %v1263
    %1265 = vmatprep.subr.mxu0 0.0
    %1266 = vmatpush2.msra.mxu0 0.0
    %1267 = vmatprep.subr.mxu0 0.0
    %1268 = vmatpush2.msra.mxu0 0.0
    %1269 = vmatprep.subr.mxu0 0.0
    %1270 = vmatpush2.msra.mxu0 0.0
    %1271 = vmatprep.subr.mxu0 0.0
    %1272 = vmatpush2.msra.mxu0 0.0
    %1273 = vmatprep.subr.mxu0 0.0
    %1274 = vmatpush2.msra.mxu0 0.0
    %1275 = vmatprep.subr.mxu0 0.0
    %1276 = vmatpush2.msra.mxu0 0.0
    %1277 = vmatprep.subr.mxu0 0.0
    %1278 = vmatpush2.msra.mxu0 0.0
    %1279 = vmatprep.subr.mxu0 0.0
    %1280 = vmatpush2.msra.mxu0 0.0
    %1281 = vmatprep.subr.mxu0 0.0
    %1282 = vmatpush2.msra.mxu0 0.0
    %1283 = vmatprep.subr.mxu0 0.0
    %1284 = vmatpush2.msra.mxu0 0.0
    %1285 = vmatprep.subr.mxu0 0.0
    %1286 = vmatpush2.msra.mxu0 0.0
    %1287 = vmatprep.subr.mxu0 0.0
    %1288 = vmatpush2.msra.mxu0 0.0
    %1289 = vmatprep.subr.mxu0 0.0
    %1290 = vmatpush2.msra.mxu0 0.0
    %1291 = vmatprep.subr.mxu0 0.0
    %1292 = vmatpush2.msra.mxu0 0.0
    %1293 = vmatprep.subr.mxu0 0.0
    %1294 = vmatpush2.msra.mxu0 0.0
    %1295 = vmatprep.subr.mxu0 0.0
    %1296 = vmatpush2.msra.mxu0 0.0
    %1297 = vmatprep.mubr.f32.mxu0 0.0
    %v1298 = vand.u32 %v749, 4294901760
    %1299 = vmatmul.mubr.f32.gmra.mxu0 %v1298
    %v1300 = vpop.f32.mrf.mxu0
    %v1301 = vadd.f32 %v1182, %v1300
    %v1302 = vpop.f32.mrf.mxu0
    %1303 = vdwg.mxu0
    %1304 = vmatprep.subr.mxu0 0.0
    %v1305 = vand.u32 %v71, 4294901760
    %1306 = vmatpush1.msra.mxu0 %v1305
    %1307 = vmatprep.subr.mxu0 0.0
    %v1308 = vand.u32 %v70, 4294901760
    %1309 = vmatpush1.msra.mxu0 %v1308
    %1310 = vmatprep.subr.mxu0 0.0
    %v1311 = vand.u32 %v69, 4294901760
    %1312 = vmatpush1.msra.mxu0 %v1311
    %1313 = vmatprep.subr.mxu0 0.0
    %v1314 = vand.u32 %v68, 4294901760
    %1315 = vmatpush1.msra.mxu0 %v1314
    %1316 = vmatprep.subr.mxu0 0.0
    %v1317 = vand.u32 %v67, 4294901760
    %1318 = vmatpush1.msra.mxu0 %v1317
    %1319 = vmatprep.subr.mxu0 0.0
    %v1320 = vand.u32 %v66, 4294901760
    %1321 = vmatpush1.msra.mxu0 %v1320
    %1322 = vmatprep.subr.mxu0 0.0
    %v1323 = vand.u32 %v65, 4294901760
    %1324 = vmatpush1.msra.mxu0 %v1323
    %1325 = vmatprep.subr.mxu0 0.0
    %v1326 = vand.u32 %v64, 4294901760
    %1327 = vmatpush1.msra.mxu0 %v1326
    %1328 = vmatprep.subr.mxu0 0.0
    %v1329 = vand.u32 %v63, 4294901760
    %1330 = vmatpush1.msra.mxu0 %v1329
    %1331 = vmatprep.subr.mxu0 0.0
    %v1332 = vand.u32 %v62, 4294901760
    %1333 = vmatpush1.msra.mxu0 %v1332
    %1334 = vmatprep.subr.mxu0 0.0
    %v1335 = vand.u32 %v61, 4294901760
    %1336 = vmatpush1.msra.mxu0 %v1335
    %1337 = vmatprep.subr.mxu0 0.0
    %v1338 = vand.u32 %v60, 4294901760
    %1339 = vmatpush1.msra.mxu0 %v1338
    %1340 = vmatprep.subr.mxu0 0.0
    %v1341 = vand.u32 %v59, 4294901760
    %1342 = vmatpush1.msra.mxu0 %v1341
    %1343 = vmatprep.subr.mxu0 0.0
    %v1344 = vand.u32 %v58, 4294901760
    %1345 = vmatpush1.msra.mxu0 %v1344
    %1346 = vmatprep.subr.mxu0 0.0
    %v1347 = vand.u32 %v57, 4294901760
    %1348 = vmatpush1.msra.mxu0 %v1347
    %1349 = vmatprep.subr.mxu0 0.0
    %v1350 = vand.u32 %v56, 4294901760
    %1351 = vmatpush1.msra.mxu0 %v1350
    %1352 = vmatprep.subr.mxu0 0.0
    %1353 = vmatpush2.msra.mxu0 0.0
    %1354 = vmatprep.subr.mxu0 0.0
    %1355 = vmatpush2.msra.mxu0 0.0
    %1356 = vmatprep.subr.mxu0 0.0
    %1357 = vmatpush2.msra.mxu0 0.0
    %1358 = vmatprep.subr.mxu0 0.0
    %1359 = vmatpush2.msra.mxu0 0.0
    %1360 = vmatprep.subr.mxu0 0.0
    %1361 = vmatpush2.msra.mxu0 0.0
    %1362 = vmatprep.subr.mxu0 0.0
    %1363 = vmatpush2.msra.mxu0 0.0
    %1364 = vmatprep.subr.mxu0 0.0
    %1365 = vmatpush2.msra.mxu0 0.0
    %1366 = vmatprep.subr.mxu0 0.0
    %1367 = vmatpush2.msra.mxu0 0.0
    %1368 = vmatprep.subr.mxu0 0.0
    %1369 = vmatpush2.msra.mxu0 0.0
    %1370 = vmatprep.subr.mxu0 0.0
    %1371 = vmatpush2.msra.mxu0 0.0
    %1372 = vmatprep.subr.mxu0 0.0
    %1373 = vmatpush2.msra.mxu0 0.0
    %1374 = vmatprep.subr.mxu0 0.0
    %1375 = vmatpush2.msra.mxu0 0.0
    %1376 = vmatprep.subr.mxu0 0.0
    %1377 = vmatpush2.msra.mxu0 0.0
    %1378 = vmatprep.subr.mxu0 0.0
    %1379 = vmatpush2.msra.mxu0 0.0
    %1380 = vmatprep.subr.mxu0 0.0
    %1381 = vmatpush2.msra.mxu0 0.0
    %1382 = vmatprep.subr.mxu0 0.0
    %1383 = vmatpush2.msra.mxu0 0.0
    %1384 = vmatprep.mubr.f32.mxu0 0.0
    %v1385 = vand.u32 %v749, 4294901760
    %1386 = vmatmul.mubr.f32.gmra.mxu0 %v1385
    %v1387 = vpop.f32.mrf.mxu0
    %v1388 = vadd.f32 %v1301, %v1387
    %v1389 = vpop.f32.mrf.mxu0
    %1390 = vdwg.mxu0
    %v1391 = vmax.f32 %v1388, 1e-37
    %v1392 = vlog2.pop %v1391
    %v1393 = vmul.f32 %v1392, 0.6931472
    %v1394 = vadd.f32 %v1393, %v746
    %v1395 = vadd.f32 %v1394, %v744
    %vm1396 = vcmp.gt.f32.partialorder %v744, 0.5
    %v1397 = vsel %vm1396, 1, 0
    %1398 = vset.pattern.permute.xlu0 5
    %1399 = vperm.xlu0 %1398, %v1397
    %v1400 = vpop.permute.xlu0 %1399
    %vm1401 = vcmp.eq.s32.totalorder %v1400, 1
    %v1402 = vsel %vm1401, %v1395, %v742
    %s1403 = scalar_lea.vmem [#allocation3], 16
    %v1404 = vld [vmem:[%s1403] sm:$0xff]
    %1405 = vmax.xlane.f32.xlu0 %v1402
    %v1406 = vpop.xlane.xlu0 %1405
    %v1407 = vsub.f32 %v1402, %v1406
    %v1408 = vmul.f32 %v1407, 1.442695
    %v1409 = vpow.pop %v1408
    %1410 = vmatprep.subr.mxu0 0.0
    %v1411 = vand.u32 %v71, 4294901760
    %1412 = vmatpush1.msra.mxu0 %v1411
    %1413 = vmatprep.subr.mxu0 0.0
    %v1414 = vand.u32 %v70, 4294901760
    %1415 = vmatpush1.msra.mxu0 %v1414
    %1416 = vmatprep.subr.mxu0 0.0
    %v1417 = vand.u32 %v69, 4294901760
    %1418 = vmatpush1.msra.mxu0 %v1417
    %1419 = vmatprep.subr.mxu0 0.0
    %v1420 = vand.u32 %v68, 4294901760
    %1421 = vmatpush1.msra.mxu0 %v1420
    %1422 = vmatprep.subr.mxu0 0.0
    %v1423 = vand.u32 %v67, 4294901760
    %1424 = vmatpush1.msra.mxu0 %v1423
    %1425 = vmatprep.subr.mxu0 0.0
    %v1426 = vand.u32 %v66, 4294901760
    %1427 = vmatpush1.msra.mxu0 %v1426
    %1428 = vmatprep.subr.mxu0 0.0
    %v1429 = vand.u32 %v65, 4294901760
    %1430 = vmatpush1.msra.mxu0 %v1429
    %1431 = vmatprep.subr.mxu0 0.0
    %v1432 = vand.u32 %v64, 4294901760
    %1433 = vmatpush1.msra.mxu0 %v1432
    %1434 = vmatprep.subr.mxu0 0.0
    %v1435 = vand.u32 %v63, 4294901760
    %1436 = vmatpush1.msra.mxu0 %v1435
    %1437 = vmatprep.subr.mxu0 0.0
    %v1438 = vand.u32 %v62, 4294901760
    %1439 = vmatpush1.msra.mxu0 %v1438
    %1440 = vmatprep.subr.mxu0 0.0
    %v1441 = vand.u32 %v61, 4294901760
    %1442 = vmatpush1.msra.mxu0 %v1441
    %1443 = vmatprep.subr.mxu0 0.0
    %v1444 = vand.u32 %v60, 4294901760
    %1445 = vmatpush1.msra.mxu0 %v1444
    %1446 = vmatprep.subr.mxu0 0.0
    %v1447 = vand.u32 %v59, 4294901760
    %1448 = vmatpush1.msra.mxu0 %v1447
    %1449 = vmatprep.subr.mxu0 0.0
    %v1450 = vand.u32 %v58, 4294901760
    %1451 = vmatpush1.msra.mxu0 %v1450
    %1452 = vmatprep.subr.mxu0 0.0
    %v1453 = vand.u32 %v57, 4294901760
    %1454 = vmatpush1.msra.mxu0 %v1453
    %1455 = vmatprep.subr.mxu0 0.0
    %v1456 = vand.u32 %v56, 4294901760
    %1457 = vmatpush1.msra.mxu0 %v1456
    %1458 = vmatprep.subr.mxu0 0.0
    %1459 = vmatpush2.msra.mxu0 0.0
    %1460 = vmatprep.subr.mxu0 0.0
    %1461 = vmatpush2.msra.mxu0 0.0
    %1462 = vmatprep.subr.mxu0 0.0
    %1463 = vmatpush2.msra.mxu0 0.0
    %1464 = vmatprep.subr.mxu0 0.0
    %1465 = vmatpush2.msra.mxu0 0.0
    %1466 = vmatprep.subr.mxu0 0.0
    %1467 = vmatpush2.msra.mxu0 0.0
    %1468 = vmatprep.subr.mxu0 0.0
    %1469 = vmatpush2.msra.mxu0 0.0
    %1470 = vmatprep.subr.mxu0 0.0
    %1471 = vmatpush2.msra.mxu0 0.0
    %1472 = vmatprep.subr.mxu0 0.0
    %1473 = vmatpush2.msra.mxu0 0.0
    %1474 = vmatprep.subr.mxu0 0.0
    %1475 = vmatpush2.msra.mxu0 0.0
    %1476 = vmatprep.subr.mxu0 0.0
    %1477 = vmatpush2.msra.mxu0 0.0
    %1478 = vmatprep.subr.mxu0 0.0
    %1479 = vmatpush2.msra.mxu0 0.0
    %1480 = vmatprep.subr.mxu0 0.0
    %1481 = vmatpush2.msra.mxu0 0.0
    %1482 = vmatprep.subr.mxu0 0.0
    %1483 = vmatpush2.msra.mxu0 0.0
    %1484 = vmatprep.subr.mxu0 0.0
    %1485 = vmatpush2.msra.mxu0 0.0
    %1486 = vmatprep.subr.mxu0 0.0
    %1487 = vmatpush2.msra.mxu0 0.0
    %1488 = vmatprep.subr.mxu0 0.0
    %1489 = vmatpush2.msra.mxu0 0.0
    %1490 = vmatprep.mubr.f32.mxu0 0.0
    %v1491 = vand.u32 %v1409, 4294901760
    %v1492 = vsub.f32 %v1409, %v1491
    %v1493 = vand.u32 %v1492, 4294901760
    %v1494 = vsub.f32 %v1492, %v1493
    %v1495 = vand.u32 %v1494, 4294901760
    %1496 = vmatmul.mubr.f32.gmra.mxu0 %v1495
    %v1497 = vpop.f32.mrf.mxu0
    %v1498 = vadd.f32 0.0, %v1497
    %v1499 = vpop.f32.mrf.mxu0
    %1500 = vdwg.mxu0
    %1501 = vmatprep.subr.mxu0 0.0
    %v1502 = vand.u32 %v71, 4294901760
    %v1503 = vsub.f32 %v71, %v1502
    %v1504 = vand.u32 %v1503, 4294901760
    %v1505 = vsub.f32 %v1503, %v1504
    %v1506 = vand.u32 %v1505, 4294901760
    %1507 = vmatpush1.msra.mxu0 %v1506
    %1508 = vmatprep.subr.mxu0 0.0
    %v1509 = vand.u32 %v70, 4294901760
    %v1510 = vsub.f32 %v70, %v1509
    %v1511 = vand.u32 %v1510, 4294901760
    %v1512 = vsub.f32 %v1510, %v1511
    %v1513 = vand.u32 %v1512, 4294901760
    %1514 = vmatpush1.msra.mxu0 %v1513
    %1515 = vmatprep.subr.mxu0 0.0
    %v1516 = vand.u32 %v69, 4294901760
    %v1517 = vsub.f32 %v69, %v1516
    %v1518 = vand.u32 %v1517, 4294901760
    %v1519 = vsub.f32 %v1517, %v1518
    %v1520 = vand.u32 %v1519, 4294901760
    %1521 = vmatpush1.msra.mxu0 %v1520
    %1522 = vmatprep.subr.mxu0 0.0
    %v1523 = vand.u32 %v68, 4294901760
    %v1524 = vsub.f32 %v68, %v1523
    %v1525 = vand.u32 %v1524, 4294901760
    %v1526 = vsub.f32 %v1524, %v1525
    %v1527 = vand.u32 %v1526, 4294901760
    %1528 = vmatpush1.msra.mxu0 %v1527
    %1529 = vmatprep.subr.mxu0 0.0
    %v1530 = vand.u32 %v67, 4294901760
    %v1531 = vsub.f32 %v67, %v1530
    %v1532 = vand.u32 %v1531, 4294901760
    %v1533 = vsub.f32 %v1531, %v1532
    %v1534 = vand.u32 %v1533, 4294901760
    %1535 = vmatpush1.msra.mxu0 %v1534
    %1536 = vmatprep.subr.mxu0 0.0
    %v1537 = vand.u32 %v66, 4294901760
    %v1538 = vsub.f32 %v66, %v1537
    %v1539 = vand.u32 %v1538, 4294901760
    %v1540 = vsub.f32 %v1538, %v1539
    %v1541 = vand.u32 %v1540, 4294901760
    %1542 = vmatpush1.msra.mxu0 %v1541
    %1543 = vmatprep.subr.mxu0 0.0
    %v1544 = vand.u32 %v65, 4294901760
    %v1545 = vsub.f32 %v65, %v1544
    %v1546 = vand.u32 %v1545, 4294901760
    %v1547 = vsub.f32 %v1545, %v1546
    %v1548 = vand.u32 %v1547, 4294901760
    %1549 = vmatpush1.msra.mxu0 %v1548
    %1550 = vmatprep.subr.mxu0 0.0
    %v1551 = vand.u32 %v64, 4294901760
    %v1552 = vsub.f32 %v64, %v1551
    %v1553 = vand.u32 %v1552, 4294901760
    %v1554 = vsub.f32 %v1552, %v1553
    %v1555 = vand.u32 %v1554, 4294901760
    %1556 = vmatpush1.msra.mxu0 %v1555
    %1557 = vmatprep.subr.mxu0 0.0
    %v1558 = vand.u32 %v63, 4294901760
    %v1559 = vsub.f32 %v63, %v1558
    %v1560 = vand.u32 %v1559, 4294901760
    %v1561 = vsub.f32 %v1559, %v1560
    %v1562 = vand.u32 %v1561, 4294901760
    %1563 = vmatpush1.msra.mxu0 %v1562
    %1564 = vmatprep.subr.mxu0 0.0
    %v1565 = vand.u32 %v62, 4294901760
    %v1566 = vsub.f32 %v62, %v1565
    %v1567 = vand.u32 %v1566, 4294901760
    %v1568 = vsub.f32 %v1566, %v1567
    %v1569 = vand.u32 %v1568, 4294901760
    %1570 = vmatpush1.msra.mxu0 %v1569
    %1571 = vmatprep.subr.mxu0 0.0
    %v1572 = vand.u32 %v61, 4294901760
    %v1573 = vsub.f32 %v61, %v1572
    %v1574 = vand.u32 %v1573, 4294901760
    %v1575 = vsub.f32 %v1573, %v1574
    %v1576 = vand.u32 %v1575, 4294901760
    %1577 = vmatpush1.msra.mxu0 %v1576
    %1578 = vmatprep.subr.mxu0 0.0
    %v1579 = vand.u32 %v60, 4294901760
    %v1580 = vsub.f32 %v60, %v1579
    %v1581 = vand.u32 %v1580, 4294901760
    %v1582 = vsub.f32 %v1580, %v1581
    %v1583 = vand.u32 %v1582, 4294901760
    %1584 = vmatpush1.msra.mxu0 %v1583
    %1585 = vmatprep.subr.mxu0 0.0
    %v1586 = vand.u32 %v59, 4294901760
    %v1587 = vsub.f32 %v59, %v1586
    %v1588 = vand.u32 %v1587, 4294901760
    %v1589 = vsub.f32 %v1587, %v1588
    %v1590 = vand.u32 %v1589, 4294901760
    %1591 = vmatpush1.msra.mxu0 %v1590
    %1592 = vmatprep.subr.mxu0 0.0
    %v1593 = vand.u32 %v58, 4294901760
    %v1594 = vsub.f32 %v58, %v1593
    %v1595 = vand.u32 %v1594, 4294901760
    %v1596 = vsub.f32 %v1594, %v1595
    %v1597 = vand.u32 %v1596, 4294901760
    %1598 = vmatpush1.msra.mxu0 %v1597
    %1599 = vmatprep.subr.mxu0 0.0
    %v1600 = vand.u32 %v57, 4294901760
    %v1601 = vsub.f32 %v57, %v1600
    %v1602 = vand.u32 %v1601, 4294901760
    %v1603 = vsub.f32 %v1601, %v1602
    %v1604 = vand.u32 %v1603, 4294901760
    %1605 = vmatpush1.msra.mxu0 %v1604
    %1606 = vmatprep.subr.mxu0 0.0
    %v1607 = vand.u32 %v56, 4294901760
    %v1608 = vsub.f32 %v56, %v1607
    %v1609 = vand.u32 %v1608, 4294901760
    %v1610 = vsub.f32 %v1608, %v1609
    %v1611 = vand.u32 %v1610, 4294901760
    %1612 = vmatpush1.msra.mxu0 %v1611
    %1613 = vmatprep.subr.mxu0 0.0
    %1614 = vmatpush2.msra.mxu0 0.0
    %1615 = vmatprep.subr.mxu0 0.0
    %1616 = vmatpush2.msra.mxu0 0.0
    %1617 = vmatprep.subr.mxu0 0.0
    %1618 = vmatpush2.msra.mxu0 0.0
    %1619 = vmatprep.subr.mxu0 0.0
    %1620 = vmatpush2.msra.mxu0 0.0
    %1621 = vmatprep.subr.mxu0 0.0
    %1622 = vmatpush2.msra.mxu0 0.0
    %1623 = vmatprep.subr.mxu0 0.0
    %1624 = vmatpush2.msra.mxu0 0.0
    %1625 = vmatprep.subr.mxu0 0.0
    %1626 = vmatpush2.msra.mxu0 0.0
    %1627 = vmatprep.subr.mxu0 0.0
    %1628 = vmatpush2.msra.mxu0 0.0
    %1629 = vmatprep.subr.mxu0 0.0
    %1630 = vmatpush2.msra.mxu0 0.0
    %1631 = vmatprep.subr.mxu0 0.0
    %1632 = vmatpush2.msra.mxu0 0.0
    %1633 = vmatprep.subr.mxu0 0.0
    %1634 = vmatpush2.msra.mxu0 0.0
    %1635 = vmatprep.subr.mxu0 0.0
    %1636 = vmatpush2.msra.mxu0 0.0
    %1637 = vmatprep.subr.mxu0 0.0
    %1638 = vmatpush2.msra.mxu0 0.0
    %1639 = vmatprep.subr.mxu0 0.0
    %1640 = vmatpush2.msra.mxu0 0.0
    %1641 = vmatprep.subr.mxu0 0.0
    %1642 = vmatpush2.msra.mxu0 0.0
    %1643 = vmatprep.subr.mxu0 0.0
    %1644 = vmatpush2.msra.mxu0 0.0
    %1645 = vmatprep.mubr.f32.mxu0 0.0
    %v1646 = vand.u32 %v1409, 4294901760
    %1647 = vmatmul.mubr.f32.gmra.mxu0 %v1646
    %v1648 = vpop.f32.mrf.mxu0
    %v1649 = vadd.f32 %v1498, %v1648
    %v1650 = vpop.f32.mrf.mxu0
    %1651 = vdwg.mxu0
    %1652 = vmatprep.subr.mxu0 0.0
    %v1653 = vand.u32 %v71, 4294901760
    %v1654 = vsub.f32 %v71, %v1653
    %1655 = vmatpush1.msra.mxu0 %v1654
    %1656 = vmatprep.subr.mxu0 0.0
    %v1657 = vand.u32 %v70, 4294901760
    %v1658 = vsub.f32 %v70, %v1657
    %1659 = vmatpush1.msra.mxu0 %v1658
    %1660 = vmatprep.subr.mxu0 0.0
    %v1661 = vand.u32 %v69, 4294901760
    %v1662 = vsub.f32 %v69, %v1661
    %1663 = vmatpush1.msra.mxu0 %v1662
    %1664 = vmatprep.subr.mxu0 0.0
    %v1665 = vand.u32 %v68, 4294901760
    %v1666 = vsub.f32 %v68, %v1665
    %1667 = vmatpush1.msra.mxu0 %v1666
    %1668 = vmatprep.subr.mxu0 0.0
    %v1669 = vand.u32 %v67, 4294901760
    %v1670 = vsub.f32 %v67, %v1669
    %1671 = vmatpush1.msra.mxu0 %v1670
    %1672 = vmatprep.subr.mxu0 0.0
    %v1673 = vand.u32 %v66, 4294901760
    %v1674 = vsub.f32 %v66, %v1673
    %1675 = vmatpush1.msra.mxu0 %v1674
    %1676 = vmatprep.subr.mxu0 0.0
    %v1677 = vand.u32 %v65, 4294901760
    %v1678 = vsub.f32 %v65, %v1677
    %1679 = vmatpush1.msra.mxu0 %v1678
    %1680 = vmatprep.subr.mxu0 0.0
    %v1681 = vand.u32 %v64, 4294901760
    %v1682 = vsub.f32 %v64, %v1681
    %1683 = vmatpush1.msra.mxu0 %v1682
    %1684 = vmatprep.subr.mxu0 0.0
    %v1685 = vand.u32 %v63, 4294901760
    %v1686 = vsub.f32 %v63, %v1685
    %1687 = vmatpush1.msra.mxu0 %v1686
    %1688 = vmatprep.subr.mxu0 0.0
    %v1689 = vand.u32 %v62, 4294901760
    %v1690 = vsub.f32 %v62, %v1689
    %1691 = vmatpush1.msra.mxu0 %v1690
    %1692 = vmatprep.subr.mxu0 0.0
    %v1693 = vand.u32 %v61, 4294901760
    %v1694 = vsub.f32 %v61, %v1693
    %1695 = vmatpush1.msra.mxu0 %v1694
    %1696 = vmatprep.subr.mxu0 0.0
    %v1697 = vand.u32 %v60, 4294901760
    %v1698 = vsub.f32 %v60, %v1697
    %1699 = vmatpush1.msra.mxu0 %v1698
    %1700 = vmatprep.subr.mxu0 0.0
    %v1701 = vand.u32 %v59, 4294901760
    %v1702 = vsub.f32 %v59, %v1701
    %1703 = vmatpush1.msra.mxu0 %v1702
    %1704 = vmatprep.subr.mxu0 0.0
    %v1705 = vand.u32 %v58, 4294901760
    %v1706 = vsub.f32 %v58, %v1705
    %1707 = vmatpush1.msra.mxu0 %v1706
    %1708 = vmatprep.subr.mxu0 0.0
    %v1709 = vand.u32 %v57, 4294901760
    %v1710 = vsub.f32 %v57, %v1709
    %1711 = vmatpush1.msra.mxu0 %v1710
    %1712 = vmatprep.subr.mxu0 0.0
    %v1713 = vand.u32 %v56, 4294901760
    %v1714 = vsub.f32 %v56, %v1713
    %1715 = vmatpush1.msra.mxu0 %v1714
    %1716 = vmatprep.subr.mxu0 0.0
    %1717 = vmatpush2.msra.mxu0 0.0
    %1718 = vmatprep.subr.mxu0 0.0
    %1719 = vmatpush2.msra.mxu0 0.0
    %1720 = vmatprep.subr.mxu0 0.0
    %1721 = vmatpush2.msra.mxu0 0.0
    %1722 = vmatprep.subr.mxu0 0.0
    %1723 = vmatpush2.msra.mxu0 0.0
    %1724 = vmatprep.subr.mxu0 0.0
    %1725 = vmatpush2.msra.mxu0 0.0
    %1726 = vmatprep.subr.mxu0 0.0
    %1727 = vmatpush2.msra.mxu0 0.0
    %1728 = vmatprep.subr.mxu0 0.0
    %1729 = vmatpush2.msra.mxu0 0.0
    %1730 = vmatprep.subr.mxu0 0.0
    %1731 = vmatpush2.msra.mxu0 0.0
    %1732 = vmatprep.subr.mxu0 0.0
    %1733 = vmatpush2.msra.mxu0 0.0
    %1734 = vmatprep.subr.mxu0 0.0
    %1735 = vmatpush2.msra.mxu0 0.0
    %1736 = vmatprep.subr.mxu0 0.0
    %1737 = vmatpush2.msra.mxu0 0.0
    %1738 = vmatprep.subr.mxu0 0.0
    %1739 = vmatpush2.msra.mxu0 0.0
    %1740 = vmatprep.subr.mxu0 0.0
    %1741 = vmatpush2.msra.mxu0 0.0
    %1742 = vmatprep.subr.mxu0 0.0
    %1743 = vmatpush2.msra.mxu0 0.0
    %1744 = vmatprep.subr.mxu0 0.0
    %1745 = vmatpush2.msra.mxu0 0.0
    %1746 = vmatprep.subr.mxu0 0.0
    %1747 = vmatpush2.msra.mxu0 0.0
    %1748 = vmatprep.mubr.f32.mxu0 0.0
    %v1749 = vand.u32 %v1409, 4294901760
    %v1750 = vsub.f32 %v1409, %v1749
    %1751 = vmatmul.mubr.f32.gmra.mxu0 %v1750
    %v1752 = vpop.f32.mrf.mxu0
    %v1753 = vadd.f32 %v1649, %v1752
    %v1754 = vpop.f32.mrf.mxu0
    %1755 = vdwg.mxu0
    %1756 = vmatprep.subr.mxu0 0.0
    %v1757 = vand.u32 %v71, 4294901760
    %1758 = vmatpush1.msra.mxu0 %v1757
    %1759 = vmatprep.subr.mxu0 0.0
    %v1760 = vand.u32 %v70, 4294901760
    %1761 = vmatpush1.msra.mxu0 %v1760
    %1762 = vmatprep.subr.mxu0 0.0
    %v1763 = vand.u32 %v69, 4294901760
    %1764 = vmatpush1.msra.mxu0 %v1763
    %1765 = vmatprep.subr.mxu0 0.0
    %v1766 = vand.u32 %v68, 4294901760
    %1767 = vmatpush1.msra.mxu0 %v1766
    %1768 = vmatprep.subr.mxu0 0.0
    %v1769 = vand.u32 %v67, 4294901760
    %1770 = vmatpush1.msra.mxu0 %v1769
    %1771 = vmatprep.subr.mxu0 0.0
    %v1772 = vand.u32 %v66, 4294901760
    %1773 = vmatpush1.msra.mxu0 %v1772
    %1774 = vmatprep.subr.mxu0 0.0
    %v1775 = vand.u32 %v65, 4294901760
    %1776 = vmatpush1.msra.mxu0 %v1775
    %1777 = vmatprep.subr.mxu0 0.0
    %v1778 = vand.u32 %v64, 4294901760
    %1779 = vmatpush1.msra.mxu0 %v1778
    %1780 = vmatprep.subr.mxu0 0.0
    %v1781 = vand.u32 %v63, 4294901760
    %1782 = vmatpush1.msra.mxu0 %v1781
    %1783 = vmatprep.subr.mxu0 0.0
    %v1784 = vand.u32 %v62, 4294901760
    %1785 = vmatpush1.msra.mxu0 %v1784
    %1786 = vmatprep.subr.mxu0 0.0
    %v1787 = vand.u32 %v61, 4294901760
    %1788 = vmatpush1.msra.mxu0 %v1787
    %1789 = vmatprep.subr.mxu0 0.0
    %v1790 = vand.u32 %v60, 4294901760
    %1791 = vmatpush1.msra.mxu0 %v1790
    %1792 = vmatprep.subr.mxu0 0.0
    %v1793 = vand.u32 %v59, 4294901760
    %1794 = vmatpush1.msra.mxu0 %v1793
    %1795 = vmatprep.subr.mxu0 0.0
    %v1796 = vand.u32 %v58, 4294901760
    %1797 = vmatpush1.msra.mxu0 %v1796
    %1798 = vmatprep.subr.mxu0 0.0
    %v1799 = vand.u32 %v57, 4294901760
    %1800 = vmatpush1.msra.mxu0 %v1799
    %1801 = vmatprep.subr.mxu0 0.0
    %v1802 = vand.u32 %v56, 4294901760
    %1803 = vmatpush1.msra.mxu0 %v1802
    %1804 = vmatprep.subr.mxu0 0.0
    %1805 = vmatpush2.msra.mxu0 0.0
    %1806 = vmatprep.subr.mxu0 0.0
    %1807 = vmatpush2.msra.mxu0 0.0
    %1808 = vmatprep.subr.mxu0 0.0
    %1809 = vmatpush2.msra.mxu0 0.0
    %1810 = vmatprep.subr.mxu0 0.0
    %1811 = vmatpush2.msra.mxu0 0.0
    %1812 = vmatprep.subr.mxu0 0.0
    %1813 = vmatpush2.msra.mxu0 0.0
    %1814 = vmatprep.subr.mxu0 0.0
    %1815 = vmatpush2.msra.mxu0 0.0
    %1816 = vmatprep.subr.mxu0 0.0
    %1817 = vmatpush2.msra.mxu0 0.0
    %1818 = vmatprep.subr.mxu0 0.0
    %1819 = vmatpush2.msra.mxu0 0.0
    %1820 = vmatprep.subr.mxu0 0.0
    %1821 = vmatpush2.msra.mxu0 0.0
    %1822 = vmatprep.subr.mxu0 0.0
    %1823 = vmatpush2.msra.mxu0 0.0
    %1824 = vmatprep.subr.mxu0 0.0
    %1825 = vmatpush2.msra.mxu0 0.0
    %1826 = vmatprep.subr.mxu0 0.0
    %1827 = vmatpush2.msra.mxu0 0.0
    %1828 = vmatprep.subr.mxu0 0.0
    %1829 = vmatpush2.msra.mxu0 0.0
    %1830 = vmatprep.subr.mxu0 0.0
    %1831 = vmatpush2.msra.mxu0 0.0
    %1832 = vmatprep.subr.mxu0 0.0
    %1833 = vmatpush2.msra.mxu0 0.0
    %1834 = vmatprep.subr.mxu0 0.0
    %1835 = vmatpush2.msra.mxu0 0.0
    %1836 = vmatprep.mubr.f32.mxu0 0.0
    %v1837 = vand.u32 %v1409, 4294901760
    %v1838 = vsub.f32 %v1409, %v1837
    %v1839 = vand.u32 %v1838, 4294901760
    %1840 = vmatmul.mubr.f32.gmra.mxu0 %v1839
    %v1841 = vpop.f32.mrf.mxu0
    %v1842 = vadd.f32 %v1753, %v1841
    %v1843 = vpop.f32.mrf.mxu0
    %1844 = vdwg.mxu0
    %1845 = vmatprep.subr.mxu0 0.0
    %v1846 = vand.u32 %v71, 4294901760
    %v1847 = vsub.f32 %v71, %v1846
    %v1848 = vand.u32 %v1847, 4294901760
    %1849 = vmatpush1.msra.mxu0 %v1848
    %1850 = vmatprep.subr.mxu0 0.0
    %v1851 = vand.u32 %v70, 4294901760
    %v1852 = vsub.f32 %v70, %v1851
    %v1853 = vand.u32 %v1852, 4294901760
    %1854 = vmatpush1.msra.mxu0 %v1853
    %1855 = vmatprep.subr.mxu0 0.0
    %v1856 = vand.u32 %v69, 4294901760
    %v1857 = vsub.f32 %v69, %v1856
    %v1858 = vand.u32 %v1857, 4294901760
    %1859 = vmatpush1.msra.mxu0 %v1858
    %1860 = vmatprep.subr.mxu0 0.0
    %v1861 = vand.u32 %v68, 4294901760
    %v1862 = vsub.f32 %v68, %v1861
    %v1863 = vand.u32 %v1862, 4294901760
    %1864 = vmatpush1.msra.mxu0 %v1863
    %1865 = vmatprep.subr.mxu0 0.0
    %v1866 = vand.u32 %v67, 4294901760
    %v1867 = vsub.f32 %v67, %v1866
    %v1868 = vand.u32 %v1867, 4294901760
    %1869 = vmatpush1.msra.mxu0 %v1868
    %1870 = vmatprep.subr.mxu0 0.0
    %v1871 = vand.u32 %v66, 4294901760
    %v1872 = vsub.f32 %v66, %v1871
    %v1873 = vand.u32 %v1872, 4294901760
    %1874 = vmatpush1.msra.mxu0 %v1873
    %1875 = vmatprep.subr.mxu0 0.0
    %v1876 = vand.u32 %v65, 4294901760
    %v1877 = vsub.f32 %v65, %v1876
    %v1878 = vand.u32 %v1877, 4294901760
    %1879 = vmatpush1.msra.mxu0 %v1878
    %1880 = vmatprep.subr.mxu0 0.0
    %v1881 = vand.u32 %v64, 4294901760
    %v1882 = vsub.f32 %v64, %v1881
    %v1883 = vand.u32 %v1882, 4294901760
    %1884 = vmatpush1.msra.mxu0 %v1883
    %1885 = vmatprep.subr.mxu0 0.0
    %v1886 = vand.u32 %v63, 4294901760
    %v1887 = vsub.f32 %v63, %v1886
    %v1888 = vand.u32 %v1887, 4294901760
    %1889 = vmatpush1.msra.mxu0 %v1888
    %1890 = vmatprep.subr.mxu0 0.0
    %v1891 = vand.u32 %v62, 4294901760
    %v1892 = vsub.f32 %v62, %v1891
    %v1893 = vand.u32 %v1892, 4294901760
    %1894 = vmatpush1.msra.mxu0 %v1893
    %1895 = vmatprep.subr.mxu0 0.0
    %v1896 = vand.u32 %v61, 4294901760
    %v1897 = vsub.f32 %v61, %v1896
    %v1898 = vand.u32 %v1897, 4294901760
    %1899 = vmatpush1.msra.mxu0 %v1898
    %1900 = vmatprep.subr.mxu0 0.0
    %v1901 = vand.u32 %v60, 4294901760
    %v1902 = vsub.f32 %v60, %v1901
    %v1903 = vand.u32 %v1902, 4294901760
    %1904 = vmatpush1.msra.mxu0 %v1903
    %1905 = vmatprep.subr.mxu0 0.0
    %v1906 = vand.u32 %v59, 4294901760
    %v1907 = vsub.f32 %v59, %v1906
    %v1908 = vand.u32 %v1907, 4294901760
    %1909 = vmatpush1.msra.mxu0 %v1908
    %1910 = vmatprep.subr.mxu0 0.0
    %v1911 = vand.u32 %v58, 4294901760
    %v1912 = vsub.f32 %v58, %v1911
    %v1913 = vand.u32 %v1912, 4294901760
    %1914 = vmatpush1.msra.mxu0 %v1913
    %1915 = vmatprep.subr.mxu0 0.0
    %v1916 = vand.u32 %v57, 4294901760
    %v1917 = vsub.f32 %v57, %v1916
    %v1918 = vand.u32 %v1917, 4294901760
    %1919 = vmatpush1.msra.mxu0 %v1918
    %1920 = vmatprep.subr.mxu0 0.0
    %v1921 = vand.u32 %v56, 4294901760
    %v1922 = vsub.f32 %v56, %v1921
    %v1923 = vand.u32 %v1922, 4294901760
    %1924 = vmatpush1.msra.mxu0 %v1923
    %1925 = vmatprep.subr.mxu0 0.0
    %1926 = vmatpush2.msra.mxu0 0.0
    %1927 = vmatprep.subr.mxu0 0.0
    %1928 = vmatpush2.msra.mxu0 0.0
    %1929 = vmatprep.subr.mxu0 0.0
    %1930 = vmatpush2.msra.mxu0 0.0
    %1931 = vmatprep.subr.mxu0 0.0
    %1932 = vmatpush2.msra.mxu0 0.0
    %1933 = vmatprep.subr.mxu0 0.0
    %1934 = vmatpush2.msra.mxu0 0.0
    %1935 = vmatprep.subr.mxu0 0.0
    %1936 = vmatpush2.msra.mxu0 0.0
    %1937 = vmatprep.subr.mxu0 0.0
    %1938 = vmatpush2.msra.mxu0 0.0
    %1939 = vmatprep.subr.mxu0 0.0
    %1940 = vmatpush2.msra.mxu0 0.0
    %1941 = vmatprep.subr.mxu0 0.0
    %1942 = vmatpush2.msra.mxu0 0.0
    %1943 = vmatprep.subr.mxu0 0.0
    %1944 = vmatpush2.msra.mxu0 0.0
    %1945 = vmatprep.subr.mxu0 0.0
    %1946 = vmatpush2.msra.mxu0 0.0
    %1947 = vmatprep.subr.mxu0 0.0
    %1948 = vmatpush2.msra.mxu0 0.0
    %1949 = vmatprep.subr.mxu0 0.0
    %1950 = vmatpush2.msra.mxu0 0.0
    %1951 = vmatprep.subr.mxu0 0.0
    %1952 = vmatpush2.msra.mxu0 0.0
    %1953 = vmatprep.subr.mxu0 0.0
    %1954 = vmatpush2.msra.mxu0 0.0
    %1955 = vmatprep.subr.mxu0 0.0
    %1956 = vmatpush2.msra.mxu0 0.0
    %1957 = vmatprep.mubr.f32.mxu0 0.0
    %v1958 = vand.u32 %v1409, 4294901760
    %1959 = vmatmul.mubr.f32.gmra.mxu0 %v1958
    %v1960 = vpop.f32.mrf.mxu0
    %v1961 = vadd.f32 %v1842, %v1960
    %v1962 = vpop.f32.mrf.mxu0
    %1963 = vdwg.mxu0
    %1964 = vmatprep.subr.mxu0 0.0
    %v1965 = vand.u32 %v71, 4294901760
    %1966 = vmatpush1.msra.mxu0 %v1965
    %1967 = vmatprep.subr.mxu0 0.0
    %v1968 = vand.u32 %v70, 4294901760
    %1969 = vmatpush1.msra.mxu0 %v1968
    %1970 = vmatprep.subr.mxu0 0.0
    %v1971 = vand.u32 %v69, 4294901760
    %1972 = vmatpush1.msra.mxu0 %v1971
    %1973 = vmatprep.subr.mxu0 0.0
    %v1974 = vand.u32 %v68, 4294901760
    %1975 = vmatpush1.msra.mxu0 %v1974
    %1976 = vmatprep.subr.mxu0 0.0
    %v1977 = vand.u32 %v67, 4294901760
    %1978 = vmatpush1.msra.mxu0 %v1977
    %1979 = vmatprep.subr.mxu0 0.0
    %v1980 = vand.u32 %v66, 4294901760
    %1981 = vmatpush1.msra.mxu0 %v1980
    %1982 = vmatprep.subr.mxu0 0.0
    %v1983 = vand.u32 %v65, 4294901760
    %1984 = vmatpush1.msra.mxu0 %v1983
    %1985 = vmatprep.subr.mxu0 0.0
    %v1986 = vand.u32 %v64, 4294901760
    %1987 = vmatpush1.msra.mxu0 %v1986
    %1988 = vmatprep.subr.mxu0 0.0
    %v1989 = vand.u32 %v63, 4294901760
    %1990 = vmatpush1.msra.mxu0 %v1989
    %1991 = vmatprep.subr.mxu0 0.0
    %v1992 = vand.u32 %v62, 4294901760
    %1993 = vmatpush1.msra.mxu0 %v1992
    %1994 = vmatprep.subr.mxu0 0.0
    %v1995 = vand.u32 %v61, 4294901760
    %1996 = vmatpush1.msra.mxu0 %v1995
    %1997 = vmatprep.subr.mxu0 0.0
    %v1998 = vand.u32 %v60, 4294901760
    %1999 = vmatpush1.msra.mxu0 %v1998
    %2000 = vmatprep.subr.mxu0 0.0
    %v2001 = vand.u32 %v59, 4294901760
    %2002 = vmatpush1.msra.mxu0 %v2001
    %2003 = vmatprep.subr.mxu0 0.0
    %v2004 = vand.u32 %v58, 4294901760
    %2005 = vmatpush1.msra.mxu0 %v2004
    %2006 = vmatprep.subr.mxu0 0.0
    %v2007 = vand.u32 %v57, 4294901760
    %2008 = vmatpush1.msra.mxu0 %v2007
    %2009 = vmatprep.subr.mxu0 0.0
    %v2010 = vand.u32 %v56, 4294901760
    %2011 = vmatpush1.msra.mxu0 %v2010
    %2012 = vmatprep.subr.mxu0 0.0
    %2013 = vmatpush2.msra.mxu0 0.0
    %2014 = vmatprep.subr.mxu0 0.0
    %2015 = vmatpush2.msra.mxu0 0.0
    %2016 = vmatprep.subr.mxu0 0.0
    %2017 = vmatpush2.msra.mxu0 0.0
    %2018 = vmatprep.subr.mxu0 0.0
    %2019 = vmatpush2.msra.mxu0 0.0
    %2020 = vmatprep.subr.mxu0 0.0
    %2021 = vmatpush2.msra.mxu0 0.0
    %2022 = vmatprep.subr.mxu0 0.0
    %2023 = vmatpush2.msra.mxu0 0.0
    %2024 = vmatprep.subr.mxu0 0.0
    %2025 = vmatpush2.msra.mxu0 0.0
    %2026 = vmatprep.subr.mxu0 0.0
    %2027 = vmatpush2.msra.mxu0 0.0
    %2028 = vmatprep.subr.mxu0 0.0
    %2029 = vmatpush2.msra.mxu0 0.0
    %2030 = vmatprep.subr.mxu0 0.0
    %2031 = vmatpush2.msra.mxu0 0.0
    %2032 = vmatprep.subr.mxu0 0.0
    %2033 = vmatpush2.msra.mxu0 0.0
    %2034 = vmatprep.subr.mxu0 0.0
    %2035 = vmatpush2.msra.mxu0 0.0
    %2036 = vmatprep.subr.mxu0 0.0
    %2037 = vmatpush2.msra.mxu0 0.0
    %2038 = vmatprep.subr.mxu0 0.0
    %2039 = vmatpush2.msra.mxu0 0.0
    %2040 = vmatprep.subr.mxu0 0.0
    %2041 = vmatpush2.msra.mxu0 0.0
    %2042 = vmatprep.subr.mxu0 0.0
    %2043 = vmatpush2.msra.mxu0 0.0
    %2044 = vmatprep.mubr.f32.mxu0 0.0
    %v2045 = vand.u32 %v1409, 4294901760
    %2046 = vmatmul.mubr.f32.gmra.mxu0 %v2045
    %v2047 = vpop.f32.mrf.mxu0
    %v2048 = vadd.f32 %v1961, %v2047
    %v2049 = vpop.f32.mrf.mxu0
    %2050 = vdwg.mxu0
    %v2051 = vmax.f32 %v2048, 1e-37
    %v2052 = vlog2.pop %v2051
    %v2053 = vmul.f32 %v2052, 0.6931472
    %v2054 = vadd.f32 %v2053, %v1406
    %v2055 = vadd.f32 %v2054, %v1404
    %vm2056 = vcmp.gt.f32.partialorder %v1404, 0.5
    %v2057 = vsel %vm2056, 1, 0
    %2058 = vset.pattern.permute.xlu0 5
    %2059 = vperm.xlu0 %2058, %v2057
    %v2060 = vpop.permute.xlu0 %2059
    %vm2061 = vcmp.eq.s32.totalorder %v2060, 1
    %v2062 = vsel %vm2061, %v2055, %v1402
    %s2063 = scalar_lea.vmem [#allocation3], 24
    %v2064 = vld [vmem:[%s2063] sm:$0xff]
    %2065 = vmax.xlane.f32.xlu0 %v2062
    %v2066 = vpop.xlane.xlu0 %2065
    %v2067 = vsub.f32 %v2062, %v2066
    %v2068 = vmul.f32 %v2067, 1.442695
    %v2069 = vpow.pop %v2068
    %2070 = vmatprep.subr.mxu0 0.0
    %v2071 = vand.u32 %v71, 4294901760
    %2072 = vmatpush1.msra.mxu0 %v2071
    %2073 = vmatprep.subr.mxu0 0.0
    %v2074 = vand.u32 %v70, 4294901760
    %2075 = vmatpush1.msra.mxu0 %v2074
    %2076 = vmatprep.subr.mxu0 0.0
    %v2077 = vand.u32 %v69, 4294901760
    %2078 = vmatpush1.msra.mxu0 %v2077
    %2079 = vmatprep.subr.mxu0 0.0
    %v2080 = vand.u32 %v68, 4294901760
    %2081 = vmatpush1.msra.mxu0 %v2080
    %2082 = vmatprep.subr.mxu0 0.0
    %v2083 = vand.u32 %v67, 4294901760
    %2084 = vmatpush1.msra.mxu0 %v2083
    %2085 = vmatprep.subr.mxu0 0.0
    %v2086 = vand.u32 %v66, 4294901760
    %2087 = vmatpush1.msra.mxu0 %v2086
    %2088 = vmatprep.subr.mxu0 0.0
    %v2089 = vand.u32 %v65, 4294901760
    %2090 = vmatpush1.msra.mxu0 %v2089
    %2091 = vmatprep.subr.mxu0 0.0
    %v2092 = vand.u32 %v64, 4294901760
    %2093 = vmatpush1.msra.mxu0 %v2092
    %2094 = vmatprep.subr.mxu0 0.0
    %v2095 = vand.u32 %v63, 4294901760
    %2096 = vmatpush1.msra.mxu0 %v2095
    %2097 = vmatprep.subr.mxu0 0.0
    %v2098 = vand.u32 %v62, 4294901760
    %2099 = vmatpush1.msra.mxu0 %v2098
    %2100 = vmatprep.subr.mxu0 0.0
    %v2101 = vand.u32 %v61, 4294901760
    %2102 = vmatpush1.msra.mxu0 %v2101
    %2103 = vmatprep.subr.mxu0 0.0
    %v2104 = vand.u32 %v60, 4294901760
    %2105 = vmatpush1.msra.mxu0 %v2104
    %2106 = vmatprep.subr.mxu0 0.0
    %v2107 = vand.u32 %v59, 4294901760
    %2108 = vmatpush1.msra.mxu0 %v2107
    %2109 = vmatprep.subr.mxu0 0.0
    %v2110 = vand.u32 %v58, 4294901760
    %2111 = vmatpush1.msra.mxu0 %v2110
    %2112 = vmatprep.subr.mxu0 0.0
    %v2113 = vand.u32 %v57, 4294901760
    %2114 = vmatpush1.msra.mxu0 %v2113
    %2115 = vmatprep.subr.mxu0 0.0
    %v2116 = vand.u32 %v56, 4294901760
    %2117 = vmatpush1.msra.mxu0 %v2116
    %2118 = vmatprep.subr.mxu0 0.0
    %2119 = vmatpush2.msra.mxu0 0.0
    %2120 = vmatprep.subr.mxu0 0.0
    %2121 = vmatpush2.msra.mxu0 0.0
    %2122 = vmatprep.subr.mxu0 0.0
    %2123 = vmatpush2.msra.mxu0 0.0
    %2124 = vmatprep.subr.mxu0 0.0
    %2125 = vmatpush2.msra.mxu0 0.0
    %2126 = vmatprep.subr.mxu0 0.0
    %2127 = vmatpush2.msra.mxu0 0.0
    %2128 = vmatprep.subr.mxu0 0.0
    %2129 = vmatpush2.msra.mxu0 0.0
    %2130 = vmatprep.subr.mxu0 0.0
    %2131 = vmatpush2.msra.mxu0 0.0
    %2132 = vmatprep.subr.mxu0 0.0
    %2133 = vmatpush2.msra.mxu0 0.0
    %2134 = vmatprep.subr.mxu0 0.0
    %2135 = vmatpush2.msra.mxu0 0.0
    %2136 = vmatprep.subr.mxu0 0.0
    %2137 = vmatpush2.msra.mxu0 0.0
    %2138 = vmatprep.subr.mxu0 0.0
    %2139 = vmatpush2.msra.mxu0 0.0
    %2140 = vmatprep.subr.mxu0 0.0
    %2141 = vmatpush2.msra.mxu0 0.0
    %2142 = vmatprep.subr.mxu0 0.0
    %2143 = vmatpush2.msra.mxu0 0.0
    %2144 = vmatprep.subr.mxu0 0.0
    %2145 = vmatpush2.msra.mxu0 0.0
    %2146 = vmatprep.subr.mxu0 0.0
    %2147 = vmatpush2.msra.mxu0 0.0
    %2148 = vmatprep.subr.mxu0 0.0
    %2149 = vmatpush2.msra.mxu0 0.0
    %2150 = vmatprep.mubr.f32.mxu0 0.0
    %v2151 = vand.u32 %v2069, 4294901760
    %v2152 = vsub.f32 %v2069, %v2151
    %v2153 = vand.u32 %v2152, 4294901760
    %v2154 = vsub.f32 %v2152, %v2153
    %v2155 = vand.u32 %v2154, 4294901760
    %2156 = vmatmul.mubr.f32.gmra.mxu0 %v2155
    %v2157 = vpop.f32.mrf.mxu0
    %v2158 = vadd.f32 0.0, %v2157
    %v2159 = vpop.f32.mrf.mxu0
    %2160 = vdwg.mxu0
    %2161 = vmatprep.subr.mxu0 0.0
    %v2162 = vand.u32 %v71, 4294901760
    %v2163 = vsub.f32 %v71, %v2162
    %v2164 = vand.u32 %v2163, 4294901760
    %v2165 = vsub.f32 %v2163, %v2164
    %v2166 = vand.u32 %v2165, 4294901760
    %2167 = vmatpush1.msra.mxu0 %v2166
    %2168 = vmatprep.subr.mxu0 0.0
    %v2169 = vand.u32 %v70, 4294901760
    %v2170 = vsub.f32 %v70, %v2169
    %v2171 = vand.u32 %v2170, 4294901760
    %v2172 = vsub.f32 %v2170, %v2171
    %v2173 = vand.u32 %v2172, 4294901760
    %2174 = vmatpush1.msra.mxu0 %v2173
    %2175 = vmatprep.subr.mxu0 0.0
    %v2176 = vand.u32 %v69, 4294901760
    %v2177 = vsub.f32 %v69, %v2176
    %v2178 = vand.u32 %v2177, 4294901760
    %v2179 = vsub.f32 %v2177, %v2178
    %v2180 = vand.u32 %v2179, 4294901760
    %2181 = vmatpush1.msra.mxu0 %v2180
    %2182 = vmatprep.subr.mxu0 0.0
    %v2183 = vand.u32 %v68, 4294901760
    %v2184 = vsub.f32 %v68, %v2183
    %v2185 = vand.u32 %v2184, 4294901760
    %v2186 = vsub.f32 %v2184, %v2185
    %v2187 = vand.u32 %v2186, 4294901760
    %2188 = vmatpush1.msra.mxu0 %v2187
    %2189 = vmatprep.subr.mxu0 0.0
    %v2190 = vand.u32 %v67, 4294901760
    %v2191 = vsub.f32 %v67, %v2190
    %v2192 = vand.u32 %v2191, 4294901760
    %v2193 = vsub.f32 %v2191, %v2192
    %v2194 = vand.u32 %v2193, 4294901760
    %2195 = vmatpush1.msra.mxu0 %v2194
    %2196 = vmatprep.subr.mxu0 0.0
    %v2197 = vand.u32 %v66, 4294901760
    %v2198 = vsub.f32 %v66, %v2197
    %v2199 = vand.u32 %v2198, 4294901760
    %v2200 = vsub.f32 %v2198, %v2199
    %v2201 = vand.u32 %v2200, 4294901760
    %2202 = vmatpush1.msra.mxu0 %v2201
    %2203 = vmatprep.subr.mxu0 0.0
    %v2204 = vand.u32 %v65, 4294901760
    %v2205 = vsub.f32 %v65, %v2204
    %v2206 = vand.u32 %v2205, 4294901760
    %v2207 = vsub.f32 %v2205, %v2206
    %v2208 = vand.u32 %v2207, 4294901760
    %2209 = vmatpush1.msra.mxu0 %v2208
    %2210 = vmatprep.subr.mxu0 0.0
    %v2211 = vand.u32 %v64, 4294901760
    %v2212 = vsub.f32 %v64, %v2211
    %v2213 = vand.u32 %v2212, 4294901760
    %v2214 = vsub.f32 %v2212, %v2213
    %v2215 = vand.u32 %v2214, 4294901760
    %2216 = vmatpush1.msra.mxu0 %v2215
    %2217 = vmatprep.subr.mxu0 0.0
    %v2218 = vand.u32 %v63, 4294901760
    %v2219 = vsub.f32 %v63, %v2218
    %v2220 = vand.u32 %v2219, 4294901760
    %v2221 = vsub.f32 %v2219, %v2220
    %v2222 = vand.u32 %v2221, 4294901760
    %2223 = vmatpush1.msra.mxu0 %v2222
    %2224 = vmatprep.subr.mxu0 0.0
    %v2225 = vand.u32 %v62, 4294901760
    %v2226 = vsub.f32 %v62, %v2225
    %v2227 = vand.u32 %v2226, 4294901760
    %v2228 = vsub.f32 %v2226, %v2227
    %v2229 = vand.u32 %v2228, 4294901760
    %2230 = vmatpush1.msra.mxu0 %v2229
    %2231 = vmatprep.subr.mxu0 0.0
    %v2232 = vand.u32 %v61, 4294901760
    %v2233 = vsub.f32 %v61, %v2232
    %v2234 = vand.u32 %v2233, 4294901760
    %v2235 = vsub.f32 %v2233, %v2234
    %v2236 = vand.u32 %v2235, 4294901760
    %2237 = vmatpush1.msra.mxu0 %v2236
    %2238 = vmatprep.subr.mxu0 0.0
    %v2239 = vand.u32 %v60, 4294901760
    %v2240 = vsub.f32 %v60, %v2239
    %v2241 = vand.u32 %v2240, 4294901760
    %v2242 = vsub.f32 %v2240, %v2241
    %v2243 = vand.u32 %v2242, 4294901760
    %2244 = vmatpush1.msra.mxu0 %v2243
    %2245 = vmatprep.subr.mxu0 0.0
    %v2246 = vand.u32 %v59, 4294901760
    %v2247 = vsub.f32 %v59, %v2246
    %v2248 = vand.u32 %v2247, 4294901760
    %v2249 = vsub.f32 %v2247, %v2248
    %v2250 = vand.u32 %v2249, 4294901760
    %2251 = vmatpush1.msra.mxu0 %v2250
    %2252 = vmatprep.subr.mxu0 0.0
    %v2253 = vand.u32 %v58, 4294901760
    %v2254 = vsub.f32 %v58, %v2253
    %v2255 = vand.u32 %v2254, 4294901760
    %v2256 = vsub.f32 %v2254, %v2255
    %v2257 = vand.u32 %v2256, 4294901760
    %2258 = vmatpush1.msra.mxu0 %v2257
    %2259 = vmatprep.subr.mxu0 0.0
    %v2260 = vand.u32 %v57, 4294901760
    %v2261 = vsub.f32 %v57, %v2260
    %v2262 = vand.u32 %v2261, 4294901760
    %v2263 = vsub.f32 %v2261, %v2262
    %v2264 = vand.u32 %v2263, 4294901760
    %2265 = vmatpush1.msra.mxu0 %v2264
    %2266 = vmatprep.subr.mxu0 0.0
    %v2267 = vand.u32 %v56, 4294901760
    %v2268 = vsub.f32 %v56, %v2267
    %v2269 = vand.u32 %v2268, 4294901760
    %v2270 = vsub.f32 %v2268, %v2269
    %v2271 = vand.u32 %v2270, 4294901760
    %2272 = vmatpush1.msra.mxu0 %v2271
    %2273 = vmatprep.subr.mxu0 0.0
    %2274 = vmatpush2.msra.mxu0 0.0
    %2275 = vmatprep.subr.mxu0 0.0
    %2276 = vmatpush2.msra.mxu0 0.0
    %2277 = vmatprep.subr.mxu0 0.0
    %2278 = vmatpush2.msra.mxu0 0.0
    %2279 = vmatprep.subr.mxu0 0.0
    %2280 = vmatpush2.msra.mxu0 0.0
    %2281 = vmatprep.subr.mxu0 0.0
    %2282 = vmatpush2.msra.mxu0 0.0
    %2283 = vmatprep.subr.mxu0 0.0
    %2284 = vmatpush2.msra.mxu0 0.0
    %2285 = vmatprep.subr.mxu0 0.0
    %2286 = vmatpush2.msra.mxu0 0.0
    %2287 = vmatprep.subr.mxu0 0.0
    %2288 = vmatpush2.msra.mxu0 0.0
    %2289 = vmatprep.subr.mxu0 0.0
    %2290 = vmatpush2.msra.mxu0 0.0
    %2291 = vmatprep.subr.mxu0 0.0
    %2292 = vmatpush2.msra.mxu0 0.0
    %2293 = vmatprep.subr.mxu0 0.0
    %2294 = vmatpush2.msra.mxu0 0.0
    %2295 = vmatprep.subr.mxu0 0.0
    %2296 = vmatpush2.msra.mxu0 0.0
    %2297 = vmatprep.subr.mxu0 0.0
    %2298 = vmatpush2.msra.mxu0 0.0
    %2299 = vmatprep.subr.mxu0 0.0
    %2300 = vmatpush2.msra.mxu0 0.0
    %2301 = vmatprep.subr.mxu0 0.0
    %2302 = vmatpush2.msra.mxu0 0.0
    %2303 = vmatprep.subr.mxu0 0.0
    %2304 = vmatpush2.msra.mxu0 0.0
    %2305 = vmatprep.mubr.f32.mxu0 0.0
    %v2306 = vand.u32 %v2069, 4294901760
    %2307 = vmatmul.mubr.f32.gmra.mxu0 %v2306
    %v2308 = vpop.f32.mrf.mxu0
    %v2309 = vadd.f32 %v2158, %v2308
    %v2310 = vpop.f32.mrf.mxu0
    %2311 = vdwg.mxu0
    %2312 = vmatprep.subr.mxu0 0.0
    %v2313 = vand.u32 %v71, 4294901760
    %v2314 = vsub.f32 %v71, %v2313
    %2315 = vmatpush1.msra.mxu0 %v2314
    %2316 = vmatprep.subr.mxu0 0.0
    %v2317 = vand.u32 %v70, 4294901760
    %v2318 = vsub.f32 %v70, %v2317
    %2319 = vmatpush1.msra.mxu0 %v2318
    %2320 = vmatprep.subr.mxu0 0.0
    %v2321 = vand.u32 %v69, 4294901760
    %v2322 = vsub.f32 %v69, %v2321
    %2323 = vmatpush1.msra.mxu0 %v2322
    %2324 = vmatprep.subr.mxu0 0.0
    %v2325 = vand.u32 %v68, 4294901760
    %v2326 = vsub.f32 %v68, %v2325
    %2327 = vmatpush1.msra.mxu0 %v2326
    %2328 = vmatprep.subr.mxu0 0.0
    %v2329 = vand.u32 %v67, 4294901760
    %v2330 = vsub.f32 %v67, %v2329
    %2331 = vmatpush1.msra.mxu0 %v2330
    %2332 = vmatprep.subr.mxu0 0.0
    %v2333 = vand.u32 %v66, 4294901760
    %v2334 = vsub.f32 %v66, %v2333
    %2335 = vmatpush1.msra.mxu0 %v2334
    %2336 = vmatprep.subr.mxu0 0.0
    %v2337 = vand.u32 %v65, 4294901760
    %v2338 = vsub.f32 %v65, %v2337
    %2339 = vmatpush1.msra.mxu0 %v2338
    %2340 = vmatprep.subr.mxu0 0.0
    %v2341 = vand.u32 %v64, 4294901760
    %v2342 = vsub.f32 %v64, %v2341
    %2343 = vmatpush1.msra.mxu0 %v2342
    %2344 = vmatprep.subr.mxu0 0.0
    %v2345 = vand.u32 %v63, 4294901760
    %v2346 = vsub.f32 %v63, %v2345
    %2347 = vmatpush1.msra.mxu0 %v2346
    %2348 = vmatprep.subr.mxu0 0.0
    %v2349 = vand.u32 %v62, 4294901760
    %v2350 = vsub.f32 %v62, %v2349
    %2351 = vmatpush1.msra.mxu0 %v2350
    %2352 = vmatprep.subr.mxu0 0.0
    %v2353 = vand.u32 %v61, 4294901760
    %v2354 = vsub.f32 %v61, %v2353
    %2355 = vmatpush1.msra.mxu0 %v2354
    %2356 = vmatprep.subr.mxu0 0.0
    %v2357 = vand.u32 %v60, 4294901760
    %v2358 = vsub.f32 %v60, %v2357
    %2359 = vmatpush1.msra.mxu0 %v2358
    %2360 = vmatprep.subr.mxu0 0.0
    %v2361 = vand.u32 %v59, 4294901760
    %v2362 = vsub.f32 %v59, %v2361
    %2363 = vmatpush1.msra.mxu0 %v2362
    %2364 = vmatprep.subr.mxu0 0.0
    %v2365 = vand.u32 %v58, 4294901760
    %v2366 = vsub.f32 %v58, %v2365
    %2367 = vmatpush1.msra.mxu0 %v2366
    %2368 = vmatprep.subr.mxu0 0.0
    %v2369 = vand.u32 %v57, 4294901760
    %v2370 = vsub.f32 %v57, %v2369
    %2371 = vmatpush1.msra.mxu0 %v2370
    %2372 = vmatprep.subr.mxu0 0.0
    %v2373 = vand.u32 %v56, 4294901760
    %v2374 = vsub.f32 %v56, %v2373
    %2375 = vmatpush1.msra.mxu0 %v2374
    %2376 = vmatprep.subr.mxu0 0.0
    %2377 = vmatpush2.msra.mxu0 0.0
    %2378 = vmatprep.subr.mxu0 0.0
    %2379 = vmatpush2.msra.mxu0 0.0
    %2380 = vmatprep.subr.mxu0 0.0
    %2381 = vmatpush2.msra.mxu0 0.0
    %2382 = vmatprep.subr.mxu0 0.0
    %2383 = vmatpush2.msra.mxu0 0.0
    %2384 = vmatprep.subr.mxu0 0.0
    %2385 = vmatpush2.msra.mxu0 0.0
    %2386 = vmatprep.subr.mxu0 0.0
    %2387 = vmatpush2.msra.mxu0 0.0
    %2388 = vmatprep.subr.mxu0 0.0
    %2389 = vmatpush2.msra.mxu0 0.0
    %2390 = vmatprep.subr.mxu0 0.0
    %2391 = vmatpush2.msra.mxu0 0.0
    %2392 = vmatprep.subr.mxu0 0.0
    %2393 = vmatpush2.msra.mxu0 0.0
    %2394 = vmatprep.subr.mxu0 0.0
    %2395 = vmatpush2.msra.mxu0 0.0
    %2396 = vmatprep.subr.mxu0 0.0
    %2397 = vmatpush2.msra.mxu0 0.0
    %2398 = vmatprep.subr.mxu0 0.0
    %2399 = vmatpush2.msra.mxu0 0.0
    %2400 = vmatprep.subr.mxu0 0.0
    %2401 = vmatpush2.msra.mxu0 0.0
    %2402 = vmatprep.subr.mxu0 0.0
    %2403 = vmatpush2.msra.mxu0 0.0
    %2404 = vmatprep.subr.mxu0 0.0
    %2405 = vmatpush2.msra.mxu0 0.0
    %2406 = vmatprep.subr.mxu0 0.0
    %2407 = vmatpush2.msra.mxu0 0.0
    %2408 = vmatprep.mubr.f32.mxu0 0.0
    %v2409 = vand.u32 %v2069, 4294901760
    %v2410 = vsub.f32 %v2069, %v2409
    %2411 = vmatmul.mubr.f32.gmra.mxu0 %v2410
    %v2412 = vpop.f32.mrf.mxu0
    %v2413 = vadd.f32 %v2309, %v2412
    %v2414 = vpop.f32.mrf.mxu0
    %2415 = vdwg.mxu0
    %2416 = vmatprep.subr.mxu0 0.0
    %v2417 = vand.u32 %v71, 4294901760
    %2418 = vmatpush1.msra.mxu0 %v2417
    %2419 = vmatprep.subr.mxu0 0.0
    %v2420 = vand.u32 %v70, 4294901760
    %2421 = vmatpush1.msra.mxu0 %v2420
    %2422 = vmatprep.subr.mxu0 0.0
    %v2423 = vand.u32 %v69, 4294901760
    %2424 = vmatpush1.msra.mxu0 %v2423
    %2425 = vmatprep.subr.mxu0 0.0
    %v2426 = vand.u32 %v68, 4294901760
    %2427 = vmatpush1.msra.mxu0 %v2426
    %2428 = vmatprep.subr.mxu0 0.0
    %v2429 = vand.u32 %v67, 4294901760
    %2430 = vmatpush1.msra.mxu0 %v2429
    %2431 = vmatprep.subr.mxu0 0.0
    %v2432 = vand.u32 %v66, 4294901760
    %2433 = vmatpush1.msra.mxu0 %v2432
    %2434 = vmatprep.subr.mxu0 0.0
    %v2435 = vand.u32 %v65, 4294901760
    %2436 = vmatpush1.msra.mxu0 %v2435
    %2437 = vmatprep.subr.mxu0 0.0
    %v2438 = vand.u32 %v64, 4294901760
    %2439 = vmatpush1.msra.mxu0 %v2438
    %2440 = vmatprep.subr.mxu0 0.0
    %v2441 = vand.u32 %v63, 4294901760
    %2442 = vmatpush1.msra.mxu0 %v2441
    %2443 = vmatprep.subr.mxu0 0.0
    %v2444 = vand.u32 %v62, 4294901760
    %2445 = vmatpush1.msra.mxu0 %v2444
    %2446 = vmatprep.subr.mxu0 0.0
    %v2447 = vand.u32 %v61, 4294901760
    %2448 = vmatpush1.msra.mxu0 %v2447
    %2449 = vmatprep.subr.mxu0 0.0
    %v2450 = vand.u32 %v60, 4294901760
    %2451 = vmatpush1.msra.mxu0 %v2450
    %2452 = vmatprep.subr.mxu0 0.0
    %v2453 = vand.u32 %v59, 4294901760
    %2454 = vmatpush1.msra.mxu0 %v2453
    %2455 = vmatprep.subr.mxu0 0.0
    %v2456 = vand.u32 %v58, 4294901760
    %2457 = vmatpush1.msra.mxu0 %v2456
    %2458 = vmatprep.subr.mxu0 0.0
    %v2459 = vand.u32 %v57, 4294901760
    %2460 = vmatpush1.msra.mxu0 %v2459
    %2461 = vmatprep.subr.mxu0 0.0
    %v2462 = vand.u32 %v56, 4294901760
    %2463 = vmatpush1.msra.mxu0 %v2462
    %2464 = vmatprep.subr.mxu0 0.0
    %2465 = vmatpush2.msra.mxu0 0.0
    %2466 = vmatprep.subr.mxu0 0.0
    %2467 = vmatpush2.msra.mxu0 0.0
    %2468 = vmatprep.subr.mxu0 0.0
    %2469 = vmatpush2.msra.mxu0 0.0
    %2470 = vmatprep.subr.mxu0 0.0
    %2471 = vmatpush2.msra.mxu0 0.0
    %2472 = vmatprep.subr.mxu0 0.0
    %2473 = vmatpush2.msra.mxu0 0.0
    %2474 = vmatprep.subr.mxu0 0.0
    %2475 = vmatpush2.msra.mxu0 0.0
    %2476 = vmatprep.subr.mxu0 0.0
    %2477 = vmatpush2.msra.mxu0 0.0
    %2478 = vmatprep.subr.mxu0 0.0
    %2479 = vmatpush2.msra.mxu0 0.0
    %2480 = vmatprep.subr.mxu0 0.0
    %2481 = vmatpush2.msra.mxu0 0.0
    %2482 = vmatprep.subr.mxu0 0.0
    %2483 = vmatpush2.msra.mxu0 0.0
    %2484 = vmatprep.subr.mxu0 0.0
    %2485 = vmatpush2.msra.mxu0 0.0
    %2486 = vmatprep.subr.mxu0 0.0
    %2487 = vmatpush2.msra.mxu0 0.0
    %2488 = vmatprep.subr.mxu0 0.0
    %2489 = vmatpush2.msra.mxu0 0.0
    %2490 = vmatprep.subr.mxu0 0.0
    %2491 = vmatpush2.msra.mxu0 0.0
    %2492 = vmatprep.subr.mxu0 0.0
    %2493 = vmatpush2.msra.mxu0 0.0
    %2494 = vmatprep.subr.mxu0 0.0
    %2495 = vmatpush2.msra.mxu0 0.0
    %2496 = vmatprep.mubr.f32.mxu0 0.0
    %v2497 = vand.u32 %v2069, 4294901760
    %v2498 = vsub.f32 %v2069, %v2497
    %v2499 = vand.u32 %v2498, 4294901760
    %2500 = vmatmul.mubr.f32.gmra.mxu0 %v2499
    %v2501 = vpop.f32.mrf.mxu0
    %v2502 = vadd.f32 %v2413, %v2501
    %v2503 = vpop.f32.mrf.mxu0
    %2504 = vdwg.mxu0
    %2505 = vmatprep.subr.mxu0 0.0
    %v2506 = vand.u32 %v71, 4294901760
    %v2507 = vsub.f32 %v71, %v2506
    %v2508 = vand.u32 %v2507, 4294901760
    %2509 = vmatpush1.msra.mxu0 %v2508
    %2510 = vmatprep.subr.mxu0 0.0
    %v2511 = vand.u32 %v70, 4294901760
    %v2512 = vsub.f32 %v70, %v2511
    %v2513 = vand.u32 %v2512, 4294901760
    %2514 = vmatpush1.msra.mxu0 %v2513
    %2515 = vmatprep.subr.mxu0 0.0
    %v2516 = vand.u32 %v69, 4294901760
    %v2517 = vsub.f32 %v69, %v2516
    %v2518 = vand.u32 %v2517, 4294901760
    %2519 = vmatpush1.msra.mxu0 %v2518
    %2520 = vmatprep.subr.mxu0 0.0
    %v2521 = vand.u32 %v68, 4294901760
    %v2522 = vsub.f32 %v68, %v2521
    %v2523 = vand.u32 %v2522, 4294901760
    %2524 = vmatpush1.msra.mxu0 %v2523
    %2525 = vmatprep.subr.mxu0 0.0
    %v2526 = vand.u32 %v67, 4294901760
    %v2527 = vsub.f32 %v67, %v2526
    %v2528 = vand.u32 %v2527, 4294901760
    %2529 = vmatpush1.msra.mxu0 %v2528
    %2530 = vmatprep.subr.mxu0 0.0
    %v2531 = vand.u32 %v66, 4294901760
    %v2532 = vsub.f32 %v66, %v2531
    %v2533 = vand.u32 %v2532, 4294901760
    %2534 = vmatpush1.msra.mxu0 %v2533
    %2535 = vmatprep.subr.mxu0 0.0
    %v2536 = vand.u32 %v65, 4294901760
    %v2537 = vsub.f32 %v65, %v2536
    %v2538 = vand.u32 %v2537, 4294901760
    %2539 = vmatpush1.msra.mxu0 %v2538
    %2540 = vmatprep.subr.mxu0 0.0
    %v2541 = vand.u32 %v64, 4294901760
    %v2542 = vsub.f32 %v64, %v2541
    %v2543 = vand.u32 %v2542, 4294901760
    %2544 = vmatpush1.msra.mxu0 %v2543
    %2545 = vmatprep.subr.mxu0 0.0
    %v2546 = vand.u32 %v63, 4294901760
    %v2547 = vsub.f32 %v63, %v2546
    %v2548 = vand.u32 %v2547, 4294901760
    %2549 = vmatpush1.msra.mxu0 %v2548
    %2550 = vmatprep.subr.mxu0 0.0
    %v2551 = vand.u32 %v62, 4294901760
    %v2552 = vsub.f32 %v62, %v2551
    %v2553 = vand.u32 %v2552, 4294901760
    %2554 = vmatpush1.msra.mxu0 %v2553
    %2555 = vmatprep.subr.mxu0 0.0
    %v2556 = vand.u32 %v61, 4294901760
    %v2557 = vsub.f32 %v61, %v2556
    %v2558 = vand.u32 %v2557, 4294901760
    %2559 = vmatpush1.msra.mxu0 %v2558
    %2560 = vmatprep.subr.mxu0 0.0
    %v2561 = vand.u32 %v60, 4294901760
    %v2562 = vsub.f32 %v60, %v2561
    %v2563 = vand.u32 %v2562, 4294901760
    %2564 = vmatpush1.msra.mxu0 %v2563
    %2565 = vmatprep.subr.mxu0 0.0
    %v2566 = vand.u32 %v59, 4294901760
    %v2567 = vsub.f32 %v59, %v2566
    %v2568 = vand.u32 %v2567, 4294901760
    %2569 = vmatpush1.msra.mxu0 %v2568
    %2570 = vmatprep.subr.mxu0 0.0
    %v2571 = vand.u32 %v58, 4294901760
    %v2572 = vsub.f32 %v58, %v2571
    %v2573 = vand.u32 %v2572, 4294901760
    %2574 = vmatpush1.msra.mxu0 %v2573
    %2575 = vmatprep.subr.mxu0 0.0
    %v2576 = vand.u32 %v57, 4294901760
    %v2577 = vsub.f32 %v57, %v2576
    %v2578 = vand.u32 %v2577, 4294901760
    %2579 = vmatpush1.msra.mxu0 %v2578
    %2580 = vmatprep.subr.mxu0 0.0
    %v2581 = vand.u32 %v56, 4294901760
    %v2582 = vsub.f32 %v56, %v2581
    %v2583 = vand.u32 %v2582, 4294901760
    %2584 = vmatpush1.msra.mxu0 %v2583
    %2585 = vmatprep.subr.mxu0 0.0
    %2586 = vmatpush2.msra.mxu0 0.0
    %2587 = vmatprep.subr.mxu0 0.0
    %2588 = vmatpush2.msra.mxu0 0.0
    %2589 = vmatprep.subr.mxu0 0.0
    %2590 = vmatpush2.msra.mxu0 0.0
    %2591 = vmatprep.subr.mxu0 0.0
    %2592 = vmatpush2.msra.mxu0 0.0
    %2593 = vmatprep.subr.mxu0 0.0
    %2594 = vmatpush2.msra.mxu0 0.0
    %2595 = vmatprep.subr.mxu0 0.0
    %2596 = vmatpush2.msra.mxu0 0.0
    %2597 = vmatprep.subr.mxu0 0.0
    %2598 = vmatpush2.msra.mxu0 0.0
    %2599 = vmatprep.subr.mxu0 0.0
    %2600 = vmatpush2.msra.mxu0 0.0
    %2601 = vmatprep.subr.mxu0 0.0
    %2602 = vmatpush2.msra.mxu0 0.0
    %2603 = vmatprep.subr.mxu0 0.0
    %2604 = vmatpush2.msra.mxu0 0.0
    %2605 = vmatprep.subr.mxu0 0.0
    %2606 = vmatpush2.msra.mxu0 0.0
    %2607 = vmatprep.subr.mxu0 0.0
    %2608 = vmatpush2.msra.mxu0 0.0
    %2609 = vmatprep.subr.mxu0 0.0
    %2610 = vmatpush2.msra.mxu0 0.0
    %2611 = vmatprep.subr.mxu0 0.0
    %2612 = vmatpush2.msra.mxu0 0.0
    %2613 = vmatprep.subr.mxu0 0.0
    %2614 = vmatpush2.msra.mxu0 0.0
    %2615 = vmatprep.subr.mxu0 0.0
    %2616 = vmatpush2.msra.mxu0 0.0
    %2617 = vmatprep.mubr.f32.mxu0 0.0
    %v2618 = vand.u32 %v2069, 4294901760
    %2619 = vmatmul.mubr.f32.gmra.mxu0 %v2618
    %v2620 = vpop.f32.mrf.mxu0
    %v2621 = vadd.f32 %v2502, %v2620
    %v2622 = vpop.f32.mrf.mxu0
    %2623 = vdwg.mxu0
    %2624 = vmatprep.subr.mxu0 0.0
    %v2625 = vand.u32 %v71, 4294901760
    %2626 = vmatpush1.msra.mxu0 %v2625
    %2627 = vmatprep.subr.mxu0 0.0
    %v2628 = vand.u32 %v70, 4294901760
    %2629 = vmatpush1.msra.mxu0 %v2628
    %2630 = vmatprep.subr.mxu0 0.0
    %v2631 = vand.u32 %v69, 4294901760
    %2632 = vmatpush1.msra.mxu0 %v2631
    %2633 = vmatprep.subr.mxu0 0.0
    %v2634 = vand.u32 %v68, 4294901760
    %2635 = vmatpush1.msra.mxu0 %v2634
    %2636 = vmatprep.subr.mxu0 0.0
    %v2637 = vand.u32 %v67, 4294901760
    %2638 = vmatpush1.msra.mxu0 %v2637
    %2639 = vmatprep.subr.mxu0 0.0
    %v2640 = vand.u32 %v66, 4294901760
    %2641 = vmatpush1.msra.mxu0 %v2640
    %2642 = vmatprep.subr.mxu0 0.0
    %v2643 = vand.u32 %v65, 4294901760
    %2644 = vmatpush1.msra.mxu0 %v2643
    %2645 = vmatprep.subr.mxu0 0.0
    %v2646 = vand.u32 %v64, 4294901760
    %2647 = vmatpush1.msra.mxu0 %v2646
    %2648 = vmatprep.subr.mxu0 0.0
    %v2649 = vand.u32 %v63, 4294901760
    %2650 = vmatpush1.msra.mxu0 %v2649
    %2651 = vmatprep.subr.mxu0 0.0
    %v2652 = vand.u32 %v62, 4294901760
    %2653 = vmatpush1.msra.mxu0 %v2652
    %2654 = vmatprep.subr.mxu0 0.0
    %v2655 = vand.u32 %v61, 4294901760
    %2656 = vmatpush1.msra.mxu0 %v2655
    %2657 = vmatprep.subr.mxu0 0.0
    %v2658 = vand.u32 %v60, 4294901760
    %2659 = vmatpush1.msra.mxu0 %v2658
    %2660 = vmatprep.subr.mxu0 0.0
    %v2661 = vand.u32 %v59, 4294901760
    %2662 = vmatpush1.msra.mxu0 %v2661
    %2663 = vmatprep.subr.mxu0 0.0
    %v2664 = vand.u32 %v58, 4294901760
    %2665 = vmatpush1.msra.mxu0 %v2664
    %2666 = vmatprep.subr.mxu0 0.0
    %v2667 = vand.u32 %v57, 4294901760
    %2668 = vmatpush1.msra.mxu0 %v2667
    %2669 = vmatprep.subr.mxu0 0.0
    %v2670 = vand.u32 %v56, 4294901760
    %2671 = vmatpush1.msra.mxu0 %v2670
    %2672 = vmatprep.subr.mxu0 0.0
    %2673 = vmatpush2.msra.mxu0 0.0
    %2674 = vmatprep.subr.mxu0 0.0
    %2675 = vmatpush2.msra.mxu0 0.0
    %2676 = vmatprep.subr.mxu0 0.0
    %2677 = vmatpush2.msra.mxu0 0.0
    %2678 = vmatprep.subr.mxu0 0.0
    %2679 = vmatpush2.msra.mxu0 0.0
    %2680 = vmatprep.subr.mxu0 0.0
    %2681 = vmatpush2.msra.mxu0 0.0
    %2682 = vmatprep.subr.mxu0 0.0
    %2683 = vmatpush2.msra.mxu0 0.0
    %2684 = vmatprep.subr.mxu0 0.0
    %2685 = vmatpush2.msra.mxu0 0.0
    %2686 = vmatprep.subr.mxu0 0.0
    %2687 = vmatpush2.msra.mxu0 0.0
    %2688 = vmatprep.subr.mxu0 0.0
    %2689 = vmatpush2.msra.mxu0 0.0
    %2690 = vmatprep.subr.mxu0 0.0
    %2691 = vmatpush2.msra.mxu0 0.0
    %2692 = vmatprep.subr.mxu0 0.0
    %2693 = vmatpush2.msra.mxu0 0.0
    %2694 = vmatprep.subr.mxu0 0.0
    %2695 = vmatpush2.msra.mxu0 0.0
    %2696 = vmatprep.subr.mxu0 0.0
    %2697 = vmatpush2.msra.mxu0 0.0
    %2698 = vmatprep.subr.mxu0 0.0
    %2699 = vmatpush2.msra.mxu0 0.0
    %2700 = vmatprep.subr.mxu0 0.0
    %2701 = vmatpush2.msra.mxu0 0.0
    %2702 = vmatprep.subr.mxu0 0.0
    %2703 = vmatpush2.msra.mxu0 0.0
    %2704 = vmatprep.mubr.f32.mxu0 0.0
    %v2705 = vand.u32 %v2069, 4294901760
    %2706 = vmatmul.mubr.f32.gmra.mxu0 %v2705
    %v2707 = vpop.f32.mrf.mxu0
    %v2708 = vadd.f32 %v2621, %v2707
    %v2709 = vpop.f32.mrf.mxu0
    %2710 = vdwg.mxu0
    %v2711 = vmax.f32 %v2708, 1e-37
    %v2712 = vlog2.pop %v2711
    %v2713 = vmul.f32 %v2712, 0.6931472
    %v2714 = vadd.f32 %v2713, %v2066
    %v2715 = vadd.f32 %v2714, %v2064
    %vm2716 = vcmp.gt.f32.partialorder %v2064, 0.5
    %v2717 = vsel %vm2716, 1, 0
    %2718 = vset.pattern.permute.xlu0 5
    %2719 = vperm.xlu0 %2718, %v2717
    %v2720 = vpop.permute.xlu0 %2719
    %vm2721 = vcmp.eq.s32.totalorder %v2720, 1
    %v2722 = vsel %vm2721, %v2715, %v2062
    %s2723 = scalar_lea.vmem [#allocation3], 32
    %v2724 = vld [vmem:[%s2723] sm:$0xff]
    %2725 = vmax.xlane.f32.xlu0 %v2722
    %v2726 = vpop.xlane.xlu0 %2725
    %v2727 = vsub.f32 %v2722, %v2726
    %v2728 = vmul.f32 %v2727, 1.442695
    %v2729 = vpow.pop %v2728
    %2730 = vmatprep.subr.mxu0 0.0
    %v2731 = vand.u32 %v71, 4294901760
    %2732 = vmatpush1.msra.mxu0 %v2731
    %2733 = vmatprep.subr.mxu0 0.0
    %v2734 = vand.u32 %v70, 4294901760
    %2735 = vmatpush1.msra.mxu0 %v2734
    %2736 = vmatprep.subr.mxu0 0.0
    %v2737 = vand.u32 %v69, 4294901760
    %2738 = vmatpush1.msra.mxu0 %v2737
    %2739 = vmatprep.subr.mxu0 0.0
    %v2740 = vand.u32 %v68, 4294901760
    %2741 = vmatpush1.msra.mxu0 %v2740
    %2742 = vmatprep.subr.mxu0 0.0
    %v2743 = vand.u32 %v67, 4294901760
    %2744 = vmatpush1.msra.mxu0 %v2743
    %2745 = vmatprep.subr.mxu0 0.0
    %v2746 = vand.u32 %v66, 4294901760
    %2747 = vmatpush1.msra.mxu0 %v2746
    %2748 = vmatprep.subr.mxu0 0.0
    %v2749 = vand.u32 %v65, 4294901760
    %2750 = vmatpush1.msra.mxu0 %v2749
    %2751 = vmatprep.subr.mxu0 0.0
    %v2752 = vand.u32 %v64, 4294901760
    %2753 = vmatpush1.msra.mxu0 %v2752
    %2754 = vmatprep.subr.mxu0 0.0
    %v2755 = vand.u32 %v63, 4294901760
    %2756 = vmatpush1.msra.mxu0 %v2755
    %2757 = vmatprep.subr.mxu0 0.0
    %v2758 = vand.u32 %v62, 4294901760
    %2759 = vmatpush1.msra.mxu0 %v2758
    %2760 = vmatprep.subr.mxu0 0.0
    %v2761 = vand.u32 %v61, 4294901760
    %2762 = vmatpush1.msra.mxu0 %v2761
    %2763 = vmatprep.subr.mxu0 0.0
    %v2764 = vand.u32 %v60, 4294901760
    %2765 = vmatpush1.msra.mxu0 %v2764
    %2766 = vmatprep.subr.mxu0 0.0
    %v2767 = vand.u32 %v59, 4294901760
    %2768 = vmatpush1.msra.mxu0 %v2767
    %2769 = vmatprep.subr.mxu0 0.0
    %v2770 = vand.u32 %v58, 4294901760
    %2771 = vmatpush1.msra.mxu0 %v2770
    %2772 = vmatprep.subr.mxu0 0.0
    %v2773 = vand.u32 %v57, 4294901760
    %2774 = vmatpush1.msra.mxu0 %v2773
    %2775 = vmatprep.subr.mxu0 0.0
    %v2776 = vand.u32 %v56, 4294901760
    %2777 = vmatpush1.msra.mxu0 %v2776
    %2778 = vmatprep.subr.mxu0 0.0
    %2779 = vmatpush2.msra.mxu0 0.0
    %2780 = vmatprep.subr.mxu0 0.0
    %2781 = vmatpush2.msra.mxu0 0.0
    %2782 = vmatprep.subr.mxu0 0.0
    %2783 = vmatpush2.msra.mxu0 0.0
    %2784 = vmatprep.subr.mxu0 0.0
    %2785 = vmatpush2.msra.mxu0 0.0
    %2786 = vmatprep.subr.mxu0 0.0
    %2787 = vmatpush2.msra.mxu0 0.0
    %2788 = vmatprep.subr.mxu0 0.0
    %2789 = vmatpush2.msra.mxu0 0.0
    %2790 = vmatprep.subr.mxu0 0.0
    %2791 = vmatpush2.msra.mxu0 0.0
    %2792 = vmatprep.subr.mxu0 0.0
    %2793 = vmatpush2.msra.mxu0 0.0
    %2794 = vmatprep.subr.mxu0 0.0
    %2795 = vmatpush2.msra.mxu0 0.0
    %2796 = vmatprep.subr.mxu0 0.0
    %2797 = vmatpush2.msra.mxu0 0.0
    %2798 = vmatprep.subr.mxu0 0.0
    %2799 = vmatpush2.msra.mxu0 0.0
    %2800 = vmatprep.subr.mxu0 0.0
    %2801 = vmatpush2.msra.mxu0 0.0
    %2802 = vmatprep.subr.mxu0 0.0
    %2803 = vmatpush2.msra.mxu0 0.0
    %2804 = vmatprep.subr.mxu0 0.0
    %2805 = vmatpush2.msra.mxu0 0.0
    %2806 = vmatprep.subr.mxu0 0.0
    %2807 = vmatpush2.msra.mxu0 0.0
    %2808 = vmatprep.subr.mxu0 0.0
    %2809 = vmatpush2.msra.mxu0 0.0
    %2810 = vmatprep.mubr.f32.mxu0 0.0
    %v2811 = vand.u32 %v2729, 4294901760
    %v2812 = vsub.f32 %v2729, %v2811
    %v2813 = vand.u32 %v2812, 4294901760
    %v2814 = vsub.f32 %v2812, %v2813
    %v2815 = vand.u32 %v2814, 4294901760
    %2816 = vmatmul.mubr.f32.gmra.mxu0 %v2815
    %v2817 = vpop.f32.mrf.mxu0
    %v2818 = vadd.f32 0.0, %v2817
    %v2819 = vpop.f32.mrf.mxu0
    %2820 = vdwg.mxu0
    %2821 = vmatprep.subr.mxu0 0.0
    %v2822 = vand.u32 %v71, 4294901760
    %v2823 = vsub.f32 %v71, %v2822
    %v2824 = vand.u32 %v2823, 4294901760
    %v2825 = vsub.f32 %v2823, %v2824
    %v2826 = vand.u32 %v2825, 4294901760
    %2827 = vmatpush1.msra.mxu0 %v2826
    %2828 = vmatprep.subr.mxu0 0.0
    %v2829 = vand.u32 %v70, 4294901760
    %v2830 = vsub.f32 %v70, %v2829
    %v2831 = vand.u32 %v2830, 4294901760
    %v2832 = vsub.f32 %v2830, %v2831
    %v2833 = vand.u32 %v2832, 4294901760
    %2834 = vmatpush1.msra.mxu0 %v2833
    %2835 = vmatprep.subr.mxu0 0.0
    %v2836 = vand.u32 %v69, 4294901760
    %v2837 = vsub.f32 %v69, %v2836
    %v2838 = vand.u32 %v2837, 4294901760
    %v2839 = vsub.f32 %v2837, %v2838
    %v2840 = vand.u32 %v2839, 4294901760
    %2841 = vmatpush1.msra.mxu0 %v2840
    %2842 = vmatprep.subr.mxu0 0.0
    %v2843 = vand.u32 %v68, 4294901760
    %v2844 = vsub.f32 %v68, %v2843
    %v2845 = vand.u32 %v2844, 4294901760
    %v2846 = vsub.f32 %v2844, %v2845
    %v2847 = vand.u32 %v2846, 4294901760
    %2848 = vmatpush1.msra.mxu0 %v2847
    %2849 = vmatprep.subr.mxu0 0.0
    %v2850 = vand.u32 %v67, 4294901760
    %v2851 = vsub.f32 %v67, %v2850
    %v2852 = vand.u32 %v2851, 4294901760
    %v2853 = vsub.f32 %v2851, %v2852
    %v2854 = vand.u32 %v2853, 4294901760
    %2855 = vmatpush1.msra.mxu0 %v2854
    %2856 = vmatprep.subr.mxu0 0.0
    %v2857 = vand.u32 %v66, 4294901760
    %v2858 = vsub.f32 %v66, %v2857
    %v2859 = vand.u32 %v2858, 4294901760
    %v2860 = vsub.f32 %v2858, %v2859
    %v2861 = vand.u32 %v2860, 4294901760
    %2862 = vmatpush1.msra.mxu0 %v2861
    %2863 = vmatprep.subr.mxu0 0.0
    %v2864 = vand.u32 %v65, 4294901760
    %v2865 = vsub.f32 %v65, %v2864
    %v2866 = vand.u32 %v2865, 4294901760
    %v2867 = vsub.f32 %v2865, %v2866
    %v2868 = vand.u32 %v2867, 4294901760
    %2869 = vmatpush1.msra.mxu0 %v2868
    %2870 = vmatprep.subr.mxu0 0.0
    %v2871 = vand.u32 %v64, 4294901760
    %v2872 = vsub.f32 %v64, %v2871
    %v2873 = vand.u32 %v2872, 4294901760
    %v2874 = vsub.f32 %v2872, %v2873
    %v2875 = vand.u32 %v2874, 4294901760
    %2876 = vmatpush1.msra.mxu0 %v2875
    %2877 = vmatprep.subr.mxu0 0.0
    %v2878 = vand.u32 %v63, 4294901760
    %v2879 = vsub.f32 %v63, %v2878
    %v2880 = vand.u32 %v2879, 4294901760
    %v2881 = vsub.f32 %v2879, %v2880
    %v2882 = vand.u32 %v2881, 4294901760
    %2883 = vmatpush1.msra.mxu0 %v2882
    %2884 = vmatprep.subr.mxu0 0.0
    %v2885 = vand.u32 %v62, 4294901760
    %v2886 = vsub.f32 %v62, %v2885
    %v2887 = vand.u32 %v2886, 4294901760
    %v2888 = vsub.f32 %v2886, %v2887
    %v2889 = vand.u32 %v2888, 4294901760
    %2890 = vmatpush1.msra.mxu0 %v2889
    %2891 = vmatprep.subr.mxu0 0.0
    %v2892 = vand.u32 %v61, 4294901760
    %v2893 = vsub.f32 %v61, %v2892
    %v2894 = vand.u32 %v2893, 4294901760
    %v2895 = vsub.f32 %v2893, %v2894
    %v2896 = vand.u32 %v2895, 4294901760
    %2897 = vmatpush1.msra.mxu0 %v2896
    %2898 = vmatprep.subr.mxu0 0.0
    %v2899 = vand.u32 %v60, 4294901760
    %v2900 = vsub.f32 %v60, %v2899
    %v2901 = vand.u32 %v2900, 4294901760
    %v2902 = vsub.f32 %v2900, %v2901
    %v2903 = vand.u32 %v2902, 4294901760
    %2904 = vmatpush1.msra.mxu0 %v2903
    %2905 = vmatprep.subr.mxu0 0.0
    %v2906 = vand.u32 %v59, 4294901760
    %v2907 = vsub.f32 %v59, %v2906
    %v2908 = vand.u32 %v2907, 4294901760
    %v2909 = vsub.f32 %v2907, %v2908
    %v2910 = vand.u32 %v2909, 4294901760
    %2911 = vmatpush1.msra.mxu0 %v2910
    %2912 = vmatprep.subr.mxu0 0.0
    %v2913 = vand.u32 %v58, 4294901760
    %v2914 = vsub.f32 %v58, %v2913
    %v2915 = vand.u32 %v2914, 4294901760
    %v2916 = vsub.f32 %v2914, %v2915
    %v2917 = vand.u32 %v2916, 4294901760
    %2918 = vmatpush1.msra.mxu0 %v2917
    %2919 = vmatprep.subr.mxu0 0.0
    %v2920 = vand.u32 %v57, 4294901760
    %v2921 = vsub.f32 %v57, %v2920
    %v2922 = vand.u32 %v2921, 4294901760
    %v2923 = vsub.f32 %v2921, %v2922
    %v2924 = vand.u32 %v2923, 4294901760
    %2925 = vmatpush1.msra.mxu0 %v2924
    %2926 = vmatprep.subr.mxu0 0.0
    %v2927 = vand.u32 %v56, 4294901760
    %v2928 = vsub.f32 %v56, %v2927
    %v2929 = vand.u32 %v2928, 4294901760
    %v2930 = vsub.f32 %v2928, %v2929
    %v2931 = vand.u32 %v2930, 4294901760
    %2932 = vmatpush1.msra.mxu0 %v2931
    %2933 = vmatprep.subr.mxu0 0.0
    %2934 = vmatpush2.msra.mxu0 0.0
    %2935 = vmatprep.subr.mxu0 0.0
    %2936 = vmatpush2.msra.mxu0 0.0
    %2937 = vmatprep.subr.mxu0 0.0
    %2938 = vmatpush2.msra.mxu0 0.0
    %2939 = vmatprep.subr.mxu0 0.0
    %2940 = vmatpush2.msra.mxu0 0.0
    %2941 = vmatprep.subr.mxu0 0.0
    %2942 = vmatpush2.msra.mxu0 0.0
    %2943 = vmatprep.subr.mxu0 0.0
    %2944 = vmatpush2.msra.mxu0 0.0
    %2945 = vmatprep.subr.mxu0 0.0
    %2946 = vmatpush2.msra.mxu0 0.0
    %2947 = vmatprep.subr.mxu0 0.0
    %2948 = vmatpush2.msra.mxu0 0.0
    %2949 = vmatprep.subr.mxu0 0.0
    %2950 = vmatpush2.msra.mxu0 0.0
    %2951 = vmatprep.subr.mxu0 0.0
    %2952 = vmatpush2.msra.mxu0 0.0
    %2953 = vmatprep.subr.mxu0 0.0
    %2954 = vmatpush2.msra.mxu0 0.0
    %2955 = vmatprep.subr.mxu0 0.0
    %2956 = vmatpush2.msra.mxu0 0.0
    %2957 = vmatprep.subr.mxu0 0.0
    %2958 = vmatpush2.msra.mxu0 0.0
    %2959 = vmatprep.subr.mxu0 0.0
    %2960 = vmatpush2.msra.mxu0 0.0
    %2961 = vmatprep.subr.mxu0 0.0
    %2962 = vmatpush2.msra.mxu0 0.0
    %2963 = vmatprep.subr.mxu0 0.0
    %2964 = vmatpush2.msra.mxu0 0.0
    %2965 = vmatprep.mubr.f32.mxu0 0.0
    %v2966 = vand.u32 %v2729, 4294901760
    %2967 = vmatmul.mubr.f32.gmra.mxu0 %v2966
    %v2968 = vpop.f32.mrf.mxu0
    %v2969 = vadd.f32 %v2818, %v2968
    %v2970 = vpop.f32.mrf.mxu0
    %2971 = vdwg.mxu0
    %2972 = vmatprep.subr.mxu0 0.0
    %v2973 = vand.u32 %v71, 4294901760
    %v2974 = vsub.f32 %v71, %v2973
    %2975 = vmatpush1.msra.mxu0 %v2974
    %2976 = vmatprep.subr.mxu0 0.0
    %v2977 = vand.u32 %v70, 4294901760
    %v2978 = vsub.f32 %v70, %v2977
    %2979 = vmatpush1.msra.mxu0 %v2978
    %2980 = vmatprep.subr.mxu0 0.0
    %v2981 = vand.u32 %v69, 4294901760
    %v2982 = vsub.f32 %v69, %v2981
    %2983 = vmatpush1.msra.mxu0 %v2982
    %2984 = vmatprep.subr.mxu0 0.0
    %v2985 = vand.u32 %v68, 4294901760
    %v2986 = vsub.f32 %v68, %v2985
    %2987 = vmatpush1.msra.mxu0 %v2986
    %2988 = vmatprep.subr.mxu0 0.0
    %v2989 = vand.u32 %v67, 4294901760
    %v2990 = vsub.f32 %v67, %v2989
    %2991 = vmatpush1.msra.mxu0 %v2990
    %2992 = vmatprep.subr.mxu0 0.0
    %v2993 = vand.u32 %v66, 4294901760
    %v2994 = vsub.f32 %v66, %v2993
    %2995 = vmatpush1.msra.mxu0 %v2994
    %2996 = vmatprep.subr.mxu0 0.0
    %v2997 = vand.u32 %v65, 4294901760
    %v2998 = vsub.f32 %v65, %v2997
    %2999 = vmatpush1.msra.mxu0 %v2998
    %3000 = vmatprep.subr.mxu0 0.0
    %v3001 = vand.u32 %v64, 4294901760
    %v3002 = vsub.f32 %v64, %v3001
    %3003 = vmatpush1.msra.mxu0 %v3002
    %3004 = vmatprep.subr.mxu0 0.0
    %v3005 = vand.u32 %v63, 4294901760
    %v3006 = vsub.f32 %v63, %v3005
    %3007 = vmatpush1.msra.mxu0 %v3006
    %3008 = vmatprep.subr.mxu0 0.0
    %v3009 = vand.u32 %v62, 4294901760
    %v3010 = vsub.f32 %v62, %v3009
    %3011 = vmatpush1.msra.mxu0 %v3010
    %3012 = vmatprep.subr.mxu0 0.0
    %v3013 = vand.u32 %v61, 4294901760
    %v3014 = vsub.f32 %v61, %v3013
    %3015 = vmatpush1.msra.mxu0 %v3014
    %3016 = vmatprep.subr.mxu0 0.0
    %v3017 = vand.u32 %v60, 4294901760
    %v3018 = vsub.f32 %v60, %v3017
    %3019 = vmatpush1.msra.mxu0 %v3018
    %3020 = vmatprep.subr.mxu0 0.0
    %v3021 = vand.u32 %v59, 4294901760
    %v3022 = vsub.f32 %v59, %v3021
    %3023 = vmatpush1.msra.mxu0 %v3022
    %3024 = vmatprep.subr.mxu0 0.0
    %v3025 = vand.u32 %v58, 4294901760
    %v3026 = vsub.f32 %v58, %v3025
    %3027 = vmatpush1.msra.mxu0 %v3026
    %3028 = vmatprep.subr.mxu0 0.0
    %v3029 = vand.u32 %v57, 4294901760
    %v3030 = vsub.f32 %v57, %v3029
    %3031 = vmatpush1.msra.mxu0 %v3030
    %3032 = vmatprep.subr.mxu0 0.0
    %v3033 = vand.u32 %v56, 4294901760
    %v3034 = vsub.f32 %v56, %v3033
    %3035 = vmatpush1.msra.mxu0 %v3034
    %3036 = vmatprep.subr.mxu0 0.0
    %3037 = vmatpush2.msra.mxu0 0.0
    %3038 = vmatprep.subr.mxu0 0.0
    %3039 = vmatpush2.msra.mxu0 0.0
    %3040 = vmatprep.subr.mxu0 0.0
    %3041 = vmatpush2.msra.mxu0 0.0
    %3042 = vmatprep.subr.mxu0 0.0
    %3043 = vmatpush2.msra.mxu0 0.0
    %3044 = vmatprep.subr.mxu0 0.0
    %3045 = vmatpush2.msra.mxu0 0.0
    %3046 = vmatprep.subr.mxu0 0.0
    %3047 = vmatpush2.msra.mxu0 0.0
    %3048 = vmatprep.subr.mxu0 0.0
    %3049 = vmatpush2.msra.mxu0 0.0
    %3050 = vmatprep.subr.mxu0 0.0
    %3051 = vmatpush2.msra.mxu0 0.0
    %3052 = vmatprep.subr.mxu0 0.0
    %3053 = vmatpush2.msra.mxu0 0.0
    %3054 = vmatprep.subr.mxu0 0.0
    %3055 = vmatpush2.msra.mxu0 0.0
    %3056 = vmatprep.subr.mxu0 0.0
    %3057 = vmatpush2.msra.mxu0 0.0
    %3058 = vmatprep.subr.mxu0 0.0
    %3059 = vmatpush2.msra.mxu0 0.0
    %3060 = vmatprep.subr.mxu0 0.0
    %3061 = vmatpush2.msra.mxu0 0.0
    %3062 = vmatprep.subr.mxu0 0.0
    %3063 = vmatpush2.msra.mxu0 0.0
    %3064 = vmatprep.subr.mxu0 0.0
    %3065 = vmatpush2.msra.mxu0 0.0
    %3066 = vmatprep.subr.mxu0 0.0
    %3067 = vmatpush2.msra.mxu0 0.0
    %3068 = vmatprep.mubr.f32.mxu0 0.0
    %v3069 = vand.u32 %v2729, 4294901760
    %v3070 = vsub.f32 %v2729, %v3069
    %3071 = vmatmul.mubr.f32.gmra.mxu0 %v3070
    %v3072 = vpop.f32.mrf.mxu0
    %v3073 = vadd.f32 %v2969, %v3072
    %v3074 = vpop.f32.mrf.mxu0
    %3075 = vdwg.mxu0
    %3076 = vmatprep.subr.mxu0 0.0
    %v3077 = vand.u32 %v71, 4294901760
    %3078 = vmatpush1.msra.mxu0 %v3077
    %3079 = vmatprep.subr.mxu0 0.0
    %v3080 = vand.u32 %v70, 4294901760
    %3081 = vmatpush1.msra.mxu0 %v3080
    %3082 = vmatprep.subr.mxu0 0.0
    %v3083 = vand.u32 %v69, 4294901760
    %3084 = vmatpush1.msra.mxu0 %v3083
    %3085 = vmatprep.subr.mxu0 0.0
    %v3086 = vand.u32 %v68, 4294901760
    %3087 = vmatpush1.msra.mxu0 %v3086
    %3088 = vmatprep.subr.mxu0 0.0
    %v3089 = vand.u32 %v67, 4294901760
    %3090 = vmatpush1.msra.mxu0 %v3089
    %3091 = vmatprep.subr.mxu0 0.0
    %v3092 = vand.u32 %v66, 4294901760
    %3093 = vmatpush1.msra.mxu0 %v3092
    %3094 = vmatprep.subr.mxu0 0.0
    %v3095 = vand.u32 %v65, 4294901760
    %3096 = vmatpush1.msra.mxu0 %v3095
    %3097 = vmatprep.subr.mxu0 0.0
    %v3098 = vand.u32 %v64, 4294901760
    %3099 = vmatpush1.msra.mxu0 %v3098
    %3100 = vmatprep.subr.mxu0 0.0
    %v3101 = vand.u32 %v63, 4294901760
    %3102 = vmatpush1.msra.mxu0 %v3101
    %3103 = vmatprep.subr.mxu0 0.0
    %v3104 = vand.u32 %v62, 4294901760
    %3105 = vmatpush1.msra.mxu0 %v3104
    %3106 = vmatprep.subr.mxu0 0.0
    %v3107 = vand.u32 %v61, 4294901760
    %3108 = vmatpush1.msra.mxu0 %v3107
    %3109 = vmatprep.subr.mxu0 0.0
    %v3110 = vand.u32 %v60, 4294901760
    %3111 = vmatpush1.msra.mxu0 %v3110
    %3112 = vmatprep.subr.mxu0 0.0
    %v3113 = vand.u32 %v59, 4294901760
    %3114 = vmatpush1.msra.mxu0 %v3113
    %3115 = vmatprep.subr.mxu0 0.0
    %v3116 = vand.u32 %v58, 4294901760
    %3117 = vmatpush1.msra.mxu0 %v3116
    %3118 = vmatprep.subr.mxu0 0.0
    %v3119 = vand.u32 %v57, 4294901760
    %3120 = vmatpush1.msra.mxu0 %v3119
    %3121 = vmatprep.subr.mxu0 0.0
    %v3122 = vand.u32 %v56, 4294901760
    %3123 = vmatpush1.msra.mxu0 %v3122
    %3124 = vmatprep.subr.mxu0 0.0
    %3125 = vmatpush2.msra.mxu0 0.0
    %3126 = vmatprep.subr.mxu0 0.0
    %3127 = vmatpush2.msra.mxu0 0.0
    %3128 = vmatprep.subr.mxu0 0.0
    %3129 = vmatpush2.msra.mxu0 0.0
    %3130 = vmatprep.subr.mxu0 0.0
    %3131 = vmatpush2.msra.mxu0 0.0
    %3132 = vmatprep.subr.mxu0 0.0
    %3133 = vmatpush2.msra.mxu0 0.0
    %3134 = vmatprep.subr.mxu0 0.0
    %3135 = vmatpush2.msra.mxu0 0.0
    %3136 = vmatprep.subr.mxu0 0.0
    %3137 = vmatpush2.msra.mxu0 0.0
    %3138 = vmatprep.subr.mxu0 0.0
    %3139 = vmatpush2.msra.mxu0 0.0
    %3140 = vmatprep.subr.mxu0 0.0
    %3141 = vmatpush2.msra.mxu0 0.0
    %3142 = vmatprep.subr.mxu0 0.0
    %3143 = vmatpush2.msra.mxu0 0.0
    %3144 = vmatprep.subr.mxu0 0.0
    %3145 = vmatpush2.msra.mxu0 0.0
    %3146 = vmatprep.subr.mxu0 0.0
    %3147 = vmatpush2.msra.mxu0 0.0
    %3148 = vmatprep.subr.mxu0 0.0
    %3149 = vmatpush2.msra.mxu0 0.0
    %3150 = vmatprep.subr.mxu0 0.0
    %3151 = vmatpush2.msra.mxu0 0.0
    %3152 = vmatprep.subr.mxu0 0.0
    %3153 = vmatpush2.msra.mxu0 0.0
    %3154 = vmatprep.subr.mxu0 0.0
    %3155 = vmatpush2.msra.mxu0 0.0
    %3156 = vmatprep.mubr.f32.mxu0 0.0
    %v3157 = vand.u32 %v2729, 4294901760
    %v3158 = vsub.f32 %v2729, %v3157
    %v3159 = vand.u32 %v3158, 4294901760
    %3160 = vmatmul.mubr.f32.gmra.mxu0 %v3159
    %v3161 = vpop.f32.mrf.mxu0
    %v3162 = vadd.f32 %v3073, %v3161
    %v3163 = vpop.f32.mrf.mxu0
    %3164 = vdwg.mxu0
    %3165 = vmatprep.subr.mxu0 0.0
    %v3166 = vand.u32 %v71, 4294901760
    %v3167 = vsub.f32 %v71, %v3166
    %v3168 = vand.u32 %v3167, 4294901760
    %3169 = vmatpush1.msra.mxu0 %v3168
    %3170 = vmatprep.subr.mxu0 0.0
    %v3171 = vand.u32 %v70, 4294901760
    %v3172 = vsub.f32 %v70, %v3171
    %v3173 = vand.u32 %v3172, 4294901760
    %3174 = vmatpush1.msra.mxu0 %v3173
    %3175 = vmatprep.subr.mxu0 0.0
    %v3176 = vand.u32 %v69, 4294901760
    %v3177 = vsub.f32 %v69, %v3176
    %v3178 = vand.u32 %v3177, 4294901760
    %3179 = vmatpush1.msra.mxu0 %v3178
    %3180 = vmatprep.subr.mxu0 0.0
    %v3181 = vand.u32 %v68, 4294901760
    %v3182 = vsub.f32 %v68, %v3181
    %v3183 = vand.u32 %v3182, 4294901760
    %3184 = vmatpush1.msra.mxu0 %v3183
    %3185 = vmatprep.subr.mxu0 0.0
    %v3186 = vand.u32 %v67, 4294901760
    %v3187 = vsub.f32 %v67, %v3186
    %v3188 = vand.u32 %v3187, 4294901760
    %3189 = vmatpush1.msra.mxu0 %v3188
    %3190 = vmatprep.subr.mxu0 0.0
    %v3191 = vand.u32 %v66, 4294901760
    %v3192 = vsub.f32 %v66, %v3191
    %v3193 = vand.u32 %v3192, 4294901760
    %3194 = vmatpush1.msra.mxu0 %v3193
    %3195 = vmatprep.subr.mxu0 0.0
    %v3196 = vand.u32 %v65, 4294901760
    %v3197 = vsub.f32 %v65, %v3196
    %v3198 = vand.u32 %v3197, 4294901760
    %3199 = vmatpush1.msra.mxu0 %v3198
    %3200 = vmatprep.subr.mxu0 0.0
    %v3201 = vand.u32 %v64, 4294901760
    %v3202 = vsub.f32 %v64, %v3201
    %v3203 = vand.u32 %v3202, 4294901760
    %3204 = vmatpush1.msra.mxu0 %v3203
    %3205 = vmatprep.subr.mxu0 0.0
    %v3206 = vand.u32 %v63, 4294901760
    %v3207 = vsub.f32 %v63, %v3206
    %v3208 = vand.u32 %v3207, 4294901760
    %3209 = vmatpush1.msra.mxu0 %v3208
    %3210 = vmatprep.subr.mxu0 0.0
    %v3211 = vand.u32 %v62, 4294901760
    %v3212 = vsub.f32 %v62, %v3211
    %v3213 = vand.u32 %v3212, 4294901760
    %3214 = vmatpush1.msra.mxu0 %v3213
    %3215 = vmatprep.subr.mxu0 0.0
    %v3216 = vand.u32 %v61, 4294901760
    %v3217 = vsub.f32 %v61, %v3216
    %v3218 = vand.u32 %v3217, 4294901760
    %3219 = vmatpush1.msra.mxu0 %v3218
    %3220 = vmatprep.subr.mxu0 0.0
    %v3221 = vand.u32 %v60, 4294901760
    %v3222 = vsub.f32 %v60, %v3221
    %v3223 = vand.u32 %v3222, 4294901760
    %3224 = vmatpush1.msra.mxu0 %v3223
    %3225 = vmatprep.subr.mxu0 0.0
    %v3226 = vand.u32 %v59, 4294901760
    %v3227 = vsub.f32 %v59, %v3226
    %v3228 = vand.u32 %v3227, 4294901760
    %3229 = vmatpush1.msra.mxu0 %v3228
    %3230 = vmatprep.subr.mxu0 0.0
    %v3231 = vand.u32 %v58, 4294901760
    %v3232 = vsub.f32 %v58, %v3231
    %v3233 = vand.u32 %v3232, 4294901760
    %3234 = vmatpush1.msra.mxu0 %v3233
    %3235 = vmatprep.subr.mxu0 0.0
    %v3236 = vand.u32 %v57, 4294901760
    %v3237 = vsub.f32 %v57, %v3236
    %v3238 = vand.u32 %v3237, 4294901760
    %3239 = vmatpush1.msra.mxu0 %v3238
    %3240 = vmatprep.subr.mxu0 0.0
    %v3241 = vand.u32 %v56, 4294901760
    %v3242 = vsub.f32 %v56, %v3241
    %v3243 = vand.u32 %v3242, 4294901760
    %3244 = vmatpush1.msra.mxu0 %v3243
    %3245 = vmatprep.subr.mxu0 0.0
    %3246 = vmatpush2.msra.mxu0 0.0
    %3247 = vmatprep.subr.mxu0 0.0
    %3248 = vmatpush2.msra.mxu0 0.0
    %3249 = vmatprep.subr.mxu0 0.0
    %3250 = vmatpush2.msra.mxu0 0.0
    %3251 = vmatprep.subr.mxu0 0.0
    %3252 = vmatpush2.msra.mxu0 0.0
    %3253 = vmatprep.subr.mxu0 0.0
    %3254 = vmatpush2.msra.mxu0 0.0
    %3255 = vmatprep.subr.mxu0 0.0
    %3256 = vmatpush2.msra.mxu0 0.0
    %3257 = vmatprep.subr.mxu0 0.0
    %3258 = vmatpush2.msra.mxu0 0.0
    %3259 = vmatprep.subr.mxu0 0.0
    %3260 = vmatpush2.msra.mxu0 0.0
    %3261 = vmatprep.subr.mxu0 0.0
    %3262 = vmatpush2.msra.mxu0 0.0
    %3263 = vmatprep.subr.mxu0 0.0
    %3264 = vmatpush2.msra.mxu0 0.0
    %3265 = vmatprep.subr.mxu0 0.0
    %3266 = vmatpush2.msra.mxu0 0.0
    %3267 = vmatprep.subr.mxu0 0.0
    %3268 = vmatpush2.msra.mxu0 0.0
    %3269 = vmatprep.subr.mxu0 0.0
    %3270 = vmatpush2.msra.mxu0 0.0
    %3271 = vmatprep.subr.mxu0 0.0
    %3272 = vmatpush2.msra.mxu0 0.0
    %3273 = vmatprep.subr.mxu0 0.0
    %3274 = vmatpush2.msra.mxu0 0.0
    %3275 = vmatprep.subr.mxu0 0.0
    %3276 = vmatpush2.msra.mxu0 0.0
    %3277 = vmatprep.mubr.f32.mxu0 0.0
    %v3278 = vand.u32 %v2729, 4294901760
    %3279 = vmatmul.mubr.f32.gmra.mxu0 %v3278
    %v3280 = vpop.f32.mrf.mxu0
    %v3281 = vadd.f32 %v3162, %v3280
    %v3282 = vpop.f32.mrf.mxu0
    %3283 = vdwg.mxu0
    %3284 = vmatprep.subr.mxu0 0.0
    %v3285 = vand.u32 %v71, 4294901760
    %3286 = vmatpush1.msra.mxu0 %v3285
    %3287 = vmatprep.subr.mxu0 0.0
    %v3288 = vand.u32 %v70, 4294901760
    %3289 = vmatpush1.msra.mxu0 %v3288
    %3290 = vmatprep.subr.mxu0 0.0
    %v3291 = vand.u32 %v69, 4294901760
    %3292 = vmatpush1.msra.mxu0 %v3291
    %3293 = vmatprep.subr.mxu0 0.0
    %v3294 = vand.u32 %v68, 4294901760
    %3295 = vmatpush1.msra.mxu0 %v3294
    %3296 = vmatprep.subr.mxu0 0.0
    %v3297 = vand.u32 %v67, 4294901760
    %3298 = vmatpush1.msra.mxu0 %v3297
    %3299 = vmatprep.subr.mxu0 0.0
    %v3300 = vand.u32 %v66, 4294901760
    %3301 = vmatpush1.msra.mxu0 %v3300
    %3302 = vmatprep.subr.mxu0 0.0
    %v3303 = vand.u32 %v65, 4294901760
    %3304 = vmatpush1.msra.mxu0 %v3303
    %3305 = vmatprep.subr.mxu0 0.0
    %v3306 = vand.u32 %v64, 4294901760
    %3307 = vmatpush1.msra.mxu0 %v3306
    %3308 = vmatprep.subr.mxu0 0.0
    %v3309 = vand.u32 %v63, 4294901760
    %3310 = vmatpush1.msra.mxu0 %v3309
    %3311 = vmatprep.subr.mxu0 0.0
    %v3312 = vand.u32 %v62, 4294901760
    %3313 = vmatpush1.msra.mxu0 %v3312
    %3314 = vmatprep.subr.mxu0 0.0
    %v3315 = vand.u32 %v61, 4294901760
    %3316 = vmatpush1.msra.mxu0 %v3315
    %3317 = vmatprep.subr.mxu0 0.0
    %v3318 = vand.u32 %v60, 4294901760
    %3319 = vmatpush1.msra.mxu0 %v3318
    %3320 = vmatprep.subr.mxu0 0.0
    %v3321 = vand.u32 %v59, 4294901760
    %3322 = vmatpush1.msra.mxu0 %v3321
    %3323 = vmatprep.subr.mxu0 0.0
    %v3324 = vand.u32 %v58, 4294901760
    %3325 = vmatpush1.msra.mxu0 %v3324
    %3326 = vmatprep.subr.mxu0 0.0
    %v3327 = vand.u32 %v57, 4294901760
    %3328 = vmatpush1.msra.mxu0 %v3327
    %3329 = vmatprep.subr.mxu0 0.0
    %v3330 = vand.u32 %v56, 4294901760
    %3331 = vmatpush1.msra.mxu0 %v3330
    %3332 = vmatprep.subr.mxu0 0.0
    %3333 = vmatpush2.msra.mxu0 0.0
    %3334 = vmatprep.subr.mxu0 0.0
    %3335 = vmatpush2.msra.mxu0 0.0
    %3336 = vmatprep.subr.mxu0 0.0
    %3337 = vmatpush2.msra.mxu0 0.0
    %3338 = vmatprep.subr.mxu0 0.0
    %3339 = vmatpush2.msra.mxu0 0.0
    %3340 = vmatprep.subr.mxu0 0.0
    %3341 = vmatpush2.msra.mxu0 0.0
    %3342 = vmatprep.subr.mxu0 0.0
    %3343 = vmatpush2.msra.mxu0 0.0
    %3344 = vmatprep.subr.mxu0 0.0
    %3345 = vmatpush2.msra.mxu0 0.0
    %3346 = vmatprep.subr.mxu0 0.0
    %3347 = vmatpush2.msra.mxu0 0.0
    %3348 = vmatprep.subr.mxu0 0.0
    %3349 = vmatpush2.msra.mxu0 0.0
    %3350 = vmatprep.subr.mxu0 0.0
    %3351 = vmatpush2.msra.mxu0 0.0
    %3352 = vmatprep.subr.mxu0 0.0
    %3353 = vmatpush2.msra.mxu0 0.0
    %3354 = vmatprep.subr.mxu0 0.0
    %3355 = vmatpush2.msra.mxu0 0.0
    %3356 = vmatprep.subr.mxu0 0.0
    %3357 = vmatpush2.msra.mxu0 0.0
    %3358 = vmatprep.subr.mxu0 0.0
    %3359 = vmatpush2.msra.mxu0 0.0
    %3360 = vmatprep.subr.mxu0 0.0
    %3361 = vmatpush2.msra.mxu0 0.0
    %3362 = vmatprep.subr.mxu0 0.0
    %3363 = vmatpush2.msra.mxu0 0.0
    %3364 = vmatprep.mubr.f32.mxu0 0.0
    %v3365 = vand.u32 %v2729, 4294901760
    %3366 = vmatmul.mubr.f32.gmra.mxu0 %v3365
    %v3367 = vpop.f32.mrf.mxu0
    %v3368 = vadd.f32 %v3281, %v3367
    %v3369 = vpop.f32.mrf.mxu0
    %3370 = vdwg.mxu0
    %v3371 = vmax.f32 %v3368, 1e-37
    %v3372 = vlog2.pop %v3371
    %v3373 = vmul.f32 %v3372, 0.6931472
    %v3374 = vadd.f32 %v3373, %v2726
    %v3375 = vadd.f32 %v3374, %v2724
    %vm3376 = vcmp.gt.f32.partialorder %v2724, 0.5
    %v3377 = vsel %vm3376, 1, 0
    %3378 = vset.pattern.permute.xlu0 5
    %3379 = vperm.xlu0 %3378, %v3377
    %v3380 = vpop.permute.xlu0 %3379
    %vm3381 = vcmp.eq.s32.totalorder %v3380, 1
    %v3382 = vsel %vm3381, %v3375, %v2722
    %s3383 = scalar_lea.vmem [#allocation3], 40
    %v3384 = vld [vmem:[%s3383] sm:$0xff]
    %3385 = vmax.xlane.f32.xlu0 %v3382
    %v3386 = vpop.xlane.xlu0 %3385
    %v3387 = vsub.f32 %v3382, %v3386
    %v3388 = vmul.f32 %v3387, 1.442695
    %v3389 = vpow.pop %v3388
    %3390 = vmatprep.subr.mxu0 0.0
    %v3391 = vand.u32 %v71, 4294901760
    %3392 = vmatpush1.msra.mxu0 %v3391
    %3393 = vmatprep.subr.mxu0 0.0
    %v3394 = vand.u32 %v70, 4294901760
    %3395 = vmatpush1.msra.mxu0 %v3394
    %3396 = vmatprep.subr.mxu0 0.0
    %v3397 = vand.u32 %v69, 4294901760
    %3398 = vmatpush1.msra.mxu0 %v3397
    %3399 = vmatprep.subr.mxu0 0.0
    %v3400 = vand.u32 %v68, 4294901760
    %3401 = vmatpush1.msra.mxu0 %v3400
    %3402 = vmatprep.subr.mxu0 0.0
    %v3403 = vand.u32 %v67, 4294901760
    %3404 = vmatpush1.msra.mxu0 %v3403
    %3405 = vmatprep.subr.mxu0 0.0
    %v3406 = vand.u32 %v66, 4294901760
    %3407 = vmatpush1.msra.mxu0 %v3406
    %3408 = vmatprep.subr.mxu0 0.0
    %v3409 = vand.u32 %v65, 4294901760
    %3410 = vmatpush1.msra.mxu0 %v3409
    %3411 = vmatprep.subr.mxu0 0.0
    %v3412 = vand.u32 %v64, 4294901760
    %3413 = vmatpush1.msra.mxu0 %v3412
    %3414 = vmatprep.subr.mxu0 0.0
    %v3415 = vand.u32 %v63, 4294901760
    %3416 = vmatpush1.msra.mxu0 %v3415
    %3417 = vmatprep.subr.mxu0 0.0
    %v3418 = vand.u32 %v62, 4294901760
    %3419 = vmatpush1.msra.mxu0 %v3418
    %3420 = vmatprep.subr.mxu0 0.0
    %v3421 = vand.u32 %v61, 4294901760
    %3422 = vmatpush1.msra.mxu0 %v3421
    %3423 = vmatprep.subr.mxu0 0.0
    %v3424 = vand.u32 %v60, 4294901760
    %3425 = vmatpush1.msra.mxu0 %v3424
    %3426 = vmatprep.subr.mxu0 0.0
    %v3427 = vand.u32 %v59, 4294901760
    %3428 = vmatpush1.msra.mxu0 %v3427
    %3429 = vmatprep.subr.mxu0 0.0
    %v3430 = vand.u32 %v58, 4294901760
    %3431 = vmatpush1.msra.mxu0 %v3430
    %3432 = vmatprep.subr.mxu0 0.0
    %v3433 = vand.u32 %v57, 4294901760
    %3434 = vmatpush1.msra.mxu0 %v3433
    %3435 = vmatprep.subr.mxu0 0.0
    %v3436 = vand.u32 %v56, 4294901760
    %3437 = vmatpush1.msra.mxu0 %v3436
    %3438 = vmatprep.subr.mxu0 0.0
    %3439 = vmatpush2.msra.mxu0 0.0
    %3440 = vmatprep.subr.mxu0 0.0
    %3441 = vmatpush2.msra.mxu0 0.0
    %3442 = vmatprep.subr.mxu0 0.0
    %3443 = vmatpush2.msra.mxu0 0.0
    %3444 = vmatprep.subr.mxu0 0.0
    %3445 = vmatpush2.msra.mxu0 0.0
    %3446 = vmatprep.subr.mxu0 0.0
    %3447 = vmatpush2.msra.mxu0 0.0
    %3448 = vmatprep.subr.mxu0 0.0
    %3449 = vmatpush2.msra.mxu0 0.0
    %3450 = vmatprep.subr.mxu0 0.0
    %3451 = vmatpush2.msra.mxu0 0.0
    %3452 = vmatprep.subr.mxu0 0.0
    %3453 = vmatpush2.msra.mxu0 0.0
    %3454 = vmatprep.subr.mxu0 0.0
    %3455 = vmatpush2.msra.mxu0 0.0
    %3456 = vmatprep.subr.mxu0 0.0
    %3457 = vmatpush2.msra.mxu0 0.0
    %3458 = vmatprep.subr.mxu0 0.0
    %3459 = vmatpush2.msra.mxu0 0.0
    %3460 = vmatprep.subr.mxu0 0.0
    %3461 = vmatpush2.msra.mxu0 0.0
    %3462 = vmatprep.subr.mxu0 0.0
    %3463 = vmatpush2.msra.mxu0 0.0
    %3464 = vmatprep.subr.mxu0 0.0
    %3465 = vmatpush2.msra.mxu0 0.0
    %3466 = vmatprep.subr.mxu0 0.0
    %3467 = vmatpush2.msra.mxu0 0.0
    %3468 = vmatprep.subr.mxu0 0.0
    %3469 = vmatpush2.msra.mxu0 0.0
    %3470 = vmatprep.mubr.f32.mxu0 0.0
    %v3471 = vand.u32 %v3389, 4294901760
    %v3472 = vsub.f32 %v3389, %v3471
    %v3473 = vand.u32 %v3472, 4294901760
    %v3474 = vsub.f32 %v3472, %v3473
    %v3475 = vand.u32 %v3474, 4294901760
    %3476 = vmatmul.mubr.f32.gmra.mxu0 %v3475
    %v3477 = vpop.f32.mrf.mxu0
    %v3478 = vadd.f32 0.0, %v3477
    %v3479 = vpop.f32.mrf.mxu0
    %3480 = vdwg.mxu0
    %3481 = vmatprep.subr.mxu0 0.0
    %v3482 = vand.u32 %v71, 4294901760
    %v3483 = vsub.f32 %v71, %v3482
    %v3484 = vand.u32 %v3483, 4294901760
    %v3485 = vsub.f32 %v3483, %v3484
    %v3486 = vand.u32 %v3485, 4294901760
    %3487 = vmatpush1.msra.mxu0 %v3486
    %3488 = vmatprep.subr.mxu0 0.0
    %v3489 = vand.u32 %v70, 4294901760
    %v3490 = vsub.f32 %v70, %v3489
    %v3491 = vand.u32 %v3490, 4294901760
    %v3492 = vsub.f32 %v3490, %v3491
    %v3493 = vand.u32 %v3492, 4294901760
    %3494 = vmatpush1.msra.mxu0 %v3493
    %3495 = vmatprep.subr.mxu0 0.0
    %v3496 = vand.u32 %v69, 4294901760
    %v3497 = vsub.f32 %v69, %v3496
    %v3498 = vand.u32 %v3497, 4294901760
    %v3499 = vsub.f32 %v3497, %v3498
    %v3500 = vand.u32 %v3499, 4294901760
    %3501 = vmatpush1.msra.mxu0 %v3500
    %3502 = vmatprep.subr.mxu0 0.0
    %v3503 = vand.u32 %v68, 4294901760
    %v3504 = vsub.f32 %v68, %v3503
    %v3505 = vand.u32 %v3504, 4294901760
    %v3506 = vsub.f32 %v3504, %v3505
    %v3507 = vand.u32 %v3506, 4294901760
    %3508 = vmatpush1.msra.mxu0 %v3507
    %3509 = vmatprep.subr.mxu0 0.0
    %v3510 = vand.u32 %v67, 4294901760
    %v3511 = vsub.f32 %v67, %v3510
    %v3512 = vand.u32 %v3511, 4294901760
    %v3513 = vsub.f32 %v3511, %v3512
    %v3514 = vand.u32 %v3513, 4294901760
    %3515 = vmatpush1.msra.mxu0 %v3514
    %3516 = vmatprep.subr.mxu0 0.0
    %v3517 = vand.u32 %v66, 4294901760
    %v3518 = vsub.f32 %v66, %v3517
    %v3519 = vand.u32 %v3518, 4294901760
    %v3520 = vsub.f32 %v3518, %v3519
    %v3521 = vand.u32 %v3520, 4294901760
    %3522 = vmatpush1.msra.mxu0 %v3521
    %3523 = vmatprep.subr.mxu0 0.0
    %v3524 = vand.u32 %v65, 4294901760
    %v3525 = vsub.f32 %v65, %v3524
    %v3526 = vand.u32 %v3525, 4294901760
    %v3527 = vsub.f32 %v3525, %v3526
    %v3528 = vand.u32 %v3527, 4294901760
    %3529 = vmatpush1.msra.mxu0 %v3528
    %3530 = vmatprep.subr.mxu0 0.0
    %v3531 = vand.u32 %v64, 4294901760
    %v3532 = vsub.f32 %v64, %v3531
    %v3533 = vand.u32 %v3532, 4294901760
    %v3534 = vsub.f32 %v3532, %v3533
    %v3535 = vand.u32 %v3534, 4294901760
    %3536 = vmatpush1.msra.mxu0 %v3535
    %3537 = vmatprep.subr.mxu0 0.0
    %v3538 = vand.u32 %v63, 4294901760
    %v3539 = vsub.f32 %v63, %v3538
    %v3540 = vand.u32 %v3539, 4294901760
    %v3541 = vsub.f32 %v3539, %v3540
    %v3542 = vand.u32 %v3541, 4294901760
    %3543 = vmatpush1.msra.mxu0 %v3542
    %3544 = vmatprep.subr.mxu0 0.0
    %v3545 = vand.u32 %v62, 4294901760
    %v3546 = vsub.f32 %v62, %v3545
    %v3547 = vand.u32 %v3546, 4294901760
    %v3548 = vsub.f32 %v3546, %v3547
    %v3549 = vand.u32 %v3548, 4294901760
    %3550 = vmatpush1.msra.mxu0 %v3549
    %3551 = vmatprep.subr.mxu0 0.0
    %v3552 = vand.u32 %v61, 4294901760
    %v3553 = vsub.f32 %v61, %v3552
    %v3554 = vand.u32 %v3553, 4294901760
    %v3555 = vsub.f32 %v3553, %v3554
    %v3556 = vand.u32 %v3555, 4294901760
    %3557 = vmatpush1.msra.mxu0 %v3556
    %3558 = vmatprep.subr.mxu0 0.0
    %v3559 = vand.u32 %v60, 4294901760
    %v3560 = vsub.f32 %v60, %v3559
    %v3561 = vand.u32 %v3560, 4294901760
    %v3562 = vsub.f32 %v3560, %v3561
    %v3563 = vand.u32 %v3562, 4294901760
    %3564 = vmatpush1.msra.mxu0 %v3563
    %3565 = vmatprep.subr.mxu0 0.0
    %v3566 = vand.u32 %v59, 4294901760
    %v3567 = vsub.f32 %v59, %v3566
    %v3568 = vand.u32 %v3567, 4294901760
    %v3569 = vsub.f32 %v3567, %v3568
    %v3570 = vand.u32 %v3569, 4294901760
    %3571 = vmatpush1.msra.mxu0 %v3570
    %3572 = vmatprep.subr.mxu0 0.0
    %v3573 = vand.u32 %v58, 4294901760
    %v3574 = vsub.f32 %v58, %v3573
    %v3575 = vand.u32 %v3574, 4294901760
    %v3576 = vsub.f32 %v3574, %v3575
    %v3577 = vand.u32 %v3576, 4294901760
    %3578 = vmatpush1.msra.mxu0 %v3577
    %3579 = vmatprep.subr.mxu0 0.0
    %v3580 = vand.u32 %v57, 4294901760
    %v3581 = vsub.f32 %v57, %v3580
    %v3582 = vand.u32 %v3581, 4294901760
    %v3583 = vsub.f32 %v3581, %v3582
    %v3584 = vand.u32 %v3583, 4294901760
    %3585 = vmatpush1.msra.mxu0 %v3584
    %3586 = vmatprep.subr.mxu0 0.0
    %v3587 = vand.u32 %v56, 4294901760
    %v3588 = vsub.f32 %v56, %v3587
    %v3589 = vand.u32 %v3588, 4294901760
    %v3590 = vsub.f32 %v3588, %v3589
    %v3591 = vand.u32 %v3590, 4294901760
    %3592 = vmatpush1.msra.mxu0 %v3591
    %3593 = vmatprep.subr.mxu0 0.0
    %3594 = vmatpush2.msra.mxu0 0.0
    %3595 = vmatprep.subr.mxu0 0.0
    %3596 = vmatpush2.msra.mxu0 0.0
    %3597 = vmatprep.subr.mxu0 0.0
    %3598 = vmatpush2.msra.mxu0 0.0
    %3599 = vmatprep.subr.mxu0 0.0
    %3600 = vmatpush2.msra.mxu0 0.0
    %3601 = vmatprep.subr.mxu0 0.0
    %3602 = vmatpush2.msra.mxu0 0.0
    %3603 = vmatprep.subr.mxu0 0.0
    %3604 = vmatpush2.msra.mxu0 0.0
    %3605 = vmatprep.subr.mxu0 0.0
    %3606 = vmatpush2.msra.mxu0 0.0
    %3607 = vmatprep.subr.mxu0 0.0
    %3608 = vmatpush2.msra.mxu0 0.0
    %3609 = vmatprep.subr.mxu0 0.0
    %3610 = vmatpush2.msra.mxu0 0.0
    %3611 = vmatprep.subr.mxu0 0.0
    %3612 = vmatpush2.msra.mxu0 0.0
    %3613 = vmatprep.subr.mxu0 0.0
    %3614 = vmatpush2.msra.mxu0 0.0
    %3615 = vmatprep.subr.mxu0 0.0
    %3616 = vmatpush2.msra.mxu0 0.0
    %3617 = vmatprep.subr.mxu0 0.0
    %3618 = vmatpush2.msra.mxu0 0.0
    %3619 = vmatprep.subr.mxu0 0.0
    %3620 = vmatpush2.msra.mxu0 0.0
    %3621 = vmatprep.subr.mxu0 0.0
    %3622 = vmatpush2.msra.mxu0 0.0
    %3623 = vmatprep.subr.mxu0 0.0
    %3624 = vmatpush2.msra.mxu0 0.0
    %3625 = vmatprep.mubr.f32.mxu0 0.0
    %v3626 = vand.u32 %v3389, 4294901760
    %3627 = vmatmul.mubr.f32.gmra.mxu0 %v3626
    %v3628 = vpop.f32.mrf.mxu0
    %v3629 = vadd.f32 %v3478, %v3628
    %v3630 = vpop.f32.mrf.mxu0
    %3631 = vdwg.mxu0
    %3632 = vmatprep.subr.mxu0 0.0
    %v3633 = vand.u32 %v71, 4294901760
    %v3634 = vsub.f32 %v71, %v3633
    %3635 = vmatpush1.msra.mxu0 %v3634
    %3636 = vmatprep.subr.mxu0 0.0
    %v3637 = vand.u32 %v70, 4294901760
    %v3638 = vsub.f32 %v70, %v3637
    %3639 = vmatpush1.msra.mxu0 %v3638
    %3640 = vmatprep.subr.mxu0 0.0
    %v3641 = vand.u32 %v69, 4294901760
    %v3642 = vsub.f32 %v69, %v3641
    %3643 = vmatpush1.msra.mxu0 %v3642
    %3644 = vmatprep.subr.mxu0 0.0
    %v3645 = vand.u32 %v68, 4294901760
    %v3646 = vsub.f32 %v68, %v3645
    %3647 = vmatpush1.msra.mxu0 %v3646
    %3648 = vmatprep.subr.mxu0 0.0
    %v3649 = vand.u32 %v67, 4294901760
    %v3650 = vsub.f32 %v67, %v3649
    %3651 = vmatpush1.msra.mxu0 %v3650
    %3652 = vmatprep.subr.mxu0 0.0
    %v3653 = vand.u32 %v66, 4294901760
    %v3654 = vsub.f32 %v66, %v3653
    %3655 = vmatpush1.msra.mxu0 %v3654
    %3656 = vmatprep.subr.mxu0 0.0
    %v3657 = vand.u32 %v65, 4294901760
    %v3658 = vsub.f32 %v65, %v3657
    %3659 = vmatpush1.msra.mxu0 %v3658
    %3660 = vmatprep.subr.mxu0 0.0
    %v3661 = vand.u32 %v64, 4294901760
    %v3662 = vsub.f32 %v64, %v3661
    %3663 = vmatpush1.msra.mxu0 %v3662
    %3664 = vmatprep.subr.mxu0 0.0
    %v3665 = vand.u32 %v63, 4294901760
    %v3666 = vsub.f32 %v63, %v3665
    %3667 = vmatpush1.msra.mxu0 %v3666
    %3668 = vmatprep.subr.mxu0 0.0
    %v3669 = vand.u32 %v62, 4294901760
    %v3670 = vsub.f32 %v62, %v3669
    %3671 = vmatpush1.msra.mxu0 %v3670
    %3672 = vmatprep.subr.mxu0 0.0
    %v3673 = vand.u32 %v61, 4294901760
    %v3674 = vsub.f32 %v61, %v3673
    %3675 = vmatpush1.msra.mxu0 %v3674
    %3676 = vmatprep.subr.mxu0 0.0
    %v3677 = vand.u32 %v60, 4294901760
    %v3678 = vsub.f32 %v60, %v3677
    %3679 = vmatpush1.msra.mxu0 %v3678
    %3680 = vmatprep.subr.mxu0 0.0
    %v3681 = vand.u32 %v59, 4294901760
    %v3682 = vsub.f32 %v59, %v3681
    %3683 = vmatpush1.msra.mxu0 %v3682
    %3684 = vmatprep.subr.mxu0 0.0
    %v3685 = vand.u32 %v58, 4294901760
    %v3686 = vsub.f32 %v58, %v3685
    %3687 = vmatpush1.msra.mxu0 %v3686
    %3688 = vmatprep.subr.mxu0 0.0
    %v3689 = vand.u32 %v57, 4294901760
    %v3690 = vsub.f32 %v57, %v3689
    %3691 = vmatpush1.msra.mxu0 %v3690
    %3692 = vmatprep.subr.mxu0 0.0
    %v3693 = vand.u32 %v56, 4294901760
    %v3694 = vsub.f32 %v56, %v3693
    %3695 = vmatpush1.msra.mxu0 %v3694
    %3696 = vmatprep.subr.mxu0 0.0
    %3697 = vmatpush2.msra.mxu0 0.0
    %3698 = vmatprep.subr.mxu0 0.0
    %3699 = vmatpush2.msra.mxu0 0.0
    %3700 = vmatprep.subr.mxu0 0.0
    %3701 = vmatpush2.msra.mxu0 0.0
    %3702 = vmatprep.subr.mxu0 0.0
    %3703 = vmatpush2.msra.mxu0 0.0
    %3704 = vmatprep.subr.mxu0 0.0
    %3705 = vmatpush2.msra.mxu0 0.0
    %3706 = vmatprep.subr.mxu0 0.0
    %3707 = vmatpush2.msra.mxu0 0.0
    %3708 = vmatprep.subr.mxu0 0.0
    %3709 = vmatpush2.msra.mxu0 0.0
    %3710 = vmatprep.subr.mxu0 0.0
    %3711 = vmatpush2.msra.mxu0 0.0
    %3712 = vmatprep.subr.mxu0 0.0
    %3713 = vmatpush2.msra.mxu0 0.0
    %3714 = vmatprep.subr.mxu0 0.0
    %3715 = vmatpush2.msra.mxu0 0.0
    %3716 = vmatprep.subr.mxu0 0.0
    %3717 = vmatpush2.msra.mxu0 0.0
    %3718 = vmatprep.subr.mxu0 0.0
    %3719 = vmatpush2.msra.mxu0 0.0
    %3720 = vmatprep.subr.mxu0 0.0
    %3721 = vmatpush2.msra.mxu0 0.0
    %3722 = vmatprep.subr.mxu0 0.0
    %3723 = vmatpush2.msra.mxu0 0.0
    %3724 = vmatprep.subr.mxu0 0.0
    %3725 = vmatpush2.msra.mxu0 0.0
    %3726 = vmatprep.subr.mxu0 0.0
    %3727 = vmatpush2.msra.mxu0 0.0
    %3728 = vmatprep.mubr.f32.mxu0 0.0
    %v3729 = vand.u32 %v3389, 4294901760
    %v3730 = vsub.f32 %v3389, %v3729
    %3731 = vmatmul.mubr.f32.gmra.mxu0 %v3730
    %v3732 = vpop.f32.mrf.mxu0
    %v3733 = vadd.f32 %v3629, %v3732
    %v3734 = vpop.f32.mrf.mxu0
    %3735 = vdwg.mxu0
    %3736 = vmatprep.subr.mxu0 0.0
    %v3737 = vand.u32 %v71, 4294901760
    %3738 = vmatpush1.msra.mxu0 %v3737
    %3739 = vmatprep.subr.mxu0 0.0
    %v3740 = vand.u32 %v70, 4294901760
    %3741 = vmatpush1.msra.mxu0 %v3740
    %3742 = vmatprep.subr.mxu0 0.0
    %v3743 = vand.u32 %v69, 4294901760
    %3744 = vmatpush1.msra.mxu0 %v3743
    %3745 = vmatprep.subr.mxu0 0.0
    %v3746 = vand.u32 %v68, 4294901760
    %3747 = vmatpush1.msra.mxu0 %v3746
    %3748 = vmatprep.subr.mxu0 0.0
    %v3749 = vand.u32 %v67, 4294901760
    %3750 = vmatpush1.msra.mxu0 %v3749
    %3751 = vmatprep.subr.mxu0 0.0
    %v3752 = vand.u32 %v66, 4294901760
    %3753 = vmatpush1.msra.mxu0 %v3752
    %3754 = vmatprep.subr.mxu0 0.0
    %v3755 = vand.u32 %v65, 4294901760
    %3756 = vmatpush1.msra.mxu0 %v3755
    %3757 = vmatprep.subr.mxu0 0.0
    %v3758 = vand.u32 %v64, 4294901760
    %3759 = vmatpush1.msra.mxu0 %v3758
    %3760 = vmatprep.subr.mxu0 0.0
    %v3761 = vand.u32 %v63, 4294901760
    %3762 = vmatpush1.msra.mxu0 %v3761
    %3763 = vmatprep.subr.mxu0 0.0
    %v3764 = vand.u32 %v62, 4294901760
    %3765 = vmatpush1.msra.mxu0 %v3764
    %3766 = vmatprep.subr.mxu0 0.0
    %v3767 = vand.u32 %v61, 4294901760
    %3768 = vmatpush1.msra.mxu0 %v3767
    %3769 = vmatprep.subr.mxu0 0.0
    %v3770 = vand.u32 %v60, 4294901760
    %3771 = vmatpush1.msra.mxu0 %v3770
    %3772 = vmatprep.subr.mxu0 0.0
    %v3773 = vand.u32 %v59, 4294901760
    %3774 = vmatpush1.msra.mxu0 %v3773
    %3775 = vmatprep.subr.mxu0 0.0
    %v3776 = vand.u32 %v58, 4294901760
    %3777 = vmatpush1.msra.mxu0 %v3776
    %3778 = vmatprep.subr.mxu0 0.0
    %v3779 = vand.u32 %v57, 4294901760
    %3780 = vmatpush1.msra.mxu0 %v3779
    %3781 = vmatprep.subr.mxu0 0.0
    %v3782 = vand.u32 %v56, 4294901760
    %3783 = vmatpush1.msra.mxu0 %v3782
    %3784 = vmatprep.subr.mxu0 0.0
    %3785 = vmatpush2.msra.mxu0 0.0
    %3786 = vmatprep.subr.mxu0 0.0
    %3787 = vmatpush2.msra.mxu0 0.0
    %3788 = vmatprep.subr.mxu0 0.0
    %3789 = vmatpush2.msra.mxu0 0.0
    %3790 = vmatprep.subr.mxu0 0.0
    %3791 = vmatpush2.msra.mxu0 0.0
    %3792 = vmatprep.subr.mxu0 0.0
    %3793 = vmatpush2.msra.mxu0 0.0
    %3794 = vmatprep.subr.mxu0 0.0
    %3795 = vmatpush2.msra.mxu0 0.0
    %3796 = vmatprep.subr.mxu0 0.0
    %3797 = vmatpush2.msra.mxu0 0.0
    %3798 = vmatprep.subr.mxu0 0.0
    %3799 = vmatpush2.msra.mxu0 0.0
    %3800 = vmatprep.subr.mxu0 0.0
    %3801 = vmatpush2.msra.mxu0 0.0
    %3802 = vmatprep.subr.mxu0 0.0
    %3803 = vmatpush2.msra.mxu0 0.0
    %3804 = vmatprep.subr.mxu0 0.0
    %3805 = vmatpush2.msra.mxu0 0.0
    %3806 = vmatprep.subr.mxu0 0.0
    %3807 = vmatpush2.msra.mxu0 0.0
    %3808 = vmatprep.subr.mxu0 0.0
    %3809 = vmatpush2.msra.mxu0 0.0
    %3810 = vmatprep.subr.mxu0 0.0
    %3811 = vmatpush2.msra.mxu0 0.0
    %3812 = vmatprep.subr.mxu0 0.0
    %3813 = vmatpush2.msra.mxu0 0.0
    %3814 = vmatprep.subr.mxu0 0.0
    %3815 = vmatpush2.msra.mxu0 0.0
    %3816 = vmatprep.mubr.f32.mxu0 0.0
    %v3817 = vand.u32 %v3389, 4294901760
    %v3818 = vsub.f32 %v3389, %v3817
    %v3819 = vand.u32 %v3818, 4294901760
    %3820 = vmatmul.mubr.f32.gmra.mxu0 %v3819
    %v3821 = vpop.f32.mrf.mxu0
    %v3822 = vadd.f32 %v3733, %v3821
    %v3823 = vpop.f32.mrf.mxu0
    %3824 = vdwg.mxu0
    %3825 = vmatprep.subr.mxu0 0.0
    %v3826 = vand.u32 %v71, 4294901760
    %v3827 = vsub.f32 %v71, %v3826
    %v3828 = vand.u32 %v3827, 4294901760
    %3829 = vmatpush1.msra.mxu0 %v3828
    %3830 = vmatprep.subr.mxu0 0.0
    %v3831 = vand.u32 %v70, 4294901760
    %v3832 = vsub.f32 %v70, %v3831
    %v3833 = vand.u32 %v3832, 4294901760
    %3834 = vmatpush1.msra.mxu0 %v3833
    %3835 = vmatprep.subr.mxu0 0.0
    %v3836 = vand.u32 %v69, 4294901760
    %v3837 = vsub.f32 %v69, %v3836
    %v3838 = vand.u32 %v3837, 4294901760
    %3839 = vmatpush1.msra.mxu0 %v3838
    %3840 = vmatprep.subr.mxu0 0.0
    %v3841 = vand.u32 %v68, 4294901760
    %v3842 = vsub.f32 %v68, %v3841
    %v3843 = vand.u32 %v3842, 4294901760
    %3844 = vmatpush1.msra.mxu0 %v3843
    %3845 = vmatprep.subr.mxu0 0.0
    %v3846 = vand.u32 %v67, 4294901760
    %v3847 = vsub.f32 %v67, %v3846
    %v3848 = vand.u32 %v3847, 4294901760
    %3849 = vmatpush1.msra.mxu0 %v3848
    %3850 = vmatprep.subr.mxu0 0.0
    %v3851 = vand.u32 %v66, 4294901760
    %v3852 = vsub.f32 %v66, %v3851
    %v3853 = vand.u32 %v3852, 4294901760
    %3854 = vmatpush1.msra.mxu0 %v3853
    %3855 = vmatprep.subr.mxu0 0.0
    %v3856 = vand.u32 %v65, 4294901760
    %v3857 = vsub.f32 %v65, %v3856
    %v3858 = vand.u32 %v3857, 4294901760
    %3859 = vmatpush1.msra.mxu0 %v3858
    %3860 = vmatprep.subr.mxu0 0.0
    %v3861 = vand.u32 %v64, 4294901760
    %v3862 = vsub.f32 %v64, %v3861
    %v3863 = vand.u32 %v3862, 4294901760
    %3864 = vmatpush1.msra.mxu0 %v3863
    %3865 = vmatprep.subr.mxu0 0.0
    %v3866 = vand.u32 %v63, 4294901760
    %v3867 = vsub.f32 %v63, %v3866
    %v3868 = vand.u32 %v3867, 4294901760
    %3869 = vmatpush1.msra.mxu0 %v3868
    %3870 = vmatprep.subr.mxu0 0.0
    %v3871 = vand.u32 %v62, 4294901760
    %v3872 = vsub.f32 %v62, %v3871
    %v3873 = vand.u32 %v3872, 4294901760
    %3874 = vmatpush1.msra.mxu0 %v3873
    %3875 = vmatprep.subr.mxu0 0.0
    %v3876 = vand.u32 %v61, 4294901760
    %v3877 = vsub.f32 %v61, %v3876
    %v3878 = vand.u32 %v3877, 4294901760
    %3879 = vmatpush1.msra.mxu0 %v3878
    %3880 = vmatprep.subr.mxu0 0.0
    %v3881 = vand.u32 %v60, 4294901760
    %v3882 = vsub.f32 %v60, %v3881
    %v3883 = vand.u32 %v3882, 4294901760
    %3884 = vmatpush1.msra.mxu0 %v3883
    %3885 = vmatprep.subr.mxu0 0.0
    %v3886 = vand.u32 %v59, 4294901760
    %v3887 = vsub.f32 %v59, %v3886
    %v3888 = vand.u32 %v3887, 4294901760
    %3889 = vmatpush1.msra.mxu0 %v3888
    %3890 = vmatprep.subr.mxu0 0.0
    %v3891 = vand.u32 %v58, 4294901760
    %v3892 = vsub.f32 %v58, %v3891
    %v3893 = vand.u32 %v3892, 4294901760
    %3894 = vmatpush1.msra.mxu0 %v3893
    %3895 = vmatprep.subr.mxu0 0.0
    %v3896 = vand.u32 %v57, 4294901760
    %v3897 = vsub.f32 %v57, %v3896
    %v3898 = vand.u32 %v3897, 4294901760
    %3899 = vmatpush1.msra.mxu0 %v3898
    %3900 = vmatprep.subr.mxu0 0.0
    %v3901 = vand.u32 %v56, 4294901760
    %v3902 = vsub.f32 %v56, %v3901
    %v3903 = vand.u32 %v3902, 4294901760
    %3904 = vmatpush1.msra.mxu0 %v3903
    %3905 = vmatprep.subr.mxu0 0.0
    %3906 = vmatpush2.msra.mxu0 0.0
    %3907 = vmatprep.subr.mxu0 0.0
    %3908 = vmatpush2.msra.mxu0 0.0
    %3909 = vmatprep.subr.mxu0 0.0
    %3910 = vmatpush2.msra.mxu0 0.0
    %3911 = vmatprep.subr.mxu0 0.0
    %3912 = vmatpush2.msra.mxu0 0.0
    %3913 = vmatprep.subr.mxu0 0.0
    %3914 = vmatpush2.msra.mxu0 0.0
    %3915 = vmatprep.subr.mxu0 0.0
    %3916 = vmatpush2.msra.mxu0 0.0
    %3917 = vmatprep.subr.mxu0 0.0
    %3918 = vmatpush2.msra.mxu0 0.0
    %3919 = vmatprep.subr.mxu0 0.0
    %3920 = vmatpush2.msra.mxu0 0.0
    %3921 = vmatprep.subr.mxu0 0.0
    %3922 = vmatpush2.msra.mxu0 0.0
    %3923 = vmatprep.subr.mxu0 0.0
    %3924 = vmatpush2.msra.mxu0 0.0
    %3925 = vmatprep.subr.mxu0 0.0
    %3926 = vmatpush2.msra.mxu0 0.0
    %3927 = vmatprep.subr.mxu0 0.0
    %3928 = vmatpush2.msra.mxu0 0.0
    %3929 = vmatprep.subr.mxu0 0.0
    %3930 = vmatpush2.msra.mxu0 0.0
    %3931 = vmatprep.subr.mxu0 0.0
    %3932 = vmatpush2.msra.mxu0 0.0
    %3933 = vmatprep.subr.mxu0 0.0
    %3934 = vmatpush2.msra.mxu0 0.0
    %3935 = vmatprep.subr.mxu0 0.0
    %3936 = vmatpush2.msra.mxu0 0.0
    %3937 = vmatprep.mubr.f32.mxu0 0.0
    %v3938 = vand.u32 %v3389, 4294901760
    %3939 = vmatmul.mubr.f32.gmra.mxu0 %v3938
    %v3940 = vpop.f32.mrf.mxu0
    %v3941 = vadd.f32 %v3822, %v3940
    %v3942 = vpop.f32.mrf.mxu0
    %3943 = vdwg.mxu0
    %3944 = vmatprep.subr.mxu0 0.0
    %v3945 = vand.u32 %v71, 4294901760
    %3946 = vmatpush1.msra.mxu0 %v3945
    %3947 = vmatprep.subr.mxu0 0.0
    %v3948 = vand.u32 %v70, 4294901760
    %3949 = vmatpush1.msra.mxu0 %v3948
    %3950 = vmatprep.subr.mxu0 0.0
    %v3951 = vand.u32 %v69, 4294901760
    %3952 = vmatpush1.msra.mxu0 %v3951
    %3953 = vmatprep.subr.mxu0 0.0
    %v3954 = vand.u32 %v68, 4294901760
    %3955 = vmatpush1.msra.mxu0 %v3954
    %3956 = vmatprep.subr.mxu0 0.0
    %v3957 = vand.u32 %v67, 4294901760
    %3958 = vmatpush1.msra.mxu0 %v3957
    %3959 = vmatprep.subr.mxu0 0.0
    %v3960 = vand.u32 %v66, 4294901760
    %3961 = vmatpush1.msra.mxu0 %v3960
    %3962 = vmatprep.subr.mxu0 0.0
    %v3963 = vand.u32 %v65, 4294901760
    %3964 = vmatpush1.msra.mxu0 %v3963
    %3965 = vmatprep.subr.mxu0 0.0
    %v3966 = vand.u32 %v64, 4294901760
    %3967 = vmatpush1.msra.mxu0 %v3966
    %3968 = vmatprep.subr.mxu0 0.0
    %v3969 = vand.u32 %v63, 4294901760
    %3970 = vmatpush1.msra.mxu0 %v3969
    %3971 = vmatprep.subr.mxu0 0.0
    %v3972 = vand.u32 %v62, 4294901760
    %3973 = vmatpush1.msra.mxu0 %v3972
    %3974 = vmatprep.subr.mxu0 0.0
    %v3975 = vand.u32 %v61, 4294901760
    %3976 = vmatpush1.msra.mxu0 %v3975
    %3977 = vmatprep.subr.mxu0 0.0
    %v3978 = vand.u32 %v60, 4294901760
    %3979 = vmatpush1.msra.mxu0 %v3978
    %3980 = vmatprep.subr.mxu0 0.0
    %v3981 = vand.u32 %v59, 4294901760
    %3982 = vmatpush1.msra.mxu0 %v3981
    %3983 = vmatprep.subr.mxu0 0.0
    %v3984 = vand.u32 %v58, 4294901760
    %3985 = vmatpush1.msra.mxu0 %v3984
    %3986 = vmatprep.subr.mxu0 0.0
    %v3987 = vand.u32 %v57, 4294901760
    %3988 = vmatpush1.msra.mxu0 %v3987
    %3989 = vmatprep.subr.mxu0 0.0
    %v3990 = vand.u32 %v56, 4294901760
    %3991 = vmatpush1.msra.mxu0 %v3990
    %3992 = vmatprep.subr.mxu0 0.0
    %3993 = vmatpush2.msra.mxu0 0.0
    %3994 = vmatprep.subr.mxu0 0.0
    %3995 = vmatpush2.msra.mxu0 0.0
    %3996 = vmatprep.subr.mxu0 0.0
    %3997 = vmatpush2.msra.mxu0 0.0
    %3998 = vmatprep.subr.mxu0 0.0
    %3999 = vmatpush2.msra.mxu0 0.0
    %4000 = vmatprep.subr.mxu0 0.0
    %4001 = vmatpush2.msra.mxu0 0.0
    %4002 = vmatprep.subr.mxu0 0.0
    %4003 = vmatpush2.msra.mxu0 0.0
    %4004 = vmatprep.subr.mxu0 0.0
    %4005 = vmatpush2.msra.mxu0 0.0
    %4006 = vmatprep.subr.mxu0 0.0
    %4007 = vmatpush2.msra.mxu0 0.0
    %4008 = vmatprep.subr.mxu0 0.0
    %4009 = vmatpush2.msra.mxu0 0.0
    %4010 = vmatprep.subr.mxu0 0.0
    %4011 = vmatpush2.msra.mxu0 0.0
    %4012 = vmatprep.subr.mxu0 0.0
    %4013 = vmatpush2.msra.mxu0 0.0
    %4014 = vmatprep.subr.mxu0 0.0
    %4015 = vmatpush2.msra.mxu0 0.0
    %4016 = vmatprep.subr.mxu0 0.0
    %4017 = vmatpush2.msra.mxu0 0.0
    %4018 = vmatprep.subr.mxu0 0.0
    %4019 = vmatpush2.msra.mxu0 0.0
    %4020 = vmatprep.subr.mxu0 0.0
    %4021 = vmatpush2.msra.mxu0 0.0
    %4022 = vmatprep.subr.mxu0 0.0
    %4023 = vmatpush2.msra.mxu0 0.0
    %4024 = vmatprep.mubr.f32.mxu0 0.0
    %v4025 = vand.u32 %v3389, 4294901760
    %4026 = vmatmul.mubr.f32.gmra.mxu0 %v4025
    %v4027 = vpop.f32.mrf.mxu0
    %v4028 = vadd.f32 %v3941, %v4027
    %v4029 = vpop.f32.mrf.mxu0
    %4030 = vdwg.mxu0
    %v4031 = vmax.f32 %v4028, 1e-37
    %v4032 = vlog2.pop %v4031
    %v4033 = vmul.f32 %v4032, 0.6931472
    %v4034 = vadd.f32 %v4033, %v3386
    %v4035 = vadd.f32 %v4034, %v3384
    %vm4036 = vcmp.gt.f32.partialorder %v3384, 0.5
    %v4037 = vsel %vm4036, 1, 0
    %4038 = vset.pattern.permute.xlu0 5
    %4039 = vperm.xlu0 %4038, %v4037
    %v4040 = vpop.permute.xlu0 %4039
    %vm4041 = vcmp.eq.s32.totalorder %v4040, 1
    %v4042 = vsel %vm4041, %v4035, %v3382
    %s4043 = scalar_lea.vmem [#allocation3], 48
    %v4044 = vld [vmem:[%s4043] sm:$0xff]
    %4045 = vmax.xlane.f32.xlu0 %v4042
    %v4046 = vpop.xlane.xlu0 %4045
    %v4047 = vsub.f32 %v4042, %v4046
    %v4048 = vmul.f32 %v4047, 1.442695
    %v4049 = vpow.pop %v4048
    %4050 = vmatprep.subr.mxu0 0.0
    %v4051 = vand.u32 %v71, 4294901760
    %4052 = vmatpush1.msra.mxu0 %v4051
    %4053 = vmatprep.subr.mxu0 0.0
    %v4054 = vand.u32 %v70, 4294901760
    %4055 = vmatpush1.msra.mxu0 %v4054
    %4056 = vmatprep.subr.mxu0 0.0
    %v4057 = vand.u32 %v69, 4294901760
    %4058 = vmatpush1.msra.mxu0 %v4057
    %4059 = vmatprep.subr.mxu0 0.0
    %v4060 = vand.u32 %v68, 4294901760
    %4061 = vmatpush1.msra.mxu0 %v4060
    %4062 = vmatprep.subr.mxu0 0.0
    %v4063 = vand.u32 %v67, 4294901760
    %4064 = vmatpush1.msra.mxu0 %v4063
    %4065 = vmatprep.subr.mxu0 0.0
    %v4066 = vand.u32 %v66, 4294901760
    %4067 = vmatpush1.msra.mxu0 %v4066
    %4068 = vmatprep.subr.mxu0 0.0
    %v4069 = vand.u32 %v65, 4294901760
    %4070 = vmatpush1.msra.mxu0 %v4069
    %4071 = vmatprep.subr.mxu0 0.0
    %v4072 = vand.u32 %v64, 4294901760
    %4073 = vmatpush1.msra.mxu0 %v4072
    %4074 = vmatprep.subr.mxu0 0.0
    %v4075 = vand.u32 %v63, 4294901760
    %4076 = vmatpush1.msra.mxu0 %v4075
    %4077 = vmatprep.subr.mxu0 0.0
    %v4078 = vand.u32 %v62, 4294901760
    %4079 = vmatpush1.msra.mxu0 %v4078
    %4080 = vmatprep.subr.mxu0 0.0
    %v4081 = vand.u32 %v61, 4294901760
    %4082 = vmatpush1.msra.mxu0 %v4081
    %4083 = vmatprep.subr.mxu0 0.0
    %v4084 = vand.u32 %v60, 4294901760
    %4085 = vmatpush1.msra.mxu0 %v4084
    %4086 = vmatprep.subr.mxu0 0.0
    %v4087 = vand.u32 %v59, 4294901760
    %4088 = vmatpush1.msra.mxu0 %v4087
    %4089 = vmatprep.subr.mxu0 0.0
    %v4090 = vand.u32 %v58, 4294901760
    %4091 = vmatpush1.msra.mxu0 %v4090
    %4092 = vmatprep.subr.mxu0 0.0
    %v4093 = vand.u32 %v57, 4294901760
    %4094 = vmatpush1.msra.mxu0 %v4093
    %4095 = vmatprep.subr.mxu0 0.0
    %v4096 = vand.u32 %v56, 4294901760
    %4097 = vmatpush1.msra.mxu0 %v4096
    %4098 = vmatprep.subr.mxu0 0.0
    %4099 = vmatpush2.msra.mxu0 0.0
    %4100 = vmatprep.subr.mxu0 0.0
    %4101 = vmatpush2.msra.mxu0 0.0
    %4102 = vmatprep.subr.mxu0 0.0
    %4103 = vmatpush2.msra.mxu0 0.0
    %4104 = vmatprep.subr.mxu0 0.0
    %4105 = vmatpush2.msra.mxu0 0.0
    %4106 = vmatprep.subr.mxu0 0.0
    %4107 = vmatpush2.msra.mxu0 0.0
    %4108 = vmatprep.subr.mxu0 0.0
    %4109 = vmatpush2.msra.mxu0 0.0
    %4110 = vmatprep.subr.mxu0 0.0
    %4111 = vmatpush2.msra.mxu0 0.0
    %4112 = vmatprep.subr.mxu0 0.0
    %4113 = vmatpush2.msra.mxu0 0.0
    %4114 = vmatprep.subr.mxu0 0.0
    %4115 = vmatpush2.msra.mxu0 0.0
    %4116 = vmatprep.subr.mxu0 0.0
    %4117 = vmatpush2.msra.mxu0 0.0
    %4118 = vmatprep.subr.mxu0 0.0
    %4119 = vmatpush2.msra.mxu0 0.0
    %4120 = vmatprep.subr.mxu0 0.0
    %4121 = vmatpush2.msra.mxu0 0.0
    %4122 = vmatprep.subr.mxu0 0.0
    %4123 = vmatpush2.msra.mxu0 0.0
    %4124 = vmatprep.subr.mxu0 0.0
    %4125 = vmatpush2.msra.mxu0 0.0
    %4126 = vmatprep.subr.mxu0 0.0
    %4127 = vmatpush2.msra.mxu0 0.0
    %4128 = vmatprep.subr.mxu0 0.0
    %4129 = vmatpush2.msra.mxu0 0.0
    %4130 = vmatprep.mubr.f32.mxu0 0.0
    %v4131 = vand.u32 %v4049, 4294901760
    %v4132 = vsub.f32 %v4049, %v4131
    %v4133 = vand.u32 %v4132, 4294901760
    %v4134 = vsub.f32 %v4132, %v4133
    %v4135 = vand.u32 %v4134, 4294901760
    %4136 = vmatmul.mubr.f32.gmra.mxu0 %v4135
    %v4137 = vpop.f32.mrf.mxu0
    %v4138 = vadd.f32 0.0, %v4137
    %v4139 = vpop.f32.mrf.mxu0
    %4140 = vdwg.mxu0
    %4141 = vmatprep.subr.mxu0 0.0
    %v4142 = vand.u32 %v71, 4294901760
    %v4143 = vsub.f32 %v71, %v4142
    %v4144 = vand.u32 %v4143, 4294901760
    %v4145 = vsub.f32 %v4143, %v4144
    %v4146 = vand.u32 %v4145, 4294901760
    %4147 = vmatpush1.msra.mxu0 %v4146
    %4148 = vmatprep.subr.mxu0 0.0
    %v4149 = vand.u32 %v70, 4294901760
    %v4150 = vsub.f32 %v70, %v4149
    %v4151 = vand.u32 %v4150, 4294901760
    %v4152 = vsub.f32 %v4150, %v4151
    %v4153 = vand.u32 %v4152, 4294901760
    %4154 = vmatpush1.msra.mxu0 %v4153
    %4155 = vmatprep.subr.mxu0 0.0
    %v4156 = vand.u32 %v69, 4294901760
    %v4157 = vsub.f32 %v69, %v4156
    %v4158 = vand.u32 %v4157, 4294901760
    %v4159 = vsub.f32 %v4157, %v4158
    %v4160 = vand.u32 %v4159, 4294901760
    %4161 = vmatpush1.msra.mxu0 %v4160
    %4162 = vmatprep.subr.mxu0 0.0
    %v4163 = vand.u32 %v68, 4294901760
    %v4164 = vsub.f32 %v68, %v4163
    %v4165 = vand.u32 %v4164, 4294901760
    %v4166 = vsub.f32 %v4164, %v4165
    %v4167 = vand.u32 %v4166, 4294901760
    %4168 = vmatpush1.msra.mxu0 %v4167
    %4169 = vmatprep.subr.mxu0 0.0
    %v4170 = vand.u32 %v67, 4294901760
    %v4171 = vsub.f32 %v67, %v4170
    %v4172 = vand.u32 %v4171, 4294901760
    %v4173 = vsub.f32 %v4171, %v4172
    %v4174 = vand.u32 %v4173, 4294901760
    %4175 = vmatpush1.msra.mxu0 %v4174
    %4176 = vmatprep.subr.mxu0 0.0
    %v4177 = vand.u32 %v66, 4294901760
    %v4178 = vsub.f32 %v66, %v4177
    %v4179 = vand.u32 %v4178, 4294901760
    %v4180 = vsub.f32 %v4178, %v4179
    %v4181 = vand.u32 %v4180, 4294901760
    %4182 = vmatpush1.msra.mxu0 %v4181
    %4183 = vmatprep.subr.mxu0 0.0
    %v4184 = vand.u32 %v65, 4294901760
    %v4185 = vsub.f32 %v65, %v4184
    %v4186 = vand.u32 %v4185, 4294901760
    %v4187 = vsub.f32 %v4185, %v4186
    %v4188 = vand.u32 %v4187, 4294901760
    %4189 = vmatpush1.msra.mxu0 %v4188
    %4190 = vmatprep.subr.mxu0 0.0
    %v4191 = vand.u32 %v64, 4294901760
    %v4192 = vsub.f32 %v64, %v4191
    %v4193 = vand.u32 %v4192, 4294901760
    %v4194 = vsub.f32 %v4192, %v4193
    %v4195 = vand.u32 %v4194, 4294901760
    %4196 = vmatpush1.msra.mxu0 %v4195
    %4197 = vmatprep.subr.mxu0 0.0
    %v4198 = vand.u32 %v63, 4294901760
    %v4199 = vsub.f32 %v63, %v4198
    %v4200 = vand.u32 %v4199, 4294901760
    %v4201 = vsub.f32 %v4199, %v4200
    %v4202 = vand.u32 %v4201, 4294901760
    %4203 = vmatpush1.msra.mxu0 %v4202
    %4204 = vmatprep.subr.mxu0 0.0
    %v4205 = vand.u32 %v62, 4294901760
    %v4206 = vsub.f32 %v62, %v4205
    %v4207 = vand.u32 %v4206, 4294901760
    %v4208 = vsub.f32 %v4206, %v4207
    %v4209 = vand.u32 %v4208, 4294901760
    %4210 = vmatpush1.msra.mxu0 %v4209
    %4211 = vmatprep.subr.mxu0 0.0
    %v4212 = vand.u32 %v61, 4294901760
    %v4213 = vsub.f32 %v61, %v4212
    %v4214 = vand.u32 %v4213, 4294901760
    %v4215 = vsub.f32 %v4213, %v4214
    %v4216 = vand.u32 %v4215, 4294901760
    %4217 = vmatpush1.msra.mxu0 %v4216
    %4218 = vmatprep.subr.mxu0 0.0
    %v4219 = vand.u32 %v60, 4294901760
    %v4220 = vsub.f32 %v60, %v4219
    %v4221 = vand.u32 %v4220, 4294901760
    %v4222 = vsub.f32 %v4220, %v4221
    %v4223 = vand.u32 %v4222, 4294901760
    %4224 = vmatpush1.msra.mxu0 %v4223
    %4225 = vmatprep.subr.mxu0 0.0
    %v4226 = vand.u32 %v59, 4294901760
    %v4227 = vsub.f32 %v59, %v4226
    %v4228 = vand.u32 %v4227, 4294901760
    %v4229 = vsub.f32 %v4227, %v4228
    %v4230 = vand.u32 %v4229, 4294901760
    %4231 = vmatpush1.msra.mxu0 %v4230
    %4232 = vmatprep.subr.mxu0 0.0
    %v4233 = vand.u32 %v58, 4294901760
    %v4234 = vsub.f32 %v58, %v4233
    %v4235 = vand.u32 %v4234, 4294901760
    %v4236 = vsub.f32 %v4234, %v4235
    %v4237 = vand.u32 %v4236, 4294901760
    %4238 = vmatpush1.msra.mxu0 %v4237
    %4239 = vmatprep.subr.mxu0 0.0
    %v4240 = vand.u32 %v57, 4294901760
    %v4241 = vsub.f32 %v57, %v4240
    %v4242 = vand.u32 %v4241, 4294901760
    %v4243 = vsub.f32 %v4241, %v4242
    %v4244 = vand.u32 %v4243, 4294901760
    %4245 = vmatpush1.msra.mxu0 %v4244
    %4246 = vmatprep.subr.mxu0 0.0
    %v4247 = vand.u32 %v56, 4294901760
    %v4248 = vsub.f32 %v56, %v4247
    %v4249 = vand.u32 %v4248, 4294901760
    %v4250 = vsub.f32 %v4248, %v4249
    %v4251 = vand.u32 %v4250, 4294901760
    %4252 = vmatpush1.msra.mxu0 %v4251
    %4253 = vmatprep.subr.mxu0 0.0
    %4254 = vmatpush2.msra.mxu0 0.0
    %4255 = vmatprep.subr.mxu0 0.0
    %4256 = vmatpush2.msra.mxu0 0.0
    %4257 = vmatprep.subr.mxu0 0.0
    %4258 = vmatpush2.msra.mxu0 0.0
    %4259 = vmatprep.subr.mxu0 0.0
    %4260 = vmatpush2.msra.mxu0 0.0
    %4261 = vmatprep.subr.mxu0 0.0
    %4262 = vmatpush2.msra.mxu0 0.0
    %4263 = vmatprep.subr.mxu0 0.0
    %4264 = vmatpush2.msra.mxu0 0.0
    %4265 = vmatprep.subr.mxu0 0.0
    %4266 = vmatpush2.msra.mxu0 0.0
    %4267 = vmatprep.subr.mxu0 0.0
    %4268 = vmatpush2.msra.mxu0 0.0
    %4269 = vmatprep.subr.mxu0 0.0
    %4270 = vmatpush2.msra.mxu0 0.0
    %4271 = vmatprep.subr.mxu0 0.0
    %4272 = vmatpush2.msra.mxu0 0.0
    %4273 = vmatprep.subr.mxu0 0.0
    %4274 = vmatpush2.msra.mxu0 0.0
    %4275 = vmatprep.subr.mxu0 0.0
    %4276 = vmatpush2.msra.mxu0 0.0
    %4277 = vmatprep.subr.mxu0 0.0
    %4278 = vmatpush2.msra.mxu0 0.0
    %4279 = vmatprep.subr.mxu0 0.0
    %4280 = vmatpush2.msra.mxu0 0.0
    %4281 = vmatprep.subr.mxu0 0.0
    %4282 = vmatpush2.msra.mxu0 0.0
    %4283 = vmatprep.subr.mxu0 0.0
    %4284 = vmatpush2.msra.mxu0 0.0
    %4285 = vmatprep.mubr.f32.mxu0 0.0
    %v4286 = vand.u32 %v4049, 4294901760
    %4287 = vmatmul.mubr.f32.gmra.mxu0 %v4286
    %v4288 = vpop.f32.mrf.mxu0
    %v4289 = vadd.f32 %v4138, %v4288
    %v4290 = vpop.f32.mrf.mxu0
    %4291 = vdwg.mxu0
    %4292 = vmatprep.subr.mxu0 0.0
    %v4293 = vand.u32 %v71, 4294901760
    %v4294 = vsub.f32 %v71, %v4293
    %4295 = vmatpush1.msra.mxu0 %v4294
    %4296 = vmatprep.subr.mxu0 0.0
    %v4297 = vand.u32 %v70, 4294901760
    %v4298 = vsub.f32 %v70, %v4297
    %4299 = vmatpush1.msra.mxu0 %v4298
    %4300 = vmatprep.subr.mxu0 0.0
    %v4301 = vand.u32 %v69, 4294901760
    %v4302 = vsub.f32 %v69, %v4301
    %4303 = vmatpush1.msra.mxu0 %v4302
    %4304 = vmatprep.subr.mxu0 0.0
    %v4305 = vand.u32 %v68, 4294901760
    %v4306 = vsub.f32 %v68, %v4305
    %4307 = vmatpush1.msra.mxu0 %v4306
    %4308 = vmatprep.subr.mxu0 0.0
    %v4309 = vand.u32 %v67, 4294901760
    %v4310 = vsub.f32 %v67, %v4309
    %4311 = vmatpush1.msra.mxu0 %v4310
    %4312 = vmatprep.subr.mxu0 0.0
    %v4313 = vand.u32 %v66, 4294901760
    %v4314 = vsub.f32 %v66, %v4313
    %4315 = vmatpush1.msra.mxu0 %v4314
    %4316 = vmatprep.subr.mxu0 0.0
    %v4317 = vand.u32 %v65, 4294901760
    %v4318 = vsub.f32 %v65, %v4317
    %4319 = vmatpush1.msra.mxu0 %v4318
    %4320 = vmatprep.subr.mxu0 0.0
    %v4321 = vand.u32 %v64, 4294901760
    %v4322 = vsub.f32 %v64, %v4321
    %4323 = vmatpush1.msra.mxu0 %v4322
    %4324 = vmatprep.subr.mxu0 0.0
    %v4325 = vand.u32 %v63, 4294901760
    %v4326 = vsub.f32 %v63, %v4325
    %4327 = vmatpush1.msra.mxu0 %v4326
    %4328 = vmatprep.subr.mxu0 0.0
    %v4329 = vand.u32 %v62, 4294901760
    %v4330 = vsub.f32 %v62, %v4329
    %4331 = vmatpush1.msra.mxu0 %v4330
    %4332 = vmatprep.subr.mxu0 0.0
    %v4333 = vand.u32 %v61, 4294901760
    %v4334 = vsub.f32 %v61, %v4333
    %4335 = vmatpush1.msra.mxu0 %v4334
    %4336 = vmatprep.subr.mxu0 0.0
    %v4337 = vand.u32 %v60, 4294901760
    %v4338 = vsub.f32 %v60, %v4337
    %4339 = vmatpush1.msra.mxu0 %v4338
    %4340 = vmatprep.subr.mxu0 0.0
    %v4341 = vand.u32 %v59, 4294901760
    %v4342 = vsub.f32 %v59, %v4341
    %4343 = vmatpush1.msra.mxu0 %v4342
    %4344 = vmatprep.subr.mxu0 0.0
    %v4345 = vand.u32 %v58, 4294901760
    %v4346 = vsub.f32 %v58, %v4345
    %4347 = vmatpush1.msra.mxu0 %v4346
    %4348 = vmatprep.subr.mxu0 0.0
    %v4349 = vand.u32 %v57, 4294901760
    %v4350 = vsub.f32 %v57, %v4349
    %4351 = vmatpush1.msra.mxu0 %v4350
    %4352 = vmatprep.subr.mxu0 0.0
    %v4353 = vand.u32 %v56, 4294901760
    %v4354 = vsub.f32 %v56, %v4353
    %4355 = vmatpush1.msra.mxu0 %v4354
    %4356 = vmatprep.subr.mxu0 0.0
    %4357 = vmatpush2.msra.mxu0 0.0
    %4358 = vmatprep.subr.mxu0 0.0
    %4359 = vmatpush2.msra.mxu0 0.0
    %4360 = vmatprep.subr.mxu0 0.0
    %4361 = vmatpush2.msra.mxu0 0.0
    %4362 = vmatprep.subr.mxu0 0.0
    %4363 = vmatpush2.msra.mxu0 0.0
    %4364 = vmatprep.subr.mxu0 0.0
    %4365 = vmatpush2.msra.mxu0 0.0
    %4366 = vmatprep.subr.mxu0 0.0
    %4367 = vmatpush2.msra.mxu0 0.0
    %4368 = vmatprep.subr.mxu0 0.0
    %4369 = vmatpush2.msra.mxu0 0.0
    %4370 = vmatprep.subr.mxu0 0.0
    %4371 = vmatpush2.msra.mxu0 0.0
    %4372 = vmatprep.subr.mxu0 0.0
    %4373 = vmatpush2.msra.mxu0 0.0
    %4374 = vmatprep.subr.mxu0 0.0
    %4375 = vmatpush2.msra.mxu0 0.0
    %4376 = vmatprep.subr.mxu0 0.0
    %4377 = vmatpush2.msra.mxu0 0.0
    %4378 = vmatprep.subr.mxu0 0.0
    %4379 = vmatpush2.msra.mxu0 0.0
    %4380 = vmatprep.subr.mxu0 0.0
    %4381 = vmatpush2.msra.mxu0 0.0
    %4382 = vmatprep.subr.mxu0 0.0
    %4383 = vmatpush2.msra.mxu0 0.0
    %4384 = vmatprep.subr.mxu0 0.0
    %4385 = vmatpush2.msra.mxu0 0.0
    %4386 = vmatprep.subr.mxu0 0.0
    %4387 = vmatpush2.msra.mxu0 0.0
    %4388 = vmatprep.mubr.f32.mxu0 0.0
    %v4389 = vand.u32 %v4049, 4294901760
    %v4390 = vsub.f32 %v4049, %v4389
    %4391 = vmatmul.mubr.f32.gmra.mxu0 %v4390
    %v4392 = vpop.f32.mrf.mxu0
    %v4393 = vadd.f32 %v4289, %v4392
    %v4394 = vpop.f32.mrf.mxu0
    %4395 = vdwg.mxu0
    %4396 = vmatprep.subr.mxu0 0.0
    %v4397 = vand.u32 %v71, 4294901760
    %4398 = vmatpush1.msra.mxu0 %v4397
    %4399 = vmatprep.subr.mxu0 0.0
    %v4400 = vand.u32 %v70, 4294901760
    %4401 = vmatpush1.msra.mxu0 %v4400
    %4402 = vmatprep.subr.mxu0 0.0
    %v4403 = vand.u32 %v69, 4294901760
    %4404 = vmatpush1.msra.mxu0 %v4403
    %4405 = vmatprep.subr.mxu0 0.0
    %v4406 = vand.u32 %v68, 4294901760
    %4407 = vmatpush1.msra.mxu0 %v4406
    %4408 = vmatprep.subr.mxu0 0.0
    %v4409 = vand.u32 %v67, 4294901760
    %4410 = vmatpush1.msra.mxu0 %v4409
    %4411 = vmatprep.subr.mxu0 0.0
    %v4412 = vand.u32 %v66, 4294901760
    %4413 = vmatpush1.msra.mxu0 %v4412
    %4414 = vmatprep.subr.mxu0 0.0
    %v4415 = vand.u32 %v65, 4294901760
    %4416 = vmatpush1.msra.mxu0 %v4415
    %4417 = vmatprep.subr.mxu0 0.0
    %v4418 = vand.u32 %v64, 4294901760
    %4419 = vmatpush1.msra.mxu0 %v4418
    %4420 = vmatprep.subr.mxu0 0.0
    %v4421 = vand.u32 %v63, 4294901760
    %4422 = vmatpush1.msra.mxu0 %v4421
    %4423 = vmatprep.subr.mxu0 0.0
    %v4424 = vand.u32 %v62, 4294901760
    %4425 = vmatpush1.msra.mxu0 %v4424
    %4426 = vmatprep.subr.mxu0 0.0
    %v4427 = vand.u32 %v61, 4294901760
    %4428 = vmatpush1.msra.mxu0 %v4427
    %4429 = vmatprep.subr.mxu0 0.0
    %v4430 = vand.u32 %v60, 4294901760
    %4431 = vmatpush1.msra.mxu0 %v4430
    %4432 = vmatprep.subr.mxu0 0.0
    %v4433 = vand.u32 %v59, 4294901760
    %4434 = vmatpush1.msra.mxu0 %v4433
    %4435 = vmatprep.subr.mxu0 0.0
    %v4436 = vand.u32 %v58, 4294901760
    %4437 = vmatpush1.msra.mxu0 %v4436
    %4438 = vmatprep.subr.mxu0 0.0
    %v4439 = vand.u32 %v57, 4294901760
    %4440 = vmatpush1.msra.mxu0 %v4439
    %4441 = vmatprep.subr.mxu0 0.0
    %v4442 = vand.u32 %v56, 4294901760
    %4443 = vmatpush1.msra.mxu0 %v4442
    %4444 = vmatprep.subr.mxu0 0.0
    %4445 = vmatpush2.msra.mxu0 0.0
    %4446 = vmatprep.subr.mxu0 0.0
    %4447 = vmatpush2.msra.mxu0 0.0
    %4448 = vmatprep.subr.mxu0 0.0
    %4449 = vmatpush2.msra.mxu0 0.0
    %4450 = vmatprep.subr.mxu0 0.0
    %4451 = vmatpush2.msra.mxu0 0.0
    %4452 = vmatprep.subr.mxu0 0.0
    %4453 = vmatpush2.msra.mxu0 0.0
    %4454 = vmatprep.subr.mxu0 0.0
    %4455 = vmatpush2.msra.mxu0 0.0
    %4456 = vmatprep.subr.mxu0 0.0
    %4457 = vmatpush2.msra.mxu0 0.0
    %4458 = vmatprep.subr.mxu0 0.0
    %4459 = vmatpush2.msra.mxu0 0.0
    %4460 = vmatprep.subr.mxu0 0.0
    %4461 = vmatpush2.msra.mxu0 0.0
    %4462 = vmatprep.subr.mxu0 0.0
    %4463 = vmatpush2.msra.mxu0 0.0
    %4464 = vmatprep.subr.mxu0 0.0
    %4465 = vmatpush2.msra.mxu0 0.0
    %4466 = vmatprep.subr.mxu0 0.0
    %4467 = vmatpush2.msra.mxu0 0.0
    %4468 = vmatprep.subr.mxu0 0.0
    %4469 = vmatpush2.msra.mxu0 0.0
    %4470 = vmatprep.subr.mxu0 0.0
    %4471 = vmatpush2.msra.mxu0 0.0
    %4472 = vmatprep.subr.mxu0 0.0
    %4473 = vmatpush2.msra.mxu0 0.0
    %4474 = vmatprep.subr.mxu0 0.0
    %4475 = vmatpush2.msra.mxu0 0.0
    %4476 = vmatprep.mubr.f32.mxu0 0.0
    %v4477 = vand.u32 %v4049, 4294901760
    %v4478 = vsub.f32 %v4049, %v4477
    %v4479 = vand.u32 %v4478, 4294901760
    %4480 = vmatmul.mubr.f32.gmra.mxu0 %v4479
    %v4481 = vpop.f32.mrf.mxu0
    %v4482 = vadd.f32 %v4393, %v4481
    %v4483 = vpop.f32.mrf.mxu0
    %4484 = vdwg.mxu0
    %4485 = vmatprep.subr.mxu0 0.0
    %v4486 = vand.u32 %v71, 4294901760
    %v4487 = vsub.f32 %v71, %v4486
    %v4488 = vand.u32 %v4487, 4294901760
    %4489 = vmatpush1.msra.mxu0 %v4488
    %4490 = vmatprep.subr.mxu0 0.0
    %v4491 = vand.u32 %v70, 4294901760
    %v4492 = vsub.f32 %v70, %v4491
    %v4493 = vand.u32 %v4492, 4294901760
    %4494 = vmatpush1.msra.mxu0 %v4493
    %4495 = vmatprep.subr.mxu0 0.0
    %v4496 = vand.u32 %v69, 4294901760
    %v4497 = vsub.f32 %v69, %v4496
    %v4498 = vand.u32 %v4497, 4294901760
    %4499 = vmatpush1.msra.mxu0 %v4498
    %4500 = vmatprep.subr.mxu0 0.0
    %v4501 = vand.u32 %v68, 4294901760
    %v4502 = vsub.f32 %v68, %v4501
    %v4503 = vand.u32 %v4502, 4294901760
    %4504 = vmatpush1.msra.mxu0 %v4503
    %4505 = vmatprep.subr.mxu0 0.0
    %v4506 = vand.u32 %v67, 4294901760
    %v4507 = vsub.f32 %v67, %v4506
    %v4508 = vand.u32 %v4507, 4294901760
    %4509 = vmatpush1.msra.mxu0 %v4508
    %4510 = vmatprep.subr.mxu0 0.0
    %v4511 = vand.u32 %v66, 4294901760
    %v4512 = vsub.f32 %v66, %v4511
    %v4513 = vand.u32 %v4512, 4294901760
    %4514 = vmatpush1.msra.mxu0 %v4513
    %4515 = vmatprep.subr.mxu0 0.0
    %v4516 = vand.u32 %v65, 4294901760
    %v4517 = vsub.f32 %v65, %v4516
    %v4518 = vand.u32 %v4517, 4294901760
    %4519 = vmatpush1.msra.mxu0 %v4518
    %4520 = vmatprep.subr.mxu0 0.0
    %v4521 = vand.u32 %v64, 4294901760
    %v4522 = vsub.f32 %v64, %v4521
    %v4523 = vand.u32 %v4522, 4294901760
    %4524 = vmatpush1.msra.mxu0 %v4523
    %4525 = vmatprep.subr.mxu0 0.0
    %v4526 = vand.u32 %v63, 4294901760
    %v4527 = vsub.f32 %v63, %v4526
    %v4528 = vand.u32 %v4527, 4294901760
    %4529 = vmatpush1.msra.mxu0 %v4528
    %4530 = vmatprep.subr.mxu0 0.0
    %v4531 = vand.u32 %v62, 4294901760
    %v4532 = vsub.f32 %v62, %v4531
    %v4533 = vand.u32 %v4532, 4294901760
    %4534 = vmatpush1.msra.mxu0 %v4533
    %4535 = vmatprep.subr.mxu0 0.0
    %v4536 = vand.u32 %v61, 4294901760
    %v4537 = vsub.f32 %v61, %v4536
    %v4538 = vand.u32 %v4537, 4294901760
    %4539 = vmatpush1.msra.mxu0 %v4538
    %4540 = vmatprep.subr.mxu0 0.0
    %v4541 = vand.u32 %v60, 4294901760
    %v4542 = vsub.f32 %v60, %v4541
    %v4543 = vand.u32 %v4542, 4294901760
    %4544 = vmatpush1.msra.mxu0 %v4543
    %4545 = vmatprep.subr.mxu0 0.0
    %v4546 = vand.u32 %v59, 4294901760
    %v4547 = vsub.f32 %v59, %v4546
    %v4548 = vand.u32 %v4547, 4294901760
    %4549 = vmatpush1.msra.mxu0 %v4548
    %4550 = vmatprep.subr.mxu0 0.0
    %v4551 = vand.u32 %v58, 4294901760
    %v4552 = vsub.f32 %v58, %v4551
    %v4553 = vand.u32 %v4552, 4294901760
    %4554 = vmatpush1.msra.mxu0 %v4553
    %4555 = vmatprep.subr.mxu0 0.0
    %v4556 = vand.u32 %v57, 4294901760
    %v4557 = vsub.f32 %v57, %v4556
    %v4558 = vand.u32 %v4557, 4294901760
    %4559 = vmatpush1.msra.mxu0 %v4558
    %4560 = vmatprep.subr.mxu0 0.0
    %v4561 = vand.u32 %v56, 4294901760
    %v4562 = vsub.f32 %v56, %v4561
    %v4563 = vand.u32 %v4562, 4294901760
    %4564 = vmatpush1.msra.mxu0 %v4563
    %4565 = vmatprep.subr.mxu0 0.0
    %4566 = vmatpush2.msra.mxu0 0.0
    %4567 = vmatprep.subr.mxu0 0.0
    %4568 = vmatpush2.msra.mxu0 0.0
    %4569 = vmatprep.subr.mxu0 0.0
    %4570 = vmatpush2.msra.mxu0 0.0
    %4571 = vmatprep.subr.mxu0 0.0
    %4572 = vmatpush2.msra.mxu0 0.0
    %4573 = vmatprep.subr.mxu0 0.0
    %4574 = vmatpush2.msra.mxu0 0.0
    %4575 = vmatprep.subr.mxu0 0.0
    %4576 = vmatpush2.msra.mxu0 0.0
    %4577 = vmatprep.subr.mxu0 0.0
    %4578 = vmatpush2.msra.mxu0 0.0
    %4579 = vmatprep.subr.mxu0 0.0
    %4580 = vmatpush2.msra.mxu0 0.0
    %4581 = vmatprep.subr.mxu0 0.0
    %4582 = vmatpush2.msra.mxu0 0.0
    %4583 = vmatprep.subr.mxu0 0.0
    %4584 = vmatpush2.msra.mxu0 0.0
    %4585 = vmatprep.subr.mxu0 0.0
    %4586 = vmatpush2.msra.mxu0 0.0
    %4587 = vmatprep.subr.mxu0 0.0
    %4588 = vmatpush2.msra.mxu0 0.0
    %4589 = vmatprep.subr.mxu0 0.0
    %4590 = vmatpush2.msra.mxu0 0.0
    %4591 = vmatprep.subr.mxu0 0.0
    %4592 = vmatpush2.msra.mxu0 0.0
    %4593 = vmatprep.subr.mxu0 0.0
    %4594 = vmatpush2.msra.mxu0 0.0
    %4595 = vmatprep.subr.mxu0 0.0
    %4596 = vmatpush2.msra.mxu0 0.0
    %4597 = vmatprep.mubr.f32.mxu0 0.0
    %v4598 = vand.u32 %v4049, 4294901760
    %4599 = vmatmul.mubr.f32.gmra.mxu0 %v4598
    %v4600 = vpop.f32.mrf.mxu0
    %v4601 = vadd.f32 %v4482, %v4600
    %v4602 = vpop.f32.mrf.mxu0
    %4603 = vdwg.mxu0
    %4604 = vmatprep.subr.mxu0 0.0
    %v4605 = vand.u32 %v71, 4294901760
    %4606 = vmatpush1.msra.mxu0 %v4605
    %4607 = vmatprep.subr.mxu0 0.0
    %v4608 = vand.u32 %v70, 4294901760
    %4609 = vmatpush1.msra.mxu0 %v4608
    %4610 = vmatprep.subr.mxu0 0.0
    %v4611 = vand.u32 %v69, 4294901760
    %4612 = vmatpush1.msra.mxu0 %v4611
    %4613 = vmatprep.subr.mxu0 0.0
    %v4614 = vand.u32 %v68, 4294901760
    %4615 = vmatpush1.msra.mxu0 %v4614
    %4616 = vmatprep.subr.mxu0 0.0
    %v4617 = vand.u32 %v67, 4294901760
    %4618 = vmatpush1.msra.mxu0 %v4617
    %4619 = vmatprep.subr.mxu0 0.0
    %v4620 = vand.u32 %v66, 4294901760
    %4621 = vmatpush1.msra.mxu0 %v4620
    %4622 = vmatprep.subr.mxu0 0.0
    %v4623 = vand.u32 %v65, 4294901760
    %4624 = vmatpush1.msra.mxu0 %v4623
    %4625 = vmatprep.subr.mxu0 0.0
    %v4626 = vand.u32 %v64, 4294901760
    %4627 = vmatpush1.msra.mxu0 %v4626
    %4628 = vmatprep.subr.mxu0 0.0
    %v4629 = vand.u32 %v63, 4294901760
    %4630 = vmatpush1.msra.mxu0 %v4629
    %4631 = vmatprep.subr.mxu0 0.0
    %v4632 = vand.u32 %v62, 4294901760
    %4633 = vmatpush1.msra.mxu0 %v4632
    %4634 = vmatprep.subr.mxu0 0.0
    %v4635 = vand.u32 %v61, 4294901760
    %4636 = vmatpush1.msra.mxu0 %v4635
    %4637 = vmatprep.subr.mxu0 0.0
    %v4638 = vand.u32 %v60, 4294901760
    %4639 = vmatpush1.msra.mxu0 %v4638
    %4640 = vmatprep.subr.mxu0 0.0
    %v4641 = vand.u32 %v59, 4294901760
    %4642 = vmatpush1.msra.mxu0 %v4641
    %4643 = vmatprep.subr.mxu0 0.0
    %v4644 = vand.u32 %v58, 4294901760
    %4645 = vmatpush1.msra.mxu0 %v4644
    %4646 = vmatprep.subr.mxu0 0.0
    %v4647 = vand.u32 %v57, 4294901760
    %4648 = vmatpush1.msra.mxu0 %v4647
    %4649 = vmatprep.subr.mxu0 0.0
    %v4650 = vand.u32 %v56, 4294901760
    %4651 = vmatpush1.msra.mxu0 %v4650
    %4652 = vmatprep.subr.mxu0 0.0
    %4653 = vmatpush2.msra.mxu0 0.0
    %4654 = vmatprep.subr.mxu0 0.0
    %4655 = vmatpush2.msra.mxu0 0.0
    %4656 = vmatprep.subr.mxu0 0.0
    %4657 = vmatpush2.msra.mxu0 0.0
    %4658 = vmatprep.subr.mxu0 0.0
    %4659 = vmatpush2.msra.mxu0 0.0
    %4660 = vmatprep.subr.mxu0 0.0
    %4661 = vmatpush2.msra.mxu0 0.0
    %4662 = vmatprep.subr.mxu0 0.0
    %4663 = vmatpush2.msra.mxu0 0.0
    %4664 = vmatprep.subr.mxu0 0.0
    %4665 = vmatpush2.msra.mxu0 0.0
    %4666 = vmatprep.subr.mxu0 0.0
    %4667 = vmatpush2.msra.mxu0 0.0
    %4668 = vmatprep.subr.mxu0 0.0
    %4669 = vmatpush2.msra.mxu0 0.0
    %4670 = vmatprep.subr.mxu0 0.0
    %4671 = vmatpush2.msra.mxu0 0.0
    %4672 = vmatprep.subr.mxu0 0.0
    %4673 = vmatpush2.msra.mxu0 0.0
    %4674 = vmatprep.subr.mxu0 0.0
    %4675 = vmatpush2.msra.mxu0 0.0
    %4676 = vmatprep.subr.mxu0 0.0
    %4677 = vmatpush2.msra.mxu0 0.0
    %4678 = vmatprep.subr.mxu0 0.0
    %4679 = vmatpush2.msra.mxu0 0.0
    %4680 = vmatprep.subr.mxu0 0.0
    %4681 = vmatpush2.msra.mxu0 0.0
    %4682 = vmatprep.subr.mxu0 0.0
    %4683 = vmatpush2.msra.mxu0 0.0
    %4684 = vmatprep.mubr.f32.mxu0 0.0
    %v4685 = vand.u32 %v4049, 4294901760
    %4686 = vmatmul.mubr.f32.gmra.mxu0 %v4685
    %v4687 = vpop.f32.mrf.mxu0
    %v4688 = vadd.f32 %v4601, %v4687
    %v4689 = vpop.f32.mrf.mxu0
    %4690 = vdwg.mxu0
    %v4691 = vmax.f32 %v4688, 1e-37
    %v4692 = vlog2.pop %v4691
    %v4693 = vmul.f32 %v4692, 0.6931472
    %v4694 = vadd.f32 %v4693, %v4046
    %v4695 = vadd.f32 %v4694, %v4044
    %vm4696 = vcmp.gt.f32.partialorder %v4044, 0.5
    %v4697 = vsel %vm4696, 1, 0
    %4698 = vset.pattern.permute.xlu0 5
    %4699 = vperm.xlu0 %4698, %v4697
    %v4700 = vpop.permute.xlu0 %4699
    %vm4701 = vcmp.eq.s32.totalorder %v4700, 1
    %v4702 = vsel %vm4701, %v4695, %v4042
    %s4703 = scalar_lea.vmem [#allocation3], 56
    %v4704 = vld [vmem:[%s4703] sm:$0xff]
    %4705 = vmax.xlane.f32.xlu0 %v4702
    %v4706 = vpop.xlane.xlu0 %4705
    %v4707 = vsub.f32 %v4702, %v4706
    %v4708 = vmul.f32 %v4707, 1.442695
    %v4709 = vpow.pop %v4708
    %4710 = vmatprep.subr.mxu0 0.0
    %v4711 = vand.u32 %v71, 4294901760
    %4712 = vmatpush1.msra.mxu0 %v4711
    %4713 = vmatprep.subr.mxu0 0.0
    %v4714 = vand.u32 %v70, 4294901760
    %4715 = vmatpush1.msra.mxu0 %v4714
    %4716 = vmatprep.subr.mxu0 0.0
    %v4717 = vand.u32 %v69, 4294901760
    %4718 = vmatpush1.msra.mxu0 %v4717
    %4719 = vmatprep.subr.mxu0 0.0
    %v4720 = vand.u32 %v68, 4294901760
    %4721 = vmatpush1.msra.mxu0 %v4720
    %4722 = vmatprep.subr.mxu0 0.0
    %v4723 = vand.u32 %v67, 4294901760
    %4724 = vmatpush1.msra.mxu0 %v4723
    %4725 = vmatprep.subr.mxu0 0.0
    %v4726 = vand.u32 %v66, 4294901760
    %4727 = vmatpush1.msra.mxu0 %v4726
    %4728 = vmatprep.subr.mxu0 0.0
    %v4729 = vand.u32 %v65, 4294901760
    %4730 = vmatpush1.msra.mxu0 %v4729
    %4731 = vmatprep.subr.mxu0 0.0
    %v4732 = vand.u32 %v64, 4294901760
    %4733 = vmatpush1.msra.mxu0 %v4732
    %4734 = vmatprep.subr.mxu0 0.0
    %v4735 = vand.u32 %v63, 4294901760
    %4736 = vmatpush1.msra.mxu0 %v4735
    %4737 = vmatprep.subr.mxu0 0.0
    %v4738 = vand.u32 %v62, 4294901760
    %4739 = vmatpush1.msra.mxu0 %v4738
    %4740 = vmatprep.subr.mxu0 0.0
    %v4741 = vand.u32 %v61, 4294901760
    %4742 = vmatpush1.msra.mxu0 %v4741
    %4743 = vmatprep.subr.mxu0 0.0
    %v4744 = vand.u32 %v60, 4294901760
    %4745 = vmatpush1.msra.mxu0 %v4744
    %4746 = vmatprep.subr.mxu0 0.0
    %v4747 = vand.u32 %v59, 4294901760
    %4748 = vmatpush1.msra.mxu0 %v4747
    %4749 = vmatprep.subr.mxu0 0.0
    %v4750 = vand.u32 %v58, 4294901760
    %4751 = vmatpush1.msra.mxu0 %v4750
    %4752 = vmatprep.subr.mxu0 0.0
    %v4753 = vand.u32 %v57, 4294901760
    %4754 = vmatpush1.msra.mxu0 %v4753
    %4755 = vmatprep.subr.mxu0 0.0
    %v4756 = vand.u32 %v56, 4294901760
    %4757 = vmatpush1.msra.mxu0 %v4756
    %4758 = vmatprep.subr.mxu0 0.0
    %4759 = vmatpush2.msra.mxu0 0.0
    %4760 = vmatprep.subr.mxu0 0.0
    %4761 = vmatpush2.msra.mxu0 0.0
    %4762 = vmatprep.subr.mxu0 0.0
    %4763 = vmatpush2.msra.mxu0 0.0
    %4764 = vmatprep.subr.mxu0 0.0
    %4765 = vmatpush2.msra.mxu0 0.0
    %4766 = vmatprep.subr.mxu0 0.0
    %4767 = vmatpush2.msra.mxu0 0.0
    %4768 = vmatprep.subr.mxu0 0.0
    %4769 = vmatpush2.msra.mxu0 0.0
    %4770 = vmatprep.subr.mxu0 0.0
    %4771 = vmatpush2.msra.mxu0 0.0
    %4772 = vmatprep.subr.mxu0 0.0
    %4773 = vmatpush2.msra.mxu0 0.0
    %4774 = vmatprep.subr.mxu0 0.0
    %4775 = vmatpush2.msra.mxu0 0.0
    %4776 = vmatprep.subr.mxu0 0.0
    %4777 = vmatpush2.msra.mxu0 0.0
    %4778 = vmatprep.subr.mxu0 0.0
    %4779 = vmatpush2.msra.mxu0 0.0
    %4780 = vmatprep.subr.mxu0 0.0
    %4781 = vmatpush2.msra.mxu0 0.0
    %4782 = vmatprep.subr.mxu0 0.0
    %4783 = vmatpush2.msra.mxu0 0.0
    %4784 = vmatprep.subr.mxu0 0.0
    %4785 = vmatpush2.msra.mxu0 0.0
    %4786 = vmatprep.subr.mxu0 0.0
    %4787 = vmatpush2.msra.mxu0 0.0
    %4788 = vmatprep.subr.mxu0 0.0
    %4789 = vmatpush2.msra.mxu0 0.0
    %4790 = vmatprep.mubr.f32.mxu0 0.0
    %v4791 = vand.u32 %v4709, 4294901760
    %v4792 = vsub.f32 %v4709, %v4791
    %v4793 = vand.u32 %v4792, 4294901760
    %v4794 = vsub.f32 %v4792, %v4793
    %v4795 = vand.u32 %v4794, 4294901760
    %4796 = vmatmul.mubr.f32.gmra.mxu0 %v4795
    %v4797 = vpop.f32.mrf.mxu0
    %v4798 = vadd.f32 0.0, %v4797
    %v4799 = vpop.f32.mrf.mxu0
    %4800 = vdwg.mxu0
    %4801 = vmatprep.subr.mxu0 0.0
    %v4802 = vand.u32 %v71, 4294901760
    %v4803 = vsub.f32 %v71, %v4802
    %v4804 = vand.u32 %v4803, 4294901760
    %v4805 = vsub.f32 %v4803, %v4804
    %v4806 = vand.u32 %v4805, 4294901760
    %4807 = vmatpush1.msra.mxu0 %v4806
    %4808 = vmatprep.subr.mxu0 0.0
    %v4809 = vand.u32 %v70, 4294901760
    %v4810 = vsub.f32 %v70, %v4809
    %v4811 = vand.u32 %v4810, 4294901760
    %v4812 = vsub.f32 %v4810, %v4811
    %v4813 = vand.u32 %v4812, 4294901760
    %4814 = vmatpush1.msra.mxu0 %v4813
    %4815 = vmatprep.subr.mxu0 0.0
    %v4816 = vand.u32 %v69, 4294901760
    %v4817 = vsub.f32 %v69, %v4816
    %v4818 = vand.u32 %v4817, 4294901760
    %v4819 = vsub.f32 %v4817, %v4818
    %v4820 = vand.u32 %v4819, 4294901760
    %4821 = vmatpush1.msra.mxu0 %v4820
    %4822 = vmatprep.subr.mxu0 0.0
    %v4823 = vand.u32 %v68, 4294901760
    %v4824 = vsub.f32 %v68, %v4823
    %v4825 = vand.u32 %v4824, 4294901760
    %v4826 = vsub.f32 %v4824, %v4825
    %v4827 = vand.u32 %v4826, 4294901760
    %4828 = vmatpush1.msra.mxu0 %v4827
    %4829 = vmatprep.subr.mxu0 0.0
    %v4830 = vand.u32 %v67, 4294901760
    %v4831 = vsub.f32 %v67, %v4830
    %v4832 = vand.u32 %v4831, 4294901760
    %v4833 = vsub.f32 %v4831, %v4832
    %v4834 = vand.u32 %v4833, 4294901760
    %4835 = vmatpush1.msra.mxu0 %v4834
    %4836 = vmatprep.subr.mxu0 0.0
    %v4837 = vand.u32 %v66, 4294901760
    %v4838 = vsub.f32 %v66, %v4837
    %v4839 = vand.u32 %v4838, 4294901760
    %v4840 = vsub.f32 %v4838, %v4839
    %v4841 = vand.u32 %v4840, 4294901760
    %4842 = vmatpush1.msra.mxu0 %v4841
    %4843 = vmatprep.subr.mxu0 0.0
    %v4844 = vand.u32 %v65, 4294901760
    %v4845 = vsub.f32 %v65, %v4844
    %v4846 = vand.u32 %v4845, 4294901760
    %v4847 = vsub.f32 %v4845, %v4846
    %v4848 = vand.u32 %v4847, 4294901760
    %4849 = vmatpush1.msra.mxu0 %v4848
    %4850 = vmatprep.subr.mxu0 0.0
    %v4851 = vand.u32 %v64, 4294901760
    %v4852 = vsub.f32 %v64, %v4851
    %v4853 = vand.u32 %v4852, 4294901760
    %v4854 = vsub.f32 %v4852, %v4853
    %v4855 = vand.u32 %v4854, 4294901760
    %4856 = vmatpush1.msra.mxu0 %v4855
    %4857 = vmatprep.subr.mxu0 0.0
    %v4858 = vand.u32 %v63, 4294901760
    %v4859 = vsub.f32 %v63, %v4858
    %v4860 = vand.u32 %v4859, 4294901760
    %v4861 = vsub.f32 %v4859, %v4860
    %v4862 = vand.u32 %v4861, 4294901760
    %4863 = vmatpush1.msra.mxu0 %v4862
    %4864 = vmatprep.subr.mxu0 0.0
    %v4865 = vand.u32 %v62, 4294901760
    %v4866 = vsub.f32 %v62, %v4865
    %v4867 = vand.u32 %v4866, 4294901760
    %v4868 = vsub.f32 %v4866, %v4867
    %v4869 = vand.u32 %v4868, 4294901760
    %4870 = vmatpush1.msra.mxu0 %v4869
    %4871 = vmatprep.subr.mxu0 0.0
    %v4872 = vand.u32 %v61, 4294901760
    %v4873 = vsub.f32 %v61, %v4872
    %v4874 = vand.u32 %v4873, 4294901760
    %v4875 = vsub.f32 %v4873, %v4874
    %v4876 = vand.u32 %v4875, 4294901760
    %4877 = vmatpush1.msra.mxu0 %v4876
    %4878 = vmatprep.subr.mxu0 0.0
    %v4879 = vand.u32 %v60, 4294901760
    %v4880 = vsub.f32 %v60, %v4879
    %v4881 = vand.u32 %v4880, 4294901760
    %v4882 = vsub.f32 %v4880, %v4881
    %v4883 = vand.u32 %v4882, 4294901760
    %4884 = vmatpush1.msra.mxu0 %v4883
    %4885 = vmatprep.subr.mxu0 0.0
    %v4886 = vand.u32 %v59, 4294901760
    %v4887 = vsub.f32 %v59, %v4886
    %v4888 = vand.u32 %v4887, 4294901760
    %v4889 = vsub.f32 %v4887, %v4888
    %v4890 = vand.u32 %v4889, 4294901760
    %4891 = vmatpush1.msra.mxu0 %v4890
    %4892 = vmatprep.subr.mxu0 0.0
    %v4893 = vand.u32 %v58, 4294901760
    %v4894 = vsub.f32 %v58, %v4893
    %v4895 = vand.u32 %v4894, 4294901760
    %v4896 = vsub.f32 %v4894, %v4895
    %v4897 = vand.u32 %v4896, 4294901760
    %4898 = vmatpush1.msra.mxu0 %v4897
    %4899 = vmatprep.subr.mxu0 0.0
    %v4900 = vand.u32 %v57, 4294901760
    %v4901 = vsub.f32 %v57, %v4900
    %v4902 = vand.u32 %v4901, 4294901760
    %v4903 = vsub.f32 %v4901, %v4902
    %v4904 = vand.u32 %v4903, 4294901760
    %4905 = vmatpush1.msra.mxu0 %v4904
    %4906 = vmatprep.subr.mxu0 0.0
    %v4907 = vand.u32 %v56, 4294901760
    %v4908 = vsub.f32 %v56, %v4907
    %v4909 = vand.u32 %v4908, 4294901760
    %v4910 = vsub.f32 %v4908, %v4909
    %v4911 = vand.u32 %v4910, 4294901760
    %4912 = vmatpush1.msra.mxu0 %v4911
    %4913 = vmatprep.subr.mxu0 0.0
    %4914 = vmatpush2.msra.mxu0 0.0
    %4915 = vmatprep.subr.mxu0 0.0
    %4916 = vmatpush2.msra.mxu0 0.0
    %4917 = vmatprep.subr.mxu0 0.0
    %4918 = vmatpush2.msra.mxu0 0.0
    %4919 = vmatprep.subr.mxu0 0.0
    %4920 = vmatpush2.msra.mxu0 0.0
    %4921 = vmatprep.subr.mxu0 0.0
    %4922 = vmatpush2.msra.mxu0 0.0
    %4923 = vmatprep.subr.mxu0 0.0
    %4924 = vmatpush2.msra.mxu0 0.0
    %4925 = vmatprep.subr.mxu0 0.0
    %4926 = vmatpush2.msra.mxu0 0.0
    %4927 = vmatprep.subr.mxu0 0.0
    %4928 = vmatpush2.msra.mxu0 0.0
    %4929 = vmatprep.subr.mxu0 0.0
    %4930 = vmatpush2.msra.mxu0 0.0
    %4931 = vmatprep.subr.mxu0 0.0
    %4932 = vmatpush2.msra.mxu0 0.0
    %4933 = vmatprep.subr.mxu0 0.0
    %4934 = vmatpush2.msra.mxu0 0.0
    %4935 = vmatprep.subr.mxu0 0.0
    %4936 = vmatpush2.msra.mxu0 0.0
    %4937 = vmatprep.subr.mxu0 0.0
    %4938 = vmatpush2.msra.mxu0 0.0
    %4939 = vmatprep.subr.mxu0 0.0
    %4940 = vmatpush2.msra.mxu0 0.0
    %4941 = vmatprep.subr.mxu0 0.0
    %4942 = vmatpush2.msra.mxu0 0.0
    %4943 = vmatprep.subr.mxu0 0.0
    %4944 = vmatpush2.msra.mxu0 0.0
    %4945 = vmatprep.mubr.f32.mxu0 0.0
    %v4946 = vand.u32 %v4709, 4294901760
    %4947 = vmatmul.mubr.f32.gmra.mxu0 %v4946
    %v4948 = vpop.f32.mrf.mxu0
    %v4949 = vadd.f32 %v4798, %v4948
    %v4950 = vpop.f32.mrf.mxu0
    %4951 = vdwg.mxu0
    %4952 = vmatprep.subr.mxu0 0.0
    %v4953 = vand.u32 %v71, 4294901760
    %v4954 = vsub.f32 %v71, %v4953
    %4955 = vmatpush1.msra.mxu0 %v4954
    %4956 = vmatprep.subr.mxu0 0.0
    %v4957 = vand.u32 %v70, 4294901760
    %v4958 = vsub.f32 %v70, %v4957
    %4959 = vmatpush1.msra.mxu0 %v4958
    %4960 = vmatprep.subr.mxu0 0.0
    %v4961 = vand.u32 %v69, 4294901760
    %v4962 = vsub.f32 %v69, %v4961
    %4963 = vmatpush1.msra.mxu0 %v4962
    %4964 = vmatprep.subr.mxu0 0.0
    %v4965 = vand.u32 %v68, 4294901760
    %v4966 = vsub.f32 %v68, %v4965
    %4967 = vmatpush1.msra.mxu0 %v4966
    %4968 = vmatprep.subr.mxu0 0.0
    %v4969 = vand.u32 %v67, 4294901760
    %v4970 = vsub.f32 %v67, %v4969
    %4971 = vmatpush1.msra.mxu0 %v4970
    %4972 = vmatprep.subr.mxu0 0.0
    %v4973 = vand.u32 %v66, 4294901760
    %v4974 = vsub.f32 %v66, %v4973
    %4975 = vmatpush1.msra.mxu0 %v4974
    %4976 = vmatprep.subr.mxu0 0.0
    %v4977 = vand.u32 %v65, 4294901760
    %v4978 = vsub.f32 %v65, %v4977
    %4979 = vmatpush1.msra.mxu0 %v4978
    %4980 = vmatprep.subr.mxu0 0.0
    %v4981 = vand.u32 %v64, 4294901760
    %v4982 = vsub.f32 %v64, %v4981
    %4983 = vmatpush1.msra.mxu0 %v4982
    %4984 = vmatprep.subr.mxu0 0.0
    %v4985 = vand.u32 %v63, 4294901760
    %v4986 = vsub.f32 %v63, %v4985
    %4987 = vmatpush1.msra.mxu0 %v4986
    %4988 = vmatprep.subr.mxu0 0.0
    %v4989 = vand.u32 %v62, 4294901760
    %v4990 = vsub.f32 %v62, %v4989
    %4991 = vmatpush1.msra.mxu0 %v4990
    %4992 = vmatprep.subr.mxu0 0.0
    %v4993 = vand.u32 %v61, 4294901760
    %v4994 = vsub.f32 %v61, %v4993
    %4995 = vmatpush1.msra.mxu0 %v4994
    %4996 = vmatprep.subr.mxu0 0.0
    %v4997 = vand.u32 %v60, 4294901760
    %v4998 = vsub.f32 %v60, %v4997
    %4999 = vmatpush1.msra.mxu0 %v4998
    %5000 = vmatprep.subr.mxu0 0.0
    %v5001 = vand.u32 %v59, 4294901760
    %v5002 = vsub.f32 %v59, %v5001
    %5003 = vmatpush1.msra.mxu0 %v5002
    %5004 = vmatprep.subr.mxu0 0.0
    %v5005 = vand.u32 %v58, 4294901760
    %v5006 = vsub.f32 %v58, %v5005
    %5007 = vmatpush1.msra.mxu0 %v5006
    %5008 = vmatprep.subr.mxu0 0.0
    %v5009 = vand.u32 %v57, 4294901760
    %v5010 = vsub.f32 %v57, %v5009
    %5011 = vmatpush1.msra.mxu0 %v5010
    %5012 = vmatprep.subr.mxu0 0.0
    %v5013 = vand.u32 %v56, 4294901760
    %v5014 = vsub.f32 %v56, %v5013
    %5015 = vmatpush1.msra.mxu0 %v5014
    %5016 = vmatprep.subr.mxu0 0.0
    %5017 = vmatpush2.msra.mxu0 0.0
    %5018 = vmatprep.subr.mxu0 0.0
    %5019 = vmatpush2.msra.mxu0 0.0
    %5020 = vmatprep.subr.mxu0 0.0
    %5021 = vmatpush2.msra.mxu0 0.0
    %5022 = vmatprep.subr.mxu0 0.0
    %5023 = vmatpush2.msra.mxu0 0.0
    %5024 = vmatprep.subr.mxu0 0.0
    %5025 = vmatpush2.msra.mxu0 0.0
    %5026 = vmatprep.subr.mxu0 0.0
    %5027 = vmatpush2.msra.mxu0 0.0
    %5028 = vmatprep.subr.mxu0 0.0
    %5029 = vmatpush2.msra.mxu0 0.0
    %5030 = vmatprep.subr.mxu0 0.0
    %5031 = vmatpush2.msra.mxu0 0.0
    %5032 = vmatprep.subr.mxu0 0.0
    %5033 = vmatpush2.msra.mxu0 0.0
    %5034 = vmatprep.subr.mxu0 0.0
    %5035 = vmatpush2.msra.mxu0 0.0
    %5036 = vmatprep.subr.mxu0 0.0
    %5037 = vmatpush2.msra.mxu0 0.0
    %5038 = vmatprep.subr.mxu0 0.0
    %5039 = vmatpush2.msra.mxu0 0.0
    %5040 = vmatprep.subr.mxu0 0.0
    %5041 = vmatpush2.msra.mxu0 0.0
    %5042 = vmatprep.subr.mxu0 0.0
    %5043 = vmatpush2.msra.mxu0 0.0
    %5044 = vmatprep.subr.mxu0 0.0
    %5045 = vmatpush2.msra.mxu0 0.0
    %5046 = vmatprep.subr.mxu0 0.0
    %5047 = vmatpush2.msra.mxu0 0.0
    %5048 = vmatprep.mubr.f32.mxu0 0.0
    %v5049 = vand.u32 %v4709, 4294901760
    %v5050 = vsub.f32 %v4709, %v5049
    %5051 = vmatmul.mubr.f32.gmra.mxu0 %v5050
    %v5052 = vpop.f32.mrf.mxu0
    %v5053 = vadd.f32 %v4949, %v5052
    %v5054 = vpop.f32.mrf.mxu0
    %5055 = vdwg.mxu0
    %5056 = vmatprep.subr.mxu0 0.0
    %v5057 = vand.u32 %v71, 4294901760
    %5058 = vmatpush1.msra.mxu0 %v5057
    %5059 = vmatprep.subr.mxu0 0.0
    %v5060 = vand.u32 %v70, 4294901760
    %5061 = vmatpush1.msra.mxu0 %v5060
    %5062 = vmatprep.subr.mxu0 0.0
    %v5063 = vand.u32 %v69, 4294901760
    %5064 = vmatpush1.msra.mxu0 %v5063
    %5065 = vmatprep.subr.mxu0 0.0
    %v5066 = vand.u32 %v68, 4294901760
    %5067 = vmatpush1.msra.mxu0 %v5066
    %5068 = vmatprep.subr.mxu0 0.0
    %v5069 = vand.u32 %v67, 4294901760
    %5070 = vmatpush1.msra.mxu0 %v5069
    %5071 = vmatprep.subr.mxu0 0.0
    %v5072 = vand.u32 %v66, 4294901760
    %5073 = vmatpush1.msra.mxu0 %v5072
    %5074 = vmatprep.subr.mxu0 0.0
    %v5075 = vand.u32 %v65, 4294901760
    %5076 = vmatpush1.msra.mxu0 %v5075
    %5077 = vmatprep.subr.mxu0 0.0
    %v5078 = vand.u32 %v64, 4294901760
    %5079 = vmatpush1.msra.mxu0 %v5078
    %5080 = vmatprep.subr.mxu0 0.0
    %v5081 = vand.u32 %v63, 4294901760
    %5082 = vmatpush1.msra.mxu0 %v5081
    %5083 = vmatprep.subr.mxu0 0.0
    %v5084 = vand.u32 %v62, 4294901760
    %5085 = vmatpush1.msra.mxu0 %v5084
    %5086 = vmatprep.subr.mxu0 0.0
    %v5087 = vand.u32 %v61, 4294901760
    %5088 = vmatpush1.msra.mxu0 %v5087
    %5089 = vmatprep.subr.mxu0 0.0
    %v5090 = vand.u32 %v60, 4294901760
    %5091 = vmatpush1.msra.mxu0 %v5090
    %5092 = vmatprep.subr.mxu0 0.0
    %v5093 = vand.u32 %v59, 4294901760
    %5094 = vmatpush1.msra.mxu0 %v5093
    %5095 = vmatprep.subr.mxu0 0.0
    %v5096 = vand.u32 %v58, 4294901760
    %5097 = vmatpush1.msra.mxu0 %v5096
    %5098 = vmatprep.subr.mxu0 0.0
    %v5099 = vand.u32 %v57, 4294901760
    %5100 = vmatpush1.msra.mxu0 %v5099
    %5101 = vmatprep.subr.mxu0 0.0
    %v5102 = vand.u32 %v56, 4294901760
    %5103 = vmatpush1.msra.mxu0 %v5102
    %5104 = vmatprep.subr.mxu0 0.0
    %5105 = vmatpush2.msra.mxu0 0.0
    %5106 = vmatprep.subr.mxu0 0.0
    %5107 = vmatpush2.msra.mxu0 0.0
    %5108 = vmatprep.subr.mxu0 0.0
    %5109 = vmatpush2.msra.mxu0 0.0
    %5110 = vmatprep.subr.mxu0 0.0
    %5111 = vmatpush2.msra.mxu0 0.0
    %5112 = vmatprep.subr.mxu0 0.0
    %5113 = vmatpush2.msra.mxu0 0.0
    %5114 = vmatprep.subr.mxu0 0.0
    %5115 = vmatpush2.msra.mxu0 0.0
    %5116 = vmatprep.subr.mxu0 0.0
    %5117 = vmatpush2.msra.mxu0 0.0
    %5118 = vmatprep.subr.mxu0 0.0
    %5119 = vmatpush2.msra.mxu0 0.0
    %5120 = vmatprep.subr.mxu0 0.0
    %5121 = vmatpush2.msra.mxu0 0.0
    %5122 = vmatprep.subr.mxu0 0.0
    %5123 = vmatpush2.msra.mxu0 0.0
    %5124 = vmatprep.subr.mxu0 0.0
    %5125 = vmatpush2.msra.mxu0 0.0
    %5126 = vmatprep.subr.mxu0 0.0
    %5127 = vmatpush2.msra.mxu0 0.0
    %5128 = vmatprep.subr.mxu0 0.0
    %5129 = vmatpush2.msra.mxu0 0.0
    %5130 = vmatprep.subr.mxu0 0.0
    %5131 = vmatpush2.msra.mxu0 0.0
    %5132 = vmatprep.subr.mxu0 0.0
    %5133 = vmatpush2.msra.mxu0 0.0
    %5134 = vmatprep.subr.mxu0 0.0
    %5135 = vmatpush2.msra.mxu0 0.0
    %5136 = vmatprep.mubr.f32.mxu0 0.0
    %v5137 = vand.u32 %v4709, 4294901760
    %v5138 = vsub.f32 %v4709, %v5137
    %v5139 = vand.u32 %v5138, 4294901760
    %5140 = vmatmul.mubr.f32.gmra.mxu0 %v5139
    %v5141 = vpop.f32.mrf.mxu0
    %v5142 = vadd.f32 %v5053, %v5141
    %v5143 = vpop.f32.mrf.mxu0
    %5144 = vdwg.mxu0
    %5145 = vmatprep.subr.mxu0 0.0
    %v5146 = vand.u32 %v71, 4294901760
    %v5147 = vsub.f32 %v71, %v5146
    %v5148 = vand.u32 %v5147, 4294901760
    %5149 = vmatpush1.msra.mxu0 %v5148
    %5150 = vmatprep.subr.mxu0 0.0
    %v5151 = vand.u32 %v70, 4294901760
    %v5152 = vsub.f32 %v70, %v5151
    %v5153 = vand.u32 %v5152, 4294901760
    %5154 = vmatpush1.msra.mxu0 %v5153
    %5155 = vmatprep.subr.mxu0 0.0
    %v5156 = vand.u32 %v69, 4294901760
    %v5157 = vsub.f32 %v69, %v5156
    %v5158 = vand.u32 %v5157, 4294901760
    %5159 = vmatpush1.msra.mxu0 %v5158
    %5160 = vmatprep.subr.mxu0 0.0
    %v5161 = vand.u32 %v68, 4294901760
    %v5162 = vsub.f32 %v68, %v5161
    %v5163 = vand.u32 %v5162, 4294901760
    %5164 = vmatpush1.msra.mxu0 %v5163
    %5165 = vmatprep.subr.mxu0 0.0
    %v5166 = vand.u32 %v67, 4294901760
    %v5167 = vsub.f32 %v67, %v5166
    %v5168 = vand.u32 %v5167, 4294901760
    %5169 = vmatpush1.msra.mxu0 %v5168
    %5170 = vmatprep.subr.mxu0 0.0
    %v5171 = vand.u32 %v66, 4294901760
    %v5172 = vsub.f32 %v66, %v5171
    %v5173 = vand.u32 %v5172, 4294901760
    %5174 = vmatpush1.msra.mxu0 %v5173
    %5175 = vmatprep.subr.mxu0 0.0
    %v5176 = vand.u32 %v65, 4294901760
    %v5177 = vsub.f32 %v65, %v5176
    %v5178 = vand.u32 %v5177, 4294901760
    %5179 = vmatpush1.msra.mxu0 %v5178
    %5180 = vmatprep.subr.mxu0 0.0
    %v5181 = vand.u32 %v64, 4294901760
    %v5182 = vsub.f32 %v64, %v5181
    %v5183 = vand.u32 %v5182, 4294901760
    %5184 = vmatpush1.msra.mxu0 %v5183
    %5185 = vmatprep.subr.mxu0 0.0
    %v5186 = vand.u32 %v63, 4294901760
    %v5187 = vsub.f32 %v63, %v5186
    %v5188 = vand.u32 %v5187, 4294901760
    %5189 = vmatpush1.msra.mxu0 %v5188
    %5190 = vmatprep.subr.mxu0 0.0
    %v5191 = vand.u32 %v62, 4294901760
    %v5192 = vsub.f32 %v62, %v5191
    %v5193 = vand.u32 %v5192, 4294901760
    %5194 = vmatpush1.msra.mxu0 %v5193
    %5195 = vmatprep.subr.mxu0 0.0
    %v5196 = vand.u32 %v61, 4294901760
    %v5197 = vsub.f32 %v61, %v5196
    %v5198 = vand.u32 %v5197, 4294901760
    %5199 = vmatpush1.msra.mxu0 %v5198
    %5200 = vmatprep.subr.mxu0 0.0
    %v5201 = vand.u32 %v60, 4294901760
    %v5202 = vsub.f32 %v60, %v5201
    %v5203 = vand.u32 %v5202, 4294901760
    %5204 = vmatpush1.msra.mxu0 %v5203
    %5205 = vmatprep.subr.mxu0 0.0
    %v5206 = vand.u32 %v59, 4294901760
    %v5207 = vsub.f32 %v59, %v5206
    %v5208 = vand.u32 %v5207, 4294901760
    %5209 = vmatpush1.msra.mxu0 %v5208
    %5210 = vmatprep.subr.mxu0 0.0
    %v5211 = vand.u32 %v58, 4294901760
    %v5212 = vsub.f32 %v58, %v5211
    %v5213 = vand.u32 %v5212, 4294901760
    %5214 = vmatpush1.msra.mxu0 %v5213
    %5215 = vmatprep.subr.mxu0 0.0
    %v5216 = vand.u32 %v57, 4294901760
    %v5217 = vsub.f32 %v57, %v5216
    %v5218 = vand.u32 %v5217, 4294901760
    %5219 = vmatpush1.msra.mxu0 %v5218
    %5220 = vmatprep.subr.mxu0 0.0
    %v5221 = vand.u32 %v56, 4294901760
    %v5222 = vsub.f32 %v56, %v5221
    %v5223 = vand.u32 %v5222, 4294901760
    %5224 = vmatpush1.msra.mxu0 %v5223
    %5225 = vmatprep.subr.mxu0 0.0
    %5226 = vmatpush2.msra.mxu0 0.0
    %5227 = vmatprep.subr.mxu0 0.0
    %5228 = vmatpush2.msra.mxu0 0.0
    %5229 = vmatprep.subr.mxu0 0.0
    %5230 = vmatpush2.msra.mxu0 0.0
    %5231 = vmatprep.subr.mxu0 0.0
    %5232 = vmatpush2.msra.mxu0 0.0
    %5233 = vmatprep.subr.mxu0 0.0
    %5234 = vmatpush2.msra.mxu0 0.0
    %5235 = vmatprep.subr.mxu0 0.0
    %5236 = vmatpush2.msra.mxu0 0.0
    %5237 = vmatprep.subr.mxu0 0.0
    %5238 = vmatpush2.msra.mxu0 0.0
    %5239 = vmatprep.subr.mxu0 0.0
    %5240 = vmatpush2.msra.mxu0 0.0
    %5241 = vmatprep.subr.mxu0 0.0
    %5242 = vmatpush2.msra.mxu0 0.0
    %5243 = vmatprep.subr.mxu0 0.0
    %5244 = vmatpush2.msra.mxu0 0.0
    %5245 = vmatprep.subr.mxu0 0.0
    %5246 = vmatpush2.msra.mxu0 0.0
    %5247 = vmatprep.subr.mxu0 0.0
    %5248 = vmatpush2.msra.mxu0 0.0
    %5249 = vmatprep.subr.mxu0 0.0
    %5250 = vmatpush2.msra.mxu0 0.0
    %5251 = vmatprep.subr.mxu0 0.0
    %5252 = vmatpush2.msra.mxu0 0.0
    %5253 = vmatprep.subr.mxu0 0.0
    %5254 = vmatpush2.msra.mxu0 0.0
    %5255 = vmatprep.subr.mxu0 0.0
    %5256 = vmatpush2.msra.mxu0 0.0
    %5257 = vmatprep.mubr.f32.mxu0 0.0
    %v5258 = vand.u32 %v4709, 4294901760
    %5259 = vmatmul.mubr.f32.gmra.mxu0 %v5258
    %v5260 = vpop.f32.mrf.mxu0
    %v5261 = vadd.f32 %v5142, %v5260
    %v5262 = vpop.f32.mrf.mxu0
    %5263 = vdwg.mxu0
    %5264 = vmatprep.subr.mxu0 0.0
    %v5265 = vand.u32 %v71, 4294901760
    %5266 = vmatpush1.msra.mxu0 %v5265
    %5267 = vmatprep.subr.mxu0 0.0
    %v5268 = vand.u32 %v70, 4294901760
    %5269 = vmatpush1.msra.mxu0 %v5268
    %5270 = vmatprep.subr.mxu0 0.0
    %v5271 = vand.u32 %v69, 4294901760
    %5272 = vmatpush1.msra.mxu0 %v5271
    %5273 = vmatprep.subr.mxu0 0.0
    %v5274 = vand.u32 %v68, 4294901760
    %5275 = vmatpush1.msra.mxu0 %v5274
    %5276 = vmatprep.subr.mxu0 0.0
    %v5277 = vand.u32 %v67, 4294901760
    %5278 = vmatpush1.msra.mxu0 %v5277
    %5279 = vmatprep.subr.mxu0 0.0
    %v5280 = vand.u32 %v66, 4294901760
    %5281 = vmatpush1.msra.mxu0 %v5280
    %5282 = vmatprep.subr.mxu0 0.0
    %v5283 = vand.u32 %v65, 4294901760
    %5284 = vmatpush1.msra.mxu0 %v5283
    %5285 = vmatprep.subr.mxu0 0.0
    %v5286 = vand.u32 %v64, 4294901760
    %5287 = vmatpush1.msra.mxu0 %v5286
    %5288 = vmatprep.subr.mxu0 0.0
    %v5289 = vand.u32 %v63, 4294901760
    %5290 = vmatpush1.msra.mxu0 %v5289
    %5291 = vmatprep.subr.mxu0 0.0
    %v5292 = vand.u32 %v62, 4294901760
    %5293 = vmatpush1.msra.mxu0 %v5292
    %5294 = vmatprep.subr.mxu0 0.0
    %v5295 = vand.u32 %v61, 4294901760
    %5296 = vmatpush1.msra.mxu0 %v5295
    %5297 = vmatprep.subr.mxu0 0.0
    %v5298 = vand.u32 %v60, 4294901760
    %5299 = vmatpush1.msra.mxu0 %v5298
    %5300 = vmatprep.subr.mxu0 0.0
    %v5301 = vand.u32 %v59, 4294901760
    %5302 = vmatpush1.msra.mxu0 %v5301
    %5303 = vmatprep.subr.mxu0 0.0
    %v5304 = vand.u32 %v58, 4294901760
    %5305 = vmatpush1.msra.mxu0 %v5304
    %5306 = vmatprep.subr.mxu0 0.0
    %v5307 = vand.u32 %v57, 4294901760
    %5308 = vmatpush1.msra.mxu0 %v5307
    %5309 = vmatprep.subr.mxu0 0.0
    %v5310 = vand.u32 %v56, 4294901760
    %5311 = vmatpush1.msra.mxu0 %v5310
    %5312 = vmatprep.subr.mxu0 0.0
    %5313 = vmatpush2.msra.mxu0 0.0
    %5314 = vmatprep.subr.mxu0 0.0
    %5315 = vmatpush2.msra.mxu0 0.0
    %5316 = vmatprep.subr.mxu0 0.0
    %5317 = vmatpush2.msra.mxu0 0.0
    %5318 = vmatprep.subr.mxu0 0.0
    %5319 = vmatpush2.msra.mxu0 0.0
    %5320 = vmatprep.subr.mxu0 0.0
    %5321 = vmatpush2.msra.mxu0 0.0
    %5322 = vmatprep.subr.mxu0 0.0
    %5323 = vmatpush2.msra.mxu0 0.0
    %5324 = vmatprep.subr.mxu0 0.0
    %5325 = vmatpush2.msra.mxu0 0.0
    %5326 = vmatprep.subr.mxu0 0.0
    %5327 = vmatpush2.msra.mxu0 0.0
    %5328 = vmatprep.subr.mxu0 0.0
    %5329 = vmatpush2.msra.mxu0 0.0
    %5330 = vmatprep.subr.mxu0 0.0
    %5331 = vmatpush2.msra.mxu0 0.0
    %5332 = vmatprep.subr.mxu0 0.0
    %5333 = vmatpush2.msra.mxu0 0.0
    %5334 = vmatprep.subr.mxu0 0.0
    %5335 = vmatpush2.msra.mxu0 0.0
    %5336 = vmatprep.subr.mxu0 0.0
    %5337 = vmatpush2.msra.mxu0 0.0
    %5338 = vmatprep.subr.mxu0 0.0
    %5339 = vmatpush2.msra.mxu0 0.0
    %5340 = vmatprep.subr.mxu0 0.0
    %5341 = vmatpush2.msra.mxu0 0.0
    %5342 = vmatprep.subr.mxu0 0.0
    %5343 = vmatpush2.msra.mxu0 0.0
    %5344 = vmatprep.mubr.f32.mxu0 0.0
    %v5345 = vand.u32 %v4709, 4294901760
    %5346 = vmatmul.mubr.f32.gmra.mxu0 %v5345
    %v5347 = vpop.f32.mrf.mxu0
    %v5348 = vadd.f32 %v5261, %v5347
    %v5349 = vpop.f32.mrf.mxu0
    %5350 = vdwg.mxu0
    %v5351 = vmax.f32 %v5348, 1e-37
    %v5352 = vlog2.pop %v5351
    %v5353 = vmul.f32 %v5352, 0.6931472
    %v5354 = vadd.f32 %v5353, %v4706
    %v5355 = vadd.f32 %v5354, %v4704
    %vm5356 = vcmp.gt.f32.partialorder %v4704, 0.5
    %v5357 = vsel %vm5356, 1, 0
    %5358 = vset.pattern.permute.xlu0 5
    %5359 = vperm.xlu0 %5358, %v5357
    %v5360 = vpop.permute.xlu0 %5359
    %vm5361 = vcmp.eq.s32.totalorder %v5360, 1
    %v5362 = vsel %vm5361, %v5355, %v4702
    %5363 = vst [vmem:[#allocation2] sm:$0xff] %v5362
    // Predicated region
    $region30: #{tpu_custom_call.1} parent=1 // pred_check
      %p5364 = pneg %p72
    $region31: #{tpu_custom_call.1} parent=1 // pred_check_branch
      %5366 = sbr.rel (%p5364) target = $region33
    $region32: #{tpu_custom_call.1} parent=1 // pred_region
      %v5367 = vlaneseq
      %v5368 = vand.u32 %v5367, 127
      %vm5369 = vcmp.lt.s32.totalorder %v5368, 5
      %v5370 = vlaneseq
      %v5371 = vshrl.u32 %v5370, 7
      %v5372 = vsub.s32 0, %v5371
      %v5373 = vrot.slane %v55, %v5372
      %v5374 = vadd.f32 %v5362, %v5373
      %v5375 = vsel %vm5369, %v5374, -1e+30
      %5376 = vmax.xlane.f32.xlu0 %v5375
      %v5377 = vpop.xlane.xlu0 %5376
      %v5378 = vsub.f32 %v5375, %v5377
      %v5379 = vmul.f32 %v5378, 1.442695
      %v5380 = vpow.pop %v5379
      %5381 = vadd.xlane.f32.xlu0 %v5380
      %v5382 = vpop.xlane.xlu0 %5381
      %v5383 = vlog2.pop %v5382
      %v5384 = vmul.f32 %v5383, 0.6931472
      %v5385 = vadd.f32 %v5384, %v5377
      %5386 = vst [vmem:[#allocation9] sm:$0xff] %v5385
    $region33: #{tpu_custom_call.1} parent=1 // pred_fallthru
      _
    // Predicated region
    $region34: #{tpu_custom_call.1} parent=1 // pred_check
      _
    $region35: #{tpu_custom_call.1} parent=1 // pred_check_branch
      %5388 = sbr.rel (0) target = $region37
    $region36: #{tpu_custom_call.1} parent=1 // pred_region
      %s5390 = ssub.s32 128, 128
      %5391 = vsyncadd [#allocation5], %s5390
      %s5393 = sshll.u32 [#allocation9], 4
      %s5394 = int_to_ptr.vmem [resolvable:$true] %s5393
      %5396 = dma.vmem_to_hbm [thread:$0]  %s5394, 128, %s3, [#allocation5]
    $region37: #{tpu_custom_call.1} parent=1 // pred_fallthru
      _
    // Predicated region
    $region38: #{tpu_custom_call.1} parent=1 // pred_check
      _
    $region39: #{tpu_custom_call.1} parent=1 // pred_check_branch
      %5398 = sbr.rel (0) target = $region41
    $region40: #{tpu_custom_call.1} parent=1 // pred_region
      %5399 = dma.done [#allocation5], 128
    $region41: #{tpu_custom_call.1} parent=1 // pred_fallthru
      _
    %5400 = vsyncpa [#allocation4], 1
    %5401 = vsyncpa [#allocation7], 1
    %5402 = vsyncpa [#allocation5], 1

</llo_original>
